<compile_context>
chip_gen: v7x
topology: tpu7x:2x2x1
jax: 0.10.0
libtpu: 0.0.40
codegen_flags: <defaults>
</compile_context>

<pallas_src>
import math
import jax
import jax.numpy as jnp
from jax.experimental import pallas as pl
from jax.experimental.pallas import tpu as pltpu

# ----- small hyperparameters consistent with the module's __init__ -----
BATCH = 2
SEQ = 8                    # sequence_length
IN_DIM = 6                 # input_dim_per_step
IN_PAD = 8                 # zero-padded input feature dim (full sublane tile)
D_MODEL = 32
NHEAD = 4
HEAD_DIM = D_MODEL // NHEAD
NUM_LAYERS = 2             # num_encoder_layers
DIM_FF = 64                # dim_feedforward
HIDDEN_CLS = 32            # hidden_dim_classifier
LN_EPS = 1e-5
TOK = BATCH * SEQ
NEG_INF = -1e30

# ----- packed weight-blob layout (static row offsets; lane width = DIM_FF) -----
W_BLOB = DIM_FF                              # widest parameter row (w1 / b1)
R_PW = 0                                     # (IN_PAD, D_MODEL)  input proj * sqrt(d_model)
R_PBPE = R_PW + IN_PAD                       # (TOK, D_MODEL)     proj_bias*sqrt(d) + pos-encoding
R_LAYER0 = R_PBPE + TOK
L_WQ, L_WK, L_WV, L_WO = 0, 32, 64, 96       # (32,32) each; Wq pre-scaled by 1/sqrt(head_dim)
L_W1, L_W2 = 128, 160                        # (32,64), (64,32)
L_VEC = 224                                  # 10 single-row vectors, padded to 16 rows
V_BQ, V_BK, V_BV, V_BO, V_B1, V_B2, V_G1, V_BETA1, V_G2, V_BETA2 = range(10)
LAYER_ROWS = 240                             # keeps every matrix start 8-aligned
R_MW1 = R_LAYER0 + NUM_LAYERS * LAYER_ROWS   # (D_MODEL, HIDDEN_CLS)
R_MW2 = R_MW1 + D_MODEL                      # (HIDDEN_CLS, 1)
R_HVEC = R_MW2 + HIDDEN_CLS                  # row 0: mb1, row 1: mb2
TOTAL_ROWS = R_HVEC + 8                      # 576 rows -> blob is (576, 64) f32

# TODO(synk): all dropout layers (PositionalEncoding + encoder-layer dropouts) act as
# identity, i.e. inference/eval semantics; stochastic training dropout is not implemented.
# TODO(synk): if this forward is called repeatedly, add a grid axis over sample batches
# (weights index_map -> block 0, activations indexed by grid) and mark it PARALLEL on
# v7x; pointless at the current BATCH=2/SEQ=8 single-call size.


def _layer_norm(v, gamma, beta):
    mu = jnp.mean(v, axis=-1, keepdims=True)
    var = jnp.mean(jnp.square(v - mu), axis=-1, keepdims=True)
    return (v - mu) * jax.lax.rsqrt(var + LN_EPS) * gamma + beta


def _softplus(h):
    # PyTorch Softplus (beta=1, threshold=20).  log1p(y) via the Goldberg trick so the
    # small-y tail keeps full relative precision in f32; the denominator is guarded so
    # the unselected branch never computes 0/0.
    y = jnp.exp(jnp.minimum(h, 20.0))
    w = 1.0 + y
    den = jnp.where(w == 1.0, 1.0, w - 1.0)
    log1p_y = jnp.where(w == 1.0, y, jnp.log(w) * (y / den))
    return jnp.where(h > 20.0, h, log1p_y)


# ------------------- single fused forward kernel -----------------------------------
def fused_forward_kernel(x_ref, w_ref, out_ref):
    def mat(r, rows, cols):               # static slice of the packed weight blob
        return w_ref[r:r + rows, 0:cols]

    def vec(r, cols):                     # single parameter row (broadcasts over tokens)
        return w_ref[r:r + 1, 0:cols]

    # ---- constant masks (built once from iotas; trivially cheap, constant-foldable) ----
    lane = jax.lax.broadcasted_iota(jnp.int32, (1, D_MODEL), 1)
    head_masks = [
        jnp.where((lane >= h * HEAD_DIM) & (lane < (h + 1) * HEAD_DIM), 1.0, 0.0)
        for h in range(NHEAD)
    ]
    qi = jax.lax.broadcasted_iota(jnp.int32, (TOK, TOK), 0)
    ki = jax.lax.broadcasted_iota(jnp.int32, (TOK, TOK), 1)
    same_batch = (qi < 0)                                    # all-False start
    for b in range(BATCH):
        lo, hi = b * SEQ, (b + 1) * SEQ
        same_batch = same_batch | ((qi >= lo) & (qi < hi) & (ki >= lo) & (ki < hi))
    neg_cross = jnp.where(same_batch, 0.0, NEG_INF)          # (TOK, TOK) additive mask

    # ---- input projection (sqrt(d_model) folded in) + [proj_bias*sqrt(d) + pos-enc] ----
    x = jnp.dot(x_ref[...], mat(R_PW, IN_PAD, D_MODEL),
                preferred_element_type=jnp.float32) + mat(R_PBPE, TOK, D_MODEL)

    # ---- stacked post-LN TransformerEncoder layers (static layer / head loops) ----
    for l in range(NUM_LAYERS):
        base = R_LAYER0 + l * LAYER_ROWS
        vb = base + L_VEC

        # full-width Q, K, V: three (16,32)@(32,32) matmuls (Wq/bq carry 1/sqrt(head_dim))
        q = jnp.dot(x, mat(base + L_WQ, D_MODEL, D_MODEL),
                    preferred_element_type=jnp.float32) + vec(vb + V_BQ, D_MODEL)
        k = jnp.dot(x, mat(base + L_WK, D_MODEL, D_MODEL),
                    preferred_element_type=jnp.float32) + vec(vb + V_BK, D_MODEL)
        v = jnp.dot(x, mat(base + L_WV, D_MODEL, D_MODEL),
                    preferred_element_type=jnp.float32) + vec(vb + V_BV, D_MODEL)

        # multi-head attention with full-lane masked matmuls (no 8-lane slices/reshapes)
        o = jnp.zeros((TOK, D_MODEL), jnp.float32)
        for h in range(NHEAD):
            m_h = head_masks[h]                                            # (1, D_MODEL)
            s = jax.lax.dot_general(q * m_h, k, (((1,), (1,)), ((), ())),
                                    preferred_element_type=jnp.float32)    # (TOK, TOK)
            s = s + neg_cross                                              # kill cross-batch
            s = s - jnp.max(s, axis=-1, keepdims=True)
            p = jnp.exp(s)
            p = p / jnp.sum(p, axis=-1, keepdims=True)                     # exact softmax
            o = o + jnp.dot(p, v * m_h, preferred_element_type=jnp.float32)

        attn = jnp.dot(o, mat(base + L_WO, D_MODEL, D_MODEL),
                       preferred_element_type=jnp.float32) + vec(vb + V_BO, D_MODEL)
        y = _layer_norm(x + attn, vec(vb + V_G1, D_MODEL), vec(vb + V_BETA1, D_MODEL))

        hmid = jnp.dot(y, mat(base + L_W1, D_MODEL, DIM_FF),
                       preferred_element_type=jnp.float32) + vec(vb + V_B1, DIM_FF)
        hmid = jnp.maximum(hmid, 0.0)                                      # ReLU
        ff = jnp.dot(hmid, mat(base + L_W2, DIM_FF, D_MODEL),
                     preferred_element_type=jnp.float32) + vec(vb + V_B2, D_MODEL)
        x = _layer_norm(y + ff, vec(vb + V_G2, D_MODEL), vec(vb + V_BETA2, D_MODEL))

    # ---- memory[-1, :, :]: last sequence step per batch via constant selection matmul ----
    rowi = jax.lax.broadcasted_iota(jnp.int32, (BATCH, TOK), 0)
    coli = jax.lax.broadcasted_iota(jnp.int32, (BATCH, TOK), 1)
    sel = jnp.where(coli == rowi * SEQ + (SEQ - 1), 1.0, 0.0)              # (BATCH, TOK)
    last = jnp.dot(sel, x, preferred_element_type=jnp.float32)             # (BATCH, D_MODEL)

    # ---- output MLP head: Linear -> Softplus -> Linear ----
    hcls = jnp.dot(last, mat(R_MW1, D_MODEL, HIDDEN_CLS),
                   preferred_element_type=jnp.float32) + vec(R_HVEC + 0, HIDDEN_CLS)
    out_ref[...] = jnp.dot(_softplus(hcls), mat(R_MW2, HIDDEN_CLS, 1),
                           preferred_element_type=jnp.float32) + vec(R_HVEC + 1, 1)


# ------------------- plain-JAX glue: params, packing, wrapper ----------------------
def make_pos_encoding(max_len, d_model):
    position = jnp.arange(max_len, dtype=jnp.float32)[:, None]
    div_term = jnp.exp(jnp.arange(0, d_model, 2, dtype=jnp.float32)
                       * (-math.log(10000.0) / d_model))
    pe = jnp.zeros((max_len, d_model), jnp.float32)
    pe = pe.at[:, 0::2].set(jnp.sin(position * div_term))
    pe = pe.at[:, 1::2].set(jnp.cos(position * div_term))
    return pe


def init_params(key):
    state = {"key": key}

    def nxt():
        state["key"], sub = jax.random.split(state["key"])
        return sub

    def lin(in_f, out_f):
        # weights stored pre-transposed: shape (in_f, out_f) == nn.Linear.weight.T
        bound = 1.0 / math.sqrt(in_f)
        w = jax.random.uniform(nxt(), (in_f, out_f), jnp.float32, -bound, bound)
        b = jax.random.uniform(nxt(), (1, out_f), jnp.float32, -bound, bound)
        return w, b

    params = {}
    params["proj_w"], params["proj_b"] = lin(IN_DIM, D_MODEL)
    layers = []
    for _ in range(NUM_LAYERS):
        l = {}
        l["wqkv"], l["bqkv"] = lin(D_MODEL, 3 * D_MODEL)   # in_proj (q,k,v packed)
        l["wo"], l["bo"] = lin(D_MODEL, D_MODEL)           # out_proj
        l["w1"], l["b1"] = lin(D_MODEL, DIM_FF)
        l["w2"], l["b2"] = lin(DIM_FF, D_MODEL)
        l["g1"] = jnp.ones((1, D_MODEL), jnp.float32)
        l["beta1"] = jnp.zeros((1, D_MODEL), jnp.float32)
        l["g2"] = jnp.ones((1, D_MODEL), jnp.float32)
        l["beta2"] = jnp.zeros((1, D_MODEL), jnp.float32)
        layers.append(l)
    params["layers"] = layers
    params["mlp_w1"], params["mlp_b1"] = lin(D_MODEL, HIDDEN_CLS)
    params["mlp_w2"], params["mlp_b2"] = lin(HIDDEN_CLS, 1)
    return params


def pack_weights(params):
    """Pack every parameter (plus positional encoding and all constant-foldable scalings)
    into one (TOTAL_ROWS, W_BLOB) f32 blob so the kernel weight prologue is one DMA."""
    sqrt_d = math.sqrt(D_MODEL)
    scale = 1.0 / math.sqrt(HEAD_DIM)

    def put(b, r, a):
        a = jnp.asarray(a, jnp.float32)
        return b.at[r:r + a.shape[0], 0:a.shape[1]].set(a)

    blob = jnp.zeros((TOTAL_ROWS, W_BLOB), jnp.float32)

    # input projection (padded 6->8 contraction rows) * sqrt(d_model)
    pw = jnp.zeros((IN_PAD, D_MODEL), jnp.float32).at[:IN_DIM].set(params["proj_w"] * sqrt_d)
    blob = put(blob, R_PW, pw)
    # proj_bias*sqrt(d_model) + positional encoding, pre-tiled over the batch
    pe = make_pos_encoding(SEQ + 1, D_MODEL)[:SEQ]
    blob = put(blob, R_PBPE, jnp.tile(pe, (BATCH, 1)) + params["proj_b"] * sqrt_d)

    for l, lyr in enumerate(params["layers"]):
        base = R_LAYER0 + l * LAYER_ROWS
        wqkv, bqkv = lyr["wqkv"], lyr["bqkv"]
        blob = put(blob, base + L_WQ, wqkv[:, 0:D_MODEL] * scale)   # 1/sqrt(head_dim) folded
        blob = put(blob, base + L_WK, wqkv[:, D_MODEL:2 * D_MODEL])
        blob = put(blob, base + L_WV, wqkv[:, 2 * D_MODEL:])
        blob = put(blob, base + L_WO, lyr["wo"])
        blob = put(blob, base + L_W1, lyr["w1"])
        blob = put(blob, base + L_W2, lyr["w2"])
        vb = base + L_VEC
        vecs = [bqkv[:, 0:D_MODEL] * scale, bqkv[:, D_MODEL:2 * D_MODEL],
                bqkv[:, 2 * D_MODEL:], lyr["bo"], lyr["b1"], lyr["b2"],
                lyr["g1"], lyr["beta1"], lyr["g2"], lyr["beta2"]]
        for i, a in enumerate(vecs):
            blob = put(blob, vb + i, a)

    blob = put(blob, R_MW1, params["mlp_w1"])
    blob = put(blob, R_MW2, params["mlp_w2"])
    blob = put(blob, R_HVEC + 0, params["mlp_b1"])
    blob = put(blob, R_HVEC + 1, params["mlp_b2"])
    return blob


def lagrangian_transformer_forward(blob, src):
    # src: (BATCH, SEQ, IN_DIM) -> batch-major flattened (TOK, IN_PAD), zero-padded features
    B, S, F = src.shape
    x = jnp.zeros((B * S, IN_PAD), jnp.float32)
    x = x.at[:, :F].set(src.reshape(B * S, F).astype(jnp.float32))

    # Whole forward in one gridless launch: resident data (weights + activations) is a
    # few hundred KiB, far under every generation's VMEM, so no tiling is needed.
    return pl.pallas_call(
        fused_forward_kernel,
        out_shape=jax.ShapeDtypeStruct((B, 1), jnp.float32),
        in_specs=[pl.BlockSpec(memory_space=pltpu.MemorySpace.VMEM),
                  pl.BlockSpec(memory_space=pltpu.MemorySpace.VMEM)],
        out_specs=pl.BlockSpec(memory_space=pltpu.MemorySpace.VMEM),
    )(x, blob)


if __name__ == "__main__":
    key = jax.random.PRNGKey(0)
    pkey, xkey = jax.random.split(key)
    params = init_params(pkey)
    blob = jax.block_until_ready(pack_weights(params))      # packed once, reused per call
    src = jax.random.normal(xkey, (BATCH, SEQ, IN_DIM), jnp.float32)

    fwd = jax.jit(lagrangian_transformer_forward)
    out = fwd(blob, src)
    jax.block_until_ready(out)
    assert out.shape == (BATCH, 1) and out.dtype == jnp.float32
    print("KERNEL_OK")
</pallas_src>

<mosaic_0001>
module attributes {stable_mosaic.version = 11 : i64} {
  func.func @fused_forward_kernel(%arg0: memref<16x8xf32, #tpu.memory_space<vmem>>, %arg1: memref<576x64xf32, #tpu.memory_space<vmem>>, %arg2: memref<2x1xf32, #tpu.memory_space<vmem>>) attributes {dimension_semantics = [], scalar_prefetch = 0 : i64, scratch_operands = 0 : i64, tpu.core_type = #tpu.core_type<tc>} {
    %0 = tpu.iota {dimensions = array<i32: 1>} : vector<1x32xi32>
    %c0_i32 = arith.constant 0 : i32
    %1 = vector.broadcast %c0_i32 : i32 to vector<1x32xi32>
    %2 = arith.cmpi sge, %0, %1 : vector<1x32xi32>
    %c8_i32 = arith.constant 8 : i32
    %3 = vector.broadcast %c8_i32 : i32 to vector<1x32xi32>
    %4 = arith.cmpi slt, %0, %3 : vector<1x32xi32>
    %5 = arith.andi %2, %4 : vector<1x32xi1>
    %cst = arith.constant 1.000000e+00 : f32
    %cst_0 = arith.constant 0.000000e+00 : f32
    %6 = vector.broadcast %cst : f32 to vector<1x32xf32>
    %7 = vector.broadcast %cst_0 : f32 to vector<1x32xf32>
    %8 = arith.select %5, %6, %7 : vector<1x32xi1>, vector<1x32xf32>
    %c8_i32_1 = arith.constant 8 : i32
    %9 = vector.broadcast %c8_i32_1 : i32 to vector<1x32xi32>
    %10 = arith.cmpi sge, %0, %9 : vector<1x32xi32>
    %c16_i32 = arith.constant 16 : i32
    %11 = vector.broadcast %c16_i32 : i32 to vector<1x32xi32>
    %12 = arith.cmpi slt, %0, %11 : vector<1x32xi32>
    %13 = arith.andi %10, %12 : vector<1x32xi1>
    %cst_2 = arith.constant 1.000000e+00 : f32
    %cst_3 = arith.constant 0.000000e+00 : f32
    %14 = vector.broadcast %cst_2 : f32 to vector<1x32xf32>
    %15 = vector.broadcast %cst_3 : f32 to vector<1x32xf32>
    %16 = arith.select %13, %14, %15 : vector<1x32xi1>, vector<1x32xf32>
    %c16_i32_4 = arith.constant 16 : i32
    %17 = vector.broadcast %c16_i32_4 : i32 to vector<1x32xi32>
    %18 = arith.cmpi sge, %0, %17 : vector<1x32xi32>
    %c24_i32 = arith.constant 24 : i32
    %19 = vector.broadcast %c24_i32 : i32 to vector<1x32xi32>
    %20 = arith.cmpi slt, %0, %19 : vector<1x32xi32>
    %21 = arith.andi %18, %20 : vector<1x32xi1>
    %cst_5 = arith.constant 1.000000e+00 : f32
    %cst_6 = arith.constant 0.000000e+00 : f32
    %22 = vector.broadcast %cst_5 : f32 to vector<1x32xf32>
    %23 = vector.broadcast %cst_6 : f32 to vector<1x32xf32>
    %24 = arith.select %21, %22, %23 : vector<1x32xi1>, vector<1x32xf32>
    %c24_i32_7 = arith.constant 24 : i32
    %25 = vector.broadcast %c24_i32_7 : i32 to vector<1x32xi32>
    %26 = arith.cmpi sge, %0, %25 : vector<1x32xi32>
    %c32_i32 = arith.constant 32 : i32
    %27 = vector.broadcast %c32_i32 : i32 to vector<1x32xi32>
    %28 = arith.cmpi slt, %0, %27 : vector<1x32xi32>
    %29 = arith.andi %26, %28 : vector<1x32xi1>
    %cst_8 = arith.constant 1.000000e+00 : f32
    %cst_9 = arith.constant 0.000000e+00 : f32
    %30 = vector.broadcast %cst_8 : f32 to vector<1x32xf32>
    %31 = vector.broadcast %cst_9 : f32 to vector<1x32xf32>
    %32 = arith.select %29, %30, %31 : vector<1x32xi1>, vector<1x32xf32>
    %33 = tpu.iota {dimensions = array<i32: 0>} : vector<16x16xi32>
    %34 = tpu.iota {dimensions = array<i32: 1>} : vector<16x16xi32>
    %c0_i32_10 = arith.constant 0 : i32
    %35 = vector.broadcast %c0_i32_10 : i32 to vector<16x16xi32>
    %36 = arith.cmpi slt, %33, %35 : vector<16x16xi32>
    %c0_i32_11 = arith.constant 0 : i32
    %37 = vector.broadcast %c0_i32_11 : i32 to vector<16x16xi32>
    %38 = arith.cmpi sge, %33, %37 : vector<16x16xi32>
    %c8_i32_12 = arith.constant 8 : i32
    %39 = vector.broadcast %c8_i32_12 : i32 to vector<16x16xi32>
    %40 = arith.cmpi slt, %33, %39 : vector<16x16xi32>
    %41 = arith.andi %38, %40 : vector<16x16xi1>
    %c0_i32_13 = arith.constant 0 : i32
    %42 = vector.broadcast %c0_i32_13 : i32 to vector<16x16xi32>
    %43 = arith.cmpi sge, %34, %42 : vector<16x16xi32>
    %44 = arith.andi %41, %43 : vector<16x16xi1>
    %c8_i32_14 = arith.constant 8 : i32
    %45 = vector.broadcast %c8_i32_14 : i32 to vector<16x16xi32>
    %46 = arith.cmpi slt, %34, %45 : vector<16x16xi32>
    %47 = arith.andi %44, %46 : vector<16x16xi1>
    %48 = arith.ori %36, %47 : vector<16x16xi1>
    %c8_i32_15 = arith.constant 8 : i32
    %49 = vector.broadcast %c8_i32_15 : i32 to vector<16x16xi32>
    %50 = arith.cmpi sge, %33, %49 : vector<16x16xi32>
    %c16_i32_16 = arith.constant 16 : i32
    %51 = vector.broadcast %c16_i32_16 : i32 to vector<16x16xi32>
    %52 = arith.cmpi slt, %33, %51 : vector<16x16xi32>
    %53 = arith.andi %50, %52 : vector<16x16xi1>
    %c8_i32_17 = arith.constant 8 : i32
    %54 = vector.broadcast %c8_i32_17 : i32 to vector<16x16xi32>
    %55 = arith.cmpi sge, %34, %54 : vector<16x16xi32>
    %56 = arith.andi %53, %55 : vector<16x16xi1>
    %c16_i32_18 = arith.constant 16 : i32
    %57 = vector.broadcast %c16_i32_18 : i32 to vector<16x16xi32>
    %58 = arith.cmpi slt, %34, %57 : vector<16x16xi32>
    %59 = arith.andi %56, %58 : vector<16x16xi1>
    %60 = arith.ori %48, %59 : vector<16x16xi1>
    %cst_19 = arith.constant 0.000000e+00 : f32
    %cst_20 = arith.constant -1.000000e+30 : f32
    %61 = vector.broadcast %cst_19 : f32 to vector<16x16xf32>
    %62 = vector.broadcast %cst_20 : f32 to vector<16x16xf32>
    %63 = arith.select %60, %61, %62 : vector<16x16xi1>, vector<16x16xf32>
    %c0 = arith.constant 0 : index
    %c0_21 = arith.constant 0 : index
    %64 = vector.load %arg0[%c0, %c0_21] : memref<16x8xf32, #tpu.memory_space<vmem>>, vector<16x8xf32>
    %c0_22 = arith.constant 0 : index
    %c0_23 = arith.constant 0 : index
    %65 = vector.load %arg1[%c0_22, %c0_23] : memref<576x64xf32, #tpu.memory_space<vmem>>, vector<8x32xf32>
    %cst_24 = arith.constant dense<0.000000e+00> : vector<16x32xf32>
    %66 = tpu.matmul %64, %65, %cst_24 {dimension_numbers = #tpu.dot_dimension_numbers<[1], [0], [0], [1], [0, 0, 1, 1], [], []>} : vector<16x8xf32>, vector<8x32xf32>, vector<16x32xf32> -> vector<16x32xf32>
    %c8 = arith.constant 8 : index
    %c0_25 = arith.constant 0 : index
    %67 = vector.load %arg1[%c8, %c0_25] : memref<576x64xf32, #tpu.memory_space<vmem>>, vector<16x32xf32>
    %68 = arith.addf %66, %67 : vector<16x32xf32>
    %c24 = arith.constant 24 : index
    %c0_26 = arith.constant 0 : index
    %69 = vector.load %arg1[%c24, %c0_26] : memref<576x64xf32, #tpu.memory_space<vmem>>, vector<32x32xf32>
    %cst_27 = arith.constant dense<0.000000e+00> : vector<16x32xf32>
    %70 = tpu.matmul %68, %69, %cst_27 {dimension_numbers = #tpu.dot_dimension_numbers<[1], [0], [0], [1], [0, 0, 1, 1], [], []>} : vector<16x32xf32>, vector<32x32xf32>, vector<16x32xf32> -> vector<16x32xf32>
    %c248 = arith.constant 248 : index
    %c0_28 = arith.constant 0 : index
    %71 = vector.load %arg1[%c248, %c0_28] : memref<576x64xf32, #tpu.memory_space<vmem>>, vector<1x32xf32>
    %72 = vector.broadcast %71 : vector<1x32xf32> to vector<16x32xf32>
    %73 = arith.addf %70, %72 : vector<16x32xf32>
    %c56 = arith.constant 56 : index
    %c0_29 = arith.constant 0 : index
    %74 = vector.load %arg1[%c56, %c0_29] : memref<576x64xf32, #tpu.memory_space<vmem>>, vector<32x32xf32>
    %cst_30 = arith.constant dense<0.000000e+00> : vector<16x32xf32>
    %75 = tpu.matmul %68, %74, %cst_30 {dimension_numbers = #tpu.dot_dimension_numbers<[1], [0], [0], [1], [0, 0, 1, 1], [], []>} : vector<16x32xf32>, vector<32x32xf32>, vector<16x32xf32> -> vector<16x32xf32>
    %c249 = arith.constant 249 : index
    %c0_31 = arith.constant 0 : index
    %76 = vector.load %arg1[%c249, %c0_31] : memref<576x64xf32, #tpu.memory_space<vmem>>, vector<1x32xf32>
    %77 = vector.broadcast %76 : vector<1x32xf32> to vector<16x32xf32>
    %78 = arith.addf %75, %77 : vector<16x32xf32>
    %c88 = arith.constant 88 : index
    %c0_32 = arith.constant 0 : index
    %79 = vector.load %arg1[%c88, %c0_32] : memref<576x64xf32, #tpu.memory_space<vmem>>, vector<32x32xf32>
    %cst_33 = arith.constant dense<0.000000e+00> : vector<16x32xf32>
    %80 = tpu.matmul %68, %79, %cst_33 {dimension_numbers = #tpu.dot_dimension_numbers<[1], [0], [0], [1], [0, 0, 1, 1], [], []>} : vector<16x32xf32>, vector<32x32xf32>, vector<16x32xf32> -> vector<16x32xf32>
    %c250 = arith.constant 250 : index
    %c0_34 = arith.constant 0 : index
    %81 = vector.load %arg1[%c250, %c0_34] : memref<576x64xf32, #tpu.memory_space<vmem>>, vector<1x32xf32>
    %82 = vector.broadcast %81 : vector<1x32xf32> to vector<16x32xf32>
    %83 = arith.addf %80, %82 : vector<16x32xf32>
    %cst_35 = arith.constant 0.000000e+00 : f32
    %84 = vector.broadcast %cst_35 : f32 to vector<16x32xf32>
    %85 = vector.broadcast %8 : vector<1x32xf32> to vector<16x32xf32>
    %86 = arith.mulf %73, %85 : vector<16x32xf32>
    %cst_36 = arith.constant dense<0.000000e+00> : vector<16x16xf32>
    %87 = tpu.matmul %86, %78, %cst_36 {dimension_numbers = #tpu.dot_dimension_numbers<[1], [1], [0], [0], [0, 0, 1, 0], [], []>} : vector<16x32xf32>, vector<16x32xf32>, vector<16x16xf32> -> vector<16x16xf32>
    %88 = arith.addf %87, %63 : vector<16x16xf32>
    %cst_37 = arith.constant dense<0xFF800000> : vector<16xf32>
    %89 = vector.multi_reduction <maximumf>, %88, %cst_37 [1] : vector<16x16xf32> to vector<16xf32>
    %90 = vector.shape_cast %89 : vector<16xf32> to vector<16x1xf32>
    %91 = vector.broadcast %90 : vector<16x1xf32> to vector<16x16xf32>
    %92 = arith.subf %88, %91 : vector<16x16xf32>
    %93 = math.exp %92 : vector<16x16xf32>
    %cst_38 = arith.constant dense<0.000000e+00> : vector<16xf32>
    %94 = vector.multi_reduction <add>, %93, %cst_38 [1] : vector<16x16xf32> to vector<16xf32>
    %95 = vector.shape_cast %94 : vector<16xf32> to vector<16x1xf32>
    %96 = vector.broadcast %95 : vector<16x1xf32> to vector<16x16xf32>
    %97 = arith.divf %93, %96 : vector<16x16xf32>
    %98 = vector.broadcast %8 : vector<1x32xf32> to vector<16x32xf32>
    %99 = arith.mulf %83, %98 : vector<16x32xf32>
    %cst_39 = arith.constant dense<0.000000e+00> : vector<16x32xf32>
    %100 = tpu.matmul %97, %99, %cst_39 {dimension_numbers = #tpu.dot_dimension_numbers<[1], [0], [0], [1], [0, 0, 1, 1], [], []>} : vector<16x16xf32>, vector<16x32xf32>, vector<16x32xf32> -> vector<16x32xf32>
    %101 = arith.addf %84, %100 : vector<16x32xf32>
    %102 = vector.broadcast %16 : vector<1x32xf32> to vector<16x32xf32>
    %103 = arith.mulf %73, %102 : vector<16x32xf32>
    %cst_40 = arith.constant dense<0.000000e+00> : vector<16x16xf32>
    %104 = tpu.matmul %103, %78, %cst_40 {dimension_numbers = #tpu.dot_dimension_numbers<[1], [1], [0], [0], [0, 0, 1, 0], [], []>} : vector<16x32xf32>, vector<16x32xf32>, vector<16x16xf32> -> vector<16x16xf32>
    %105 = arith.addf %104, %63 : vector<16x16xf32>
    %cst_41 = arith.constant dense<0xFF800000> : vector<16xf32>
    %106 = vector.multi_reduction <maximumf>, %105, %cst_41 [1] : vector<16x16xf32> to vector<16xf32>
    %107 = vector.shape_cast %106 : vector<16xf32> to vector<16x1xf32>
    %108 = vector.broadcast %107 : vector<16x1xf32> to vector<16x16xf32>
    %109 = arith.subf %105, %108 : vector<16x16xf32>
    %110 = math.exp %109 : vector<16x16xf32>
    %cst_42 = arith.constant dense<0.000000e+00> : vector<16xf32>
    %111 = vector.multi_reduction <add>, %110, %cst_42 [1] : vector<16x16xf32> to vector<16xf32>
    %112 = vector.shape_cast %111 : vector<16xf32> to vector<16x1xf32>
    %113 = vector.broadcast %112 : vector<16x1xf32> to vector<16x16xf32>
    %114 = arith.divf %110, %113 : vector<16x16xf32>
    %115 = vector.broadcast %16 : vector<1x32xf32> to vector<16x32xf32>
    %116 = arith.mulf %83, %115 : vector<16x32xf32>
    %cst_43 = arith.constant dense<0.000000e+00> : vector<16x32xf32>
    %117 = tpu.matmul %114, %116, %cst_43 {dimension_numbers = #tpu.dot_dimension_numbers<[1], [0], [0], [1], [0, 0, 1, 1], [], []>} : vector<16x16xf32>, vector<16x32xf32>, vector<16x32xf32> -> vector<16x32xf32>
    %118 = arith.addf %101, %117 : vector<16x32xf32>
    %119 = vector.broadcast %24 : vector<1x32xf32> to vector<16x32xf32>
    %120 = arith.mulf %73, %119 : vector<16x32xf32>
    %cst_44 = arith.constant dense<0.000000e+00> : vector<16x16xf32>
    %121 = tpu.matmul %120, %78, %cst_44 {dimension_numbers = #tpu.dot_dimension_numbers<[1], [1], [0], [0], [0, 0, 1, 0], [], []>} : vector<16x32xf32>, vector<16x32xf32>, vector<16x16xf32> -> vector<16x16xf32>
    %122 = arith.addf %121, %63 : vector<16x16xf32>
    %cst_45 = arith.constant dense<0xFF800000> : vector<16xf32>
    %123 = vector.multi_reduction <maximumf>, %122, %cst_45 [1] : vector<16x16xf32> to vector<16xf32>
    %124 = vector.shape_cast %123 : vector<16xf32> to vector<16x1xf32>
    %125 = vector.broadcast %124 : vector<16x1xf32> to vector<16x16xf32>
    %126 = arith.subf %122, %125 : vector<16x16xf32>
    %127 = math.exp %126 : vector<16x16xf32>
    %cst_46 = arith.constant dense<0.000000e+00> : vector<16xf32>
    %128 = vector.multi_reduction <add>, %127, %cst_46 [1] : vector<16x16xf32> to vector<16xf32>
    %129 = vector.shape_cast %128 : vector<16xf32> to vector<16x1xf32>
    %130 = vector.broadcast %129 : vector<16x1xf32> to vector<16x16xf32>
    %131 = arith.divf %127, %130 : vector<16x16xf32>
    %132 = vector.broadcast %24 : vector<1x32xf32> to vector<16x32xf32>
    %133 = arith.mulf %83, %132 : vector<16x32xf32>
    %cst_47 = arith.constant dense<0.000000e+00> : vector<16x32xf32>
    %134 = tpu.matmul %131, %133, %cst_47 {dimension_numbers = #tpu.dot_dimension_numbers<[1], [0], [0], [1], [0, 0, 1, 1], [], []>} : vector<16x16xf32>, vector<16x32xf32>, vector<16x32xf32> -> vector<16x32xf32>
    %135 = arith.addf %118, %134 : vector<16x32xf32>
    %136 = vector.broadcast %32 : vector<1x32xf32> to vector<16x32xf32>
    %137 = arith.mulf %73, %136 : vector<16x32xf32>
    %cst_48 = arith.constant dense<0.000000e+00> : vector<16x16xf32>
    %138 = tpu.matmul %137, %78, %cst_48 {dimension_numbers = #tpu.dot_dimension_numbers<[1], [1], [0], [0], [0, 0, 1, 0], [], []>} : vector<16x32xf32>, vector<16x32xf32>, vector<16x16xf32> -> vector<16x16xf32>
    %139 = arith.addf %138, %63 : vector<16x16xf32>
    %cst_49 = arith.constant dense<0xFF800000> : vector<16xf32>
    %140 = vector.multi_reduction <maximumf>, %139, %cst_49 [1] : vector<16x16xf32> to vector<16xf32>
    %141 = vector.shape_cast %140 : vector<16xf32> to vector<16x1xf32>
    %142 = vector.broadcast %141 : vector<16x1xf32> to vector<16x16xf32>
    %143 = arith.subf %139, %142 : vector<16x16xf32>
    %144 = math.exp %143 : vector<16x16xf32>
    %cst_50 = arith.constant dense<0.000000e+00> : vector<16xf32>
    %145 = vector.multi_reduction <add>, %144, %cst_50 [1] : vector<16x16xf32> to vector<16xf32>
    %146 = vector.shape_cast %145 : vector<16xf32> to vector<16x1xf32>
    %147 = vector.broadcast %146 : vector<16x1xf32> to vector<16x16xf32>
    %148 = arith.divf %144, %147 : vector<16x16xf32>
    %149 = vector.broadcast %32 : vector<1x32xf32> to vector<16x32xf32>
    %150 = arith.mulf %83, %149 : vector<16x32xf32>
    %cst_51 = arith.constant dense<0.000000e+00> : vector<16x32xf32>
    %151 = tpu.matmul %148, %150, %cst_51 {dimension_numbers = #tpu.dot_dimension_numbers<[1], [0], [0], [1], [0, 0, 1, 1], [], []>} : vector<16x16xf32>, vector<16x32xf32>, vector<16x32xf32> -> vector<16x32xf32>
    %152 = arith.addf %135, %151 : vector<16x32xf32>
    %c120 = arith.constant 120 : index
    %c0_52 = arith.constant 0 : index
    %153 = vector.load %arg1[%c120, %c0_52] : memref<576x64xf32, #tpu.memory_space<vmem>>, vector<32x32xf32>
    %cst_53 = arith.constant dense<0.000000e+00> : vector<16x32xf32>
    %154 = tpu.matmul %152, %153, %cst_53 {dimension_numbers = #tpu.dot_dimension_numbers<[1], [0], [0], [1], [0, 0, 1, 1], [], []>} : vector<16x32xf32>, vector<32x32xf32>, vector<16x32xf32> -> vector<16x32xf32>
    %c251 = arith.constant 251 : index
    %c0_54 = arith.constant 0 : index
    %155 = vector.load %arg1[%c251, %c0_54] : memref<576x64xf32, #tpu.memory_space<vmem>>, vector<1x32xf32>
    %156 = vector.broadcast %155 : vector<1x32xf32> to vector<16x32xf32>
    %157 = arith.addf %154, %156 : vector<16x32xf32>
    %158 = arith.addf %68, %157 : vector<16x32xf32>
    %c254 = arith.constant 254 : index
    %c0_55 = arith.constant 0 : index
    %159 = vector.load %arg1[%c254, %c0_55] : memref<576x64xf32, #tpu.memory_space<vmem>>, vector<1x32xf32>
    %c255 = arith.constant 255 : index
    %c0_56 = arith.constant 0 : index
    %160 = vector.load %arg1[%c255, %c0_56] : memref<576x64xf32, #tpu.memory_space<vmem>>, vector<1x32xf32>
    %cst_57 = arith.constant dense<0.000000e+00> : vector<16xf32>
    %161 = vector.multi_reduction <add>, %158, %cst_57 [1] : vector<16x32xf32> to vector<16xf32>
    %162 = vector.shape_cast %161 : vector<16xf32> to vector<16x1xf32>
    %cst_58 = arith.constant 3.200000e+01 : f32
    %163 = vector.broadcast %cst_58 : f32 to vector<16x1xf32>
    %164 = arith.divf %162, %163 : vector<16x1xf32>
    %165 = vector.broadcast %164 : vector<16x1xf32> to vector<16x32xf32>
    %166 = arith.subf %158, %165 : vector<16x32xf32>
    %167 = arith.mulf %166, %166 : vector<16x32xf32>
    %cst_59 = arith.constant dense<0.000000e+00> : vector<16xf32>
    %168 = vector.multi_reduction <add>, %167, %cst_59 [1] : vector<16x32xf32> to vector<16xf32>
    %169 = vector.shape_cast %168 : vector<16xf32> to vector<16x1xf32>
    %cst_60 = arith.constant 3.200000e+01 : f32
    %170 = vector.broadcast %cst_60 : f32 to vector<16x1xf32>
    %171 = arith.divf %169, %170 : vector<16x1xf32>
    %172 = vector.broadcast %164 : vector<16x1xf32> to vector<16x32xf32>
    %173 = arith.subf %158, %172 : vector<16x32xf32>
    %cst_61 = arith.constant 9.99999974E-6 : f32
    %174 = vector.broadcast %cst_61 : f32 to vector<16x1xf32>
    %175 = arith.addf %171, %174 : vector<16x1xf32>
    %176 = math.rsqrt %175 : vector<16x1xf32>
    %177 = vector.broadcast %176 : vector<16x1xf32> to vector<16x32xf32>
    %178 = arith.mulf %173, %177 : vector<16x32xf32>
    %179 = vector.broadcast %159 : vector<1x32xf32> to vector<16x32xf32>
    %180 = arith.mulf %178, %179 : vector<16x32xf32>
    %181 = vector.broadcast %160 : vector<1x32xf32> to vector<16x32xf32>
    %182 = arith.addf %180, %181 : vector<16x32xf32>
    %c152 = arith.constant 152 : index
    %c0_62 = arith.constant 0 : index
    %183 = vector.load %arg1[%c152, %c0_62] : memref<576x64xf32, #tpu.memory_space<vmem>>, vector<32x64xf32>
    %cst_63 = arith.constant dense<0.000000e+00> : vector<16x64xf32>
    %184 = tpu.matmul %182, %183, %cst_63 {dimension_numbers = #tpu.dot_dimension_numbers<[1], [0], [0], [1], [0, 0, 1, 1], [], []>} : vector<16x32xf32>, vector<32x64xf32>, vector<16x64xf32> -> vector<16x64xf32>
    %c252 = arith.constant 252 : index
    %c0_64 = arith.constant 0 : index
    %185 = vector.load %arg1[%c252, %c0_64] : memref<576x64xf32, #tpu.memory_space<vmem>>, vector<1x64xf32>
    %186 = vector.broadcast %185 : vector<1x64xf32> to vector<16x64xf32>
    %187 = arith.addf %184, %186 : vector<16x64xf32>
    %cst_65 = arith.constant 0.000000e+00 : f32
    %188 = vector.broadcast %cst_65 : f32 to vector<16x64xf32>
    %189 = arith.maximumf %187, %188 : vector<16x64xf32>
    %c184 = arith.constant 184 : index
    %c0_66 = arith.constant 0 : index
    %190 = vector.load %arg1[%c184, %c0_66] : memref<576x64xf32, #tpu.memory_space<vmem>>, vector<64x32xf32>
    %cst_67 = arith.constant dense<0.000000e+00> : vector<16x32xf32>
    %191 = tpu.matmul %189, %190, %cst_67 {dimension_numbers = #tpu.dot_dimension_numbers<[1], [0], [0], [1], [0, 0, 1, 1], [], []>} : vector<16x64xf32>, vector<64x32xf32>, vector<16x32xf32> -> vector<16x32xf32>
    %c253 = arith.constant 253 : index
    %c0_68 = arith.constant 0 : index
    %192 = vector.load %arg1[%c253, %c0_68] : memref<576x64xf32, #tpu.memory_space<vmem>>, vector<1x32xf32>
    %193 = vector.broadcast %192 : vector<1x32xf32> to vector<16x32xf32>
    %194 = arith.addf %191, %193 : vector<16x32xf32>
    %195 = arith.addf %182, %194 : vector<16x32xf32>
    %c256 = arith.constant 256 : index
    %c0_69 = arith.constant 0 : index
    %196 = vector.load %arg1[%c256, %c0_69] : memref<576x64xf32, #tpu.memory_space<vmem>>, vector<1x32xf32>
    %c257 = arith.constant 257 : index
    %c0_70 = arith.constant 0 : index
    %197 = vector.load %arg1[%c257, %c0_70] : memref<576x64xf32, #tpu.memory_space<vmem>>, vector<1x32xf32>
    %cst_71 = arith.constant dense<0.000000e+00> : vector<16xf32>
    %198 = vector.multi_reduction <add>, %195, %cst_71 [1] : vector<16x32xf32> to vector<16xf32>
    %199 = vector.shape_cast %198 : vector<16xf32> to vector<16x1xf32>
    %cst_72 = arith.constant 3.200000e+01 : f32
    %200 = vector.broadcast %cst_72 : f32 to vector<16x1xf32>
    %201 = arith.divf %199, %200 : vector<16x1xf32>
    %202 = vector.broadcast %201 : vector<16x1xf32> to vector<16x32xf32>
    %203 = arith.subf %195, %202 : vector<16x32xf32>
    %204 = arith.mulf %203, %203 : vector<16x32xf32>
    %cst_73 = arith.constant dense<0.000000e+00> : vector<16xf32>
    %205 = vector.multi_reduction <add>, %204, %cst_73 [1] : vector<16x32xf32> to vector<16xf32>
    %206 = vector.shape_cast %205 : vector<16xf32> to vector<16x1xf32>
    %cst_74 = arith.constant 3.200000e+01 : f32
    %207 = vector.broadcast %cst_74 : f32 to vector<16x1xf32>
    %208 = arith.divf %206, %207 : vector<16x1xf32>
    %209 = vector.broadcast %201 : vector<16x1xf32> to vector<16x32xf32>
    %210 = arith.subf %195, %209 : vector<16x32xf32>
    %cst_75 = arith.constant 9.99999974E-6 : f32
    %211 = vector.broadcast %cst_75 : f32 to vector<16x1xf32>
    %212 = arith.addf %208, %211 : vector<16x1xf32>
    %213 = math.rsqrt %212 : vector<16x1xf32>
    %214 = vector.broadcast %213 : vector<16x1xf32> to vector<16x32xf32>
    %215 = arith.mulf %210, %214 : vector<16x32xf32>
    %216 = vector.broadcast %196 : vector<1x32xf32> to vector<16x32xf32>
    %217 = arith.mulf %215, %216 : vector<16x32xf32>
    %218 = vector.broadcast %197 : vector<1x32xf32> to vector<16x32xf32>
    %219 = arith.addf %217, %218 : vector<16x32xf32>
    %c264 = arith.constant 264 : index
    %c0_76 = arith.constant 0 : index
    %220 = vector.load %arg1[%c264, %c0_76] : memref<576x64xf32, #tpu.memory_space<vmem>>, vector<32x32xf32>
    %cst_77 = arith.constant dense<0.000000e+00> : vector<16x32xf32>
    %221 = tpu.matmul %219, %220, %cst_77 {dimension_numbers = #tpu.dot_dimension_numbers<[1], [0], [0], [1], [0, 0, 1, 1], [], []>} : vector<16x32xf32>, vector<32x32xf32>, vector<16x32xf32> -> vector<16x32xf32>
    %c488 = arith.constant 488 : index
    %c0_78 = arith.constant 0 : index
    %222 = vector.load %arg1[%c488, %c0_78] : memref<576x64xf32, #tpu.memory_space<vmem>>, vector<1x32xf32>
    %223 = vector.broadcast %222 : vector<1x32xf32> to vector<16x32xf32>
    %224 = arith.addf %221, %223 : vector<16x32xf32>
    %c296 = arith.constant 296 : index
    %c0_79 = arith.constant 0 : index
    %225 = vector.load %arg1[%c296, %c0_79] : memref<576x64xf32, #tpu.memory_space<vmem>>, vector<32x32xf32>
    %cst_80 = arith.constant dense<0.000000e+00> : vector<16x32xf32>
    %226 = tpu.matmul %219, %225, %cst_80 {dimension_numbers = #tpu.dot_dimension_numbers<[1], [0], [0], [1], [0, 0, 1, 1], [], []>} : vector<16x32xf32>, vector<32x32xf32>, vector<16x32xf32> -> vector<16x32xf32>
    %c489 = arith.constant 489 : index
    %c0_81 = arith.constant 0 : index
    %227 = vector.load %arg1[%c489, %c0_81] : memref<576x64xf32, #tpu.memory_space<vmem>>, vector<1x32xf32>
    %228 = vector.broadcast %227 : vector<1x32xf32> to vector<16x32xf32>
    %229 = arith.addf %226, %228 : vector<16x32xf32>
    %c328 = arith.constant 328 : index
    %c0_82 = arith.constant 0 : index
    %230 = vector.load %arg1[%c328, %c0_82] : memref<576x64xf32, #tpu.memory_space<vmem>>, vector<32x32xf32>
    %cst_83 = arith.constant dense<0.000000e+00> : vector<16x32xf32>
    %231 = tpu.matmul %219, %230, %cst_83 {dimension_numbers = #tpu.dot_dimension_numbers<[1], [0], [0], [1], [0, 0, 1, 1], [], []>} : vector<16x32xf32>, vector<32x32xf32>, vector<16x32xf32> -> vector<16x32xf32>
    %c490 = arith.constant 490 : index
    %c0_84 = arith.constant 0 : index
    %232 = vector.load %arg1[%c490, %c0_84] : memref<576x64xf32, #tpu.memory_space<vmem>>, vector<1x32xf32>
    %233 = vector.broadcast %232 : vector<1x32xf32> to vector<16x32xf32>
    %234 = arith.addf %231, %233 : vector<16x32xf32>
    %cst_85 = arith.constant 0.000000e+00 : f32
    %235 = vector.broadcast %cst_85 : f32 to vector<16x32xf32>
    %236 = vector.broadcast %8 : vector<1x32xf32> to vector<16x32xf32>
    %237 = arith.mulf %224, %236 : vector<16x32xf32>
    %cst_86 = arith.constant dense<0.000000e+00> : vector<16x16xf32>
    %238 = tpu.matmul %237, %229, %cst_86 {dimension_numbers = #tpu.dot_dimension_numbers<[1], [1], [0], [0], [0, 0, 1, 0], [], []>} : vector<16x32xf32>, vector<16x32xf32>, vector<16x16xf32> -> vector<16x16xf32>
    %239 = arith.addf %238, %63 : vector<16x16xf32>
    %cst_87 = arith.constant dense<0xFF800000> : vector<16xf32>
    %240 = vector.multi_reduction <maximumf>, %239, %cst_87 [1] : vector<16x16xf32> to vector<16xf32>
    %241 = vector.shape_cast %240 : vector<16xf32> to vector<16x1xf32>
    %242 = vector.broadcast %241 : vector<16x1xf32> to vector<16x16xf32>
    %243 = arith.subf %239, %242 : vector<16x16xf32>
    %244 = math.exp %243 : vector<16x16xf32>
    %cst_88 = arith.constant dense<0.000000e+00> : vector<16xf32>
    %245 = vector.multi_reduction <add>, %244, %cst_88 [1] : vector<16x16xf32> to vector<16xf32>
    %246 = vector.shape_cast %245 : vector<16xf32> to vector<16x1xf32>
    %247 = vector.broadcast %246 : vector<16x1xf32> to vector<16x16xf32>
    %248 = arith.divf %244, %247 : vector<16x16xf32>
    %249 = vector.broadcast %8 : vector<1x32xf32> to vector<16x32xf32>
    %250 = arith.mulf %234, %249 : vector<16x32xf32>
    %cst_89 = arith.constant dense<0.000000e+00> : vector<16x32xf32>
    %251 = tpu.matmul %248, %250, %cst_89 {dimension_numbers = #tpu.dot_dimension_numbers<[1], [0], [0], [1], [0, 0, 1, 1], [], []>} : vector<16x16xf32>, vector<16x32xf32>, vector<16x32xf32> -> vector<16x32xf32>
    %252 = arith.addf %235, %251 : vector<16x32xf32>
    %253 = vector.broadcast %16 : vector<1x32xf32> to vector<16x32xf32>
    %254 = arith.mulf %224, %253 : vector<16x32xf32>
    %cst_90 = arith.constant dense<0.000000e+00> : vector<16x16xf32>
    %255 = tpu.matmul %254, %229, %cst_90 {dimension_numbers = #tpu.dot_dimension_numbers<[1], [1], [0], [0], [0, 0, 1, 0], [], []>} : vector<16x32xf32>, vector<16x32xf32>, vector<16x16xf32> -> vector<16x16xf32>
    %256 = arith.addf %255, %63 : vector<16x16xf32>
    %cst_91 = arith.constant dense<0xFF800000> : vector<16xf32>
    %257 = vector.multi_reduction <maximumf>, %256, %cst_91 [1] : vector<16x16xf32> to vector<16xf32>
    %258 = vector.shape_cast %257 : vector<16xf32> to vector<16x1xf32>
    %259 = vector.broadcast %258 : vector<16x1xf32> to vector<16x16xf32>
    %260 = arith.subf %256, %259 : vector<16x16xf32>
    %261 = math.exp %260 : vector<16x16xf32>
    %cst_92 = arith.constant dense<0.000000e+00> : vector<16xf32>
    %262 = vector.multi_reduction <add>, %261, %cst_92 [1] : vector<16x16xf32> to vector<16xf32>
    %263 = vector.shape_cast %262 : vector<16xf32> to vector<16x1xf32>
    %264 = vector.broadcast %263 : vector<16x1xf32> to vector<16x16xf32>
    %265 = arith.divf %261, %264 : vector<16x16xf32>
    %266 = vector.broadcast %16 : vector<1x32xf32> to vector<16x32xf32>
    %267 = arith.mulf %234, %266 : vector<16x32xf32>
    %cst_93 = arith.constant dense<0.000000e+00> : vector<16x32xf32>
    %268 = tpu.matmul %265, %267, %cst_93 {dimension_numbers = #tpu.dot_dimension_numbers<[1], [0], [0], [1], [0, 0, 1, 1], [], []>} : vector<16x16xf32>, vector<16x32xf32>, vector<16x32xf32> -> vector<16x32xf32>
    %269 = arith.addf %252, %268 : vector<16x32xf32>
    %270 = vector.broadcast %24 : vector<1x32xf32> to vector<16x32xf32>
    %271 = arith.mulf %224, %270 : vector<16x32xf32>
    %cst_94 = arith.constant dense<0.000000e+00> : vector<16x16xf32>
    %272 = tpu.matmul %271, %229, %cst_94 {dimension_numbers = #tpu.dot_dimension_numbers<[1], [1], [0], [0], [0, 0, 1, 0], [], []>} : vector<16x32xf32>, vector<16x32xf32>, vector<16x16xf32> -> vector<16x16xf32>
    %273 = arith.addf %272, %63 : vector<16x16xf32>
    %cst_95 = arith.constant dense<0xFF800000> : vector<16xf32>
    %274 = vector.multi_reduction <maximumf>, %273, %cst_95 [1] : vector<16x16xf32> to vector<16xf32>
    %275 = vector.shape_cast %274 : vector<16xf32> to vector<16x1xf32>
    %276 = vector.broadcast %275 : vector<16x1xf32> to vector<16x16xf32>
    %277 = arith.subf %273, %276 : vector<16x16xf32>
    %278 = math.exp %277 : vector<16x16xf32>
    %cst_96 = arith.constant dense<0.000000e+00> : vector<16xf32>
    %279 = vector.multi_reduction <add>, %278, %cst_96 [1] : vector<16x16xf32> to vector<16xf32>
    %280 = vector.shape_cast %279 : vector<16xf32> to vector<16x1xf32>
    %281 = vector.broadcast %280 : vector<16x1xf32> to vector<16x16xf32>
    %282 = arith.divf %278, %281 : vector<16x16xf32>
    %283 = vector.broadcast %24 : vector<1x32xf32> to vector<16x32xf32>
    %284 = arith.mulf %234, %283 : vector<16x32xf32>
    %cst_97 = arith.constant dense<0.000000e+00> : vector<16x32xf32>
    %285 = tpu.matmul %282, %284, %cst_97 {dimension_numbers = #tpu.dot_dimension_numbers<[1], [0], [0], [1], [0, 0, 1, 1], [], []>} : vector<16x16xf32>, vector<16x32xf32>, vector<16x32xf32> -> vector<16x32xf32>
    %286 = arith.addf %269, %285 : vector<16x32xf32>
    %287 = vector.broadcast %32 : vector<1x32xf32> to vector<16x32xf32>
    %288 = arith.mulf %224, %287 : vector<16x32xf32>
    %cst_98 = arith.constant dense<0.000000e+00> : vector<16x16xf32>
    %289 = tpu.matmul %288, %229, %cst_98 {dimension_numbers = #tpu.dot_dimension_numbers<[1], [1], [0], [0], [0, 0, 1, 0], [], []>} : vector<16x32xf32>, vector<16x32xf32>, vector<16x16xf32> -> vector<16x16xf32>
    %290 = arith.addf %289, %63 : vector<16x16xf32>
    %cst_99 = arith.constant dense<0xFF800000> : vector<16xf32>
    %291 = vector.multi_reduction <maximumf>, %290, %cst_99 [1] : vector<16x16xf32> to vector<16xf32>
    %292 = vector.shape_cast %291 : vector<16xf32> to vector<16x1xf32>
    %293 = vector.broadcast %292 : vector<16x1xf32> to vector<16x16xf32>
    %294 = arith.subf %290, %293 : vector<16x16xf32>
    %295 = math.exp %294 : vector<16x16xf32>
    %cst_100 = arith.constant dense<0.000000e+00> : vector<16xf32>
    %296 = vector.multi_reduction <add>, %295, %cst_100 [1] : vector<16x16xf32> to vector<16xf32>
    %297 = vector.shape_cast %296 : vector<16xf32> to vector<16x1xf32>
    %298 = vector.broadcast %297 : vector<16x1xf32> to vector<16x16xf32>
    %299 = arith.divf %295, %298 : vector<16x16xf32>
    %300 = vector.broadcast %32 : vector<1x32xf32> to vector<16x32xf32>
    %301 = arith.mulf %234, %300 : vector<16x32xf32>
    %cst_101 = arith.constant dense<0.000000e+00> : vector<16x32xf32>
    %302 = tpu.matmul %299, %301, %cst_101 {dimension_numbers = #tpu.dot_dimension_numbers<[1], [0], [0], [1], [0, 0, 1, 1], [], []>} : vector<16x16xf32>, vector<16x32xf32>, vector<16x32xf32> -> vector<16x32xf32>
    %303 = arith.addf %286, %302 : vector<16x32xf32>
    %c360 = arith.constant 360 : index
    %c0_102 = arith.constant 0 : index
    %304 = vector.load %arg1[%c360, %c0_102] : memref<576x64xf32, #tpu.memory_space<vmem>>, vector<32x32xf32>
    %cst_103 = arith.constant dense<0.000000e+00> : vector<16x32xf32>
    %305 = tpu.matmul %303, %304, %cst_103 {dimension_numbers = #tpu.dot_dimension_numbers<[1], [0], [0], [1], [0, 0, 1, 1], [], []>} : vector<16x32xf32>, vector<32x32xf32>, vector<16x32xf32> -> vector<16x32xf32>
    %c491 = arith.constant 491 : index
    %c0_104 = arith.constant 0 : index
    %306 = vector.load %arg1[%c491, %c0_104] : memref<576x64xf32, #tpu.memory_space<vmem>>, vector<1x32xf32>
    %307 = vector.broadcast %306 : vector<1x32xf32> to vector<16x32xf32>
    %308 = arith.addf %305, %307 : vector<16x32xf32>
    %309 = arith.addf %219, %308 : vector<16x32xf32>
    %c494 = arith.constant 494 : index
    %c0_105 = arith.constant 0 : index
    %310 = vector.load %arg1[%c494, %c0_105] : memref<576x64xf32, #tpu.memory_space<vmem>>, vector<1x32xf32>
    %c495 = arith.constant 495 : index
    %c0_106 = arith.constant 0 : index
    %311 = vector.load %arg1[%c495, %c0_106] : memref<576x64xf32, #tpu.memory_space<vmem>>, vector<1x32xf32>
    %cst_107 = arith.constant dense<0.000000e+00> : vector<16xf32>
    %312 = vector.multi_reduction <add>, %309, %cst_107 [1] : vector<16x32xf32> to vector<16xf32>
    %313 = vector.shape_cast %312 : vector<16xf32> to vector<16x1xf32>
    %cst_108 = arith.constant 3.200000e+01 : f32
    %314 = vector.broadcast %cst_108 : f32 to vector<16x1xf32>
    %315 = arith.divf %313, %314 : vector<16x1xf32>
    %316 = vector.broadcast %315 : vector<16x1xf32> to vector<16x32xf32>
    %317 = arith.subf %309, %316 : vector<16x32xf32>
    %318 = arith.mulf %317, %317 : vector<16x32xf32>
    %cst_109 = arith.constant dense<0.000000e+00> : vector<16xf32>
    %319 = vector.multi_reduction <add>, %318, %cst_109 [1] : vector<16x32xf32> to vector<16xf32>
    %320 = vector.shape_cast %319 : vector<16xf32> to vector<16x1xf32>
    %cst_110 = arith.constant 3.200000e+01 : f32
    %321 = vector.broadcast %cst_110 : f32 to vector<16x1xf32>
    %322 = arith.divf %320, %321 : vector<16x1xf32>
    %323 = vector.broadcast %315 : vector<16x1xf32> to vector<16x32xf32>
    %324 = arith.subf %309, %323 : vector<16x32xf32>
    %cst_111 = arith.constant 9.99999974E-6 : f32
    %325 = vector.broadcast %cst_111 : f32 to vector<16x1xf32>
    %326 = arith.addf %322, %325 : vector<16x1xf32>
    %327 = math.rsqrt %326 : vector<16x1xf32>
    %328 = vector.broadcast %327 : vector<16x1xf32> to vector<16x32xf32>
    %329 = arith.mulf %324, %328 : vector<16x32xf32>
    %330 = vector.broadcast %310 : vector<1x32xf32> to vector<16x32xf32>
    %331 = arith.mulf %329, %330 : vector<16x32xf32>
    %332 = vector.broadcast %311 : vector<1x32xf32> to vector<16x32xf32>
    %333 = arith.addf %331, %332 : vector<16x32xf32>
    %c392 = arith.constant 392 : index
    %c0_112 = arith.constant 0 : index
    %334 = vector.load %arg1[%c392, %c0_112] : memref<576x64xf32, #tpu.memory_space<vmem>>, vector<32x64xf32>
    %cst_113 = arith.constant dense<0.000000e+00> : vector<16x64xf32>
    %335 = tpu.matmul %333, %334, %cst_113 {dimension_numbers = #tpu.dot_dimension_numbers<[1], [0], [0], [1], [0, 0, 1, 1], [], []>} : vector<16x32xf32>, vector<32x64xf32>, vector<16x64xf32> -> vector<16x64xf32>
    %c492 = arith.constant 492 : index
    %c0_114 = arith.constant 0 : index
    %336 = vector.load %arg1[%c492, %c0_114] : memref<576x64xf32, #tpu.memory_space<vmem>>, vector<1x64xf32>
    %337 = vector.broadcast %336 : vector<1x64xf32> to vector<16x64xf32>
    %338 = arith.addf %335, %337 : vector<16x64xf32>
    %cst_115 = arith.constant 0.000000e+00 : f32
    %339 = vector.broadcast %cst_115 : f32 to vector<16x64xf32>
    %340 = arith.maximumf %338, %339 : vector<16x64xf32>
    %c424 = arith.constant 424 : index
    %c0_116 = arith.constant 0 : index
    %341 = vector.load %arg1[%c424, %c0_116] : memref<576x64xf32, #tpu.memory_space<vmem>>, vector<64x32xf32>
    %cst_117 = arith.constant dense<0.000000e+00> : vector<16x32xf32>
    %342 = tpu.matmul %340, %341, %cst_117 {dimension_numbers = #tpu.dot_dimension_numbers<[1], [0], [0], [1], [0, 0, 1, 1], [], []>} : vector<16x64xf32>, vector<64x32xf32>, vector<16x32xf32> -> vector<16x32xf32>
    %c493 = arith.constant 493 : index
    %c0_118 = arith.constant 0 : index
    %343 = vector.load %arg1[%c493, %c0_118] : memref<576x64xf32, #tpu.memory_space<vmem>>, vector<1x32xf32>
    %344 = vector.broadcast %343 : vector<1x32xf32> to vector<16x32xf32>
    %345 = arith.addf %342, %344 : vector<16x32xf32>
    %346 = arith.addf %333, %345 : vector<16x32xf32>
    %c496 = arith.constant 496 : index
    %c0_119 = arith.constant 0 : index
    %347 = vector.load %arg1[%c496, %c0_119] : memref<576x64xf32, #tpu.memory_space<vmem>>, vector<1x32xf32>
    %c497 = arith.constant 497 : index
    %c0_120 = arith.constant 0 : index
    %348 = vector.load %arg1[%c497, %c0_120] : memref<576x64xf32, #tpu.memory_space<vmem>>, vector<1x32xf32>
    %cst_121 = arith.constant dense<0.000000e+00> : vector<16xf32>
    %349 = vector.multi_reduction <add>, %346, %cst_121 [1] : vector<16x32xf32> to vector<16xf32>
    %350 = vector.shape_cast %349 : vector<16xf32> to vector<16x1xf32>
    %cst_122 = arith.constant 3.200000e+01 : f32
    %351 = vector.broadcast %cst_122 : f32 to vector<16x1xf32>
    %352 = arith.divf %350, %351 : vector<16x1xf32>
    %353 = vector.broadcast %352 : vector<16x1xf32> to vector<16x32xf32>
    %354 = arith.subf %346, %353 : vector<16x32xf32>
    %355 = arith.mulf %354, %354 : vector<16x32xf32>
    %cst_123 = arith.constant dense<0.000000e+00> : vector<16xf32>
    %356 = vector.multi_reduction <add>, %355, %cst_123 [1] : vector<16x32xf32> to vector<16xf32>
    %357 = vector.shape_cast %356 : vector<16xf32> to vector<16x1xf32>
    %cst_124 = arith.constant 3.200000e+01 : f32
    %358 = vector.broadcast %cst_124 : f32 to vector<16x1xf32>
    %359 = arith.divf %357, %358 : vector<16x1xf32>
    %360 = vector.broadcast %352 : vector<16x1xf32> to vector<16x32xf32>
    %361 = arith.subf %346, %360 : vector<16x32xf32>
    %cst_125 = arith.constant 9.99999974E-6 : f32
    %362 = vector.broadcast %cst_125 : f32 to vector<16x1xf32>
    %363 = arith.addf %359, %362 : vector<16x1xf32>
    %364 = math.rsqrt %363 : vector<16x1xf32>
    %365 = vector.broadcast %364 : vector<16x1xf32> to vector<16x32xf32>
    %366 = arith.mulf %361, %365 : vector<16x32xf32>
    %367 = vector.broadcast %347 : vector<1x32xf32> to vector<16x32xf32>
    %368 = arith.mulf %366, %367 : vector<16x32xf32>
    %369 = vector.broadcast %348 : vector<1x32xf32> to vector<16x32xf32>
    %370 = arith.addf %368, %369 : vector<16x32xf32>
    %371 = tpu.iota {dimensions = array<i32: 0>} : vector<2x16xi32>
    %372 = tpu.iota {dimensions = array<i32: 1>} : vector<2x16xi32>
    %c8_i32_126 = arith.constant 8 : i32
    %373 = vector.broadcast %c8_i32_126 : i32 to vector<2x16xi32>
    %374 = arith.muli %371, %373 : vector<2x16xi32>
    %c7_i32 = arith.constant 7 : i32
    %375 = vector.broadcast %c7_i32 : i32 to vector<2x16xi32>
    %376 = arith.addi %374, %375 : vector<2x16xi32>
    %377 = arith.cmpi eq, %372, %376 : vector<2x16xi32>
    %cst_127 = arith.constant 1.000000e+00 : f32
    %cst_128 = arith.constant 0.000000e+00 : f32
    %378 = vector.broadcast %cst_127 : f32 to vector<2x16xf32>
    %379 = vector.broadcast %cst_128 : f32 to vector<2x16xf32>
    %380 = arith.select %377, %378, %379 : vector<2x16xi1>, vector<2x16xf32>
    %cst_129 = arith.constant dense<0.000000e+00> : vector<2x32xf32>
    %381 = tpu.matmul %380, %370, %cst_129 {dimension_numbers = #tpu.dot_dimension_numbers<[1], [0], [0], [1], [0, 0, 1, 1], [], []>} : vector<2x16xf32>, vector<16x32xf32>, vector<2x32xf32> -> vector<2x32xf32>
    %c504 = arith.constant 504 : index
    %c0_130 = arith.constant 0 : index
    %382 = vector.load %arg1[%c504, %c0_130] : memref<576x64xf32, #tpu.memory_space<vmem>>, vector<32x32xf32>
    %cst_131 = arith.constant dense<0.000000e+00> : vector<2x32xf32>
    %383 = tpu.matmul %381, %382, %cst_131 {dimension_numbers = #tpu.dot_dimension_numbers<[1], [0], [0], [1], [0, 0, 1, 1], [], []>} : vector<2x32xf32>, vector<32x32xf32>, vector<2x32xf32> -> vector<2x32xf32>
    %c568 = arith.constant 568 : index
    %c0_132 = arith.constant 0 : index
    %384 = vector.load %arg1[%c568, %c0_132] : memref<576x64xf32, #tpu.memory_space<vmem>>, vector<1x32xf32>
    %385 = vector.broadcast %384 : vector<1x32xf32> to vector<2x32xf32>
    %386 = arith.addf %383, %385 : vector<2x32xf32>
    %cst_133 = arith.constant 2.000000e+01 : f32
    %387 = vector.broadcast %cst_133 : f32 to vector<2x32xf32>
    %388 = arith.minimumf %386, %387 : vector<2x32xf32>
    %389 = math.exp %388 : vector<2x32xf32>
    %cst_134 = arith.constant 1.000000e+00 : f32
    %390 = vector.broadcast %cst_134 : f32 to vector<2x32xf32>
    %391 = arith.addf %390, %389 : vector<2x32xf32>
    %cst_135 = arith.constant 1.000000e+00 : f32
    %392 = vector.broadcast %cst_135 : f32 to vector<2x32xf32>
    %393 = arith.cmpf oeq, %391, %392 : vector<2x32xf32>
    %cst_136 = arith.constant 1.000000e+00 : f32
    %394 = vector.broadcast %cst_136 : f32 to vector<2x32xf32>
    %395 = arith.subf %391, %394 : vector<2x32xf32>
    %cst_137 = arith.constant 1.000000e+00 : f32
    %396 = vector.broadcast %cst_137 : f32 to vector<2x32xf32>
    %397 = arith.select %393, %396, %395 : vector<2x32xi1>, vector<2x32xf32>
    %cst_138 = arith.constant 1.000000e+00 : f32
    %398 = vector.broadcast %cst_138 : f32 to vector<2x32xf32>
    %399 = arith.cmpf oeq, %391, %398 : vector<2x32xf32>
    %400 = math.log %391 : vector<2x32xf32>
    %401 = arith.divf %389, %397 : vector<2x32xf32>
    %402 = arith.mulf %400, %401 : vector<2x32xf32>
    %403 = arith.select %399, %389, %402 : vector<2x32xi1>, vector<2x32xf32>
    %cst_139 = arith.constant 2.000000e+01 : f32
    %404 = vector.broadcast %cst_139 : f32 to vector<2x32xf32>
    %405 = arith.cmpf ogt, %386, %404 : vector<2x32xf32>
    %406 = arith.select %405, %386, %403 : vector<2x32xi1>, vector<2x32xf32>
    %c536 = arith.constant 536 : index
    %c0_140 = arith.constant 0 : index
    %407 = vector.load %arg1[%c536, %c0_140] : memref<576x64xf32, #tpu.memory_space<vmem>>, vector<32x1xf32>
    %cst_141 = arith.constant dense<0.000000e+00> : vector<2x1xf32>
    %408 = tpu.matmul %406, %407, %cst_141 {dimension_numbers = #tpu.dot_dimension_numbers<[1], [0], [0], [1], [0, 0, 1, 1], [], []>} : vector<2x32xf32>, vector<32x1xf32>, vector<2x1xf32> -> vector<2x1xf32>
    %c569 = arith.constant 569 : index
    %c0_142 = arith.constant 0 : index
    %409 = vector.load %arg1[%c569, %c0_142] : memref<576x64xf32, #tpu.memory_space<vmem>>, vector<1x1xf32>
    %410 = vector.broadcast %409 : vector<1x1xf32> to vector<2x1xf32>
    %411 = arith.addf %408, %410 : vector<2x1xf32>
    %c0_143 = arith.constant 0 : index
    %c0_144 = arith.constant 0 : index
    %412 = vector.load %arg2[%c0_143, %c0_144] : memref<2x1xf32, #tpu.memory_space<vmem>>, vector<2x1xf32>
    tpu.vector_store %arg2[%c0_143, %c0_144], %411 {strides = array<i32>} : memref<2x1xf32, #tpu.memory_space<vmem>>, vector<2x1xf32>,
    return
  }
}

</mosaic_0001>

<llo_original>
// kernel: lagrangian_transformer_forward.1
$region0: #{lagrangian_transformer_forward.1}
  #allocation0 [shape = 'u32[]', space=smem, size = 0x4, offset = 0x4, fixed_abs, tag = 'smem constant byte address 0x4 - core index']
  #allocation1 [shape = 'u32[144,128]{1,0:T(1,128)}', space=vmem, size = 0x12000, scoped, tag = 'internal scratch']
  %s0 = inlined_call_operand.vmem [shape: f32[16,8], index: 0, kind: input, shape index: {}]
  %s1 = inlined_call_operand.vmem [shape: f32[576,64], index: 1, kind: input, shape index: {}]
  %s2 = inlined_call_operand.vmem [shape: f32[2,1], index: 2, kind: output, shape index: {}]
  %s3 = sld [smem:[#allocation0]]
  $region18: #{lagrangian_transformer_forward.1} parent=0
    _
  %s5 = ssub.s32 1, %s3
  %s6 = scalar_select 0, %s5, %s3
  // Predicated region
  $region2: #{lagrangian_transformer_forward.1} parent=0 // pred_check
    _
  $region3: #{lagrangian_transformer_forward.1} parent=0 // pred_check_branch
    %8 = sbr.rel (0) target = $region5
  $region4: #{lagrangian_transformer_forward.1} parent=0 // pred_region
    _
  $region5: #{lagrangian_transformer_forward.1} parent=0 // pred_fallthru
    _
  // Predicated region
  $region6: #{lagrangian_transformer_forward.1} parent=0 // pred_check
    _
  $region7: #{lagrangian_transformer_forward.1} parent=0 // pred_check_branch
    %10 = sbr.rel (0) target = $region9
  $region8: #{lagrangian_transformer_forward.1} parent=0 // pred_region
    _
  $region9: #{lagrangian_transformer_forward.1} parent=0 // pred_fallthru
    _
  %v11 = vlaneseq
  %v12 = vand.u32 %v11, 127
  %vm13 = vcmp.ge.s32.totalorder %v12, 0
  %vm14 = vcmp.lt.s32.totalorder %v12, 8
  %vm15 = vmand %vm13, %vm14
  %v16 = vsel %vm15, 1.0, 0.0
  %vm17 = vcmp.ge.s32.totalorder %v12, 8
  %vm18 = vcmp.lt.s32.totalorder %v12, 16
  %vm19 = vmand %vm17, %vm18
  %v20 = vsel %vm19, 1.0, 0.0
  %vm21 = vcmp.ge.s32.totalorder %v12, 16
  %vm22 = vcmp.lt.s32.totalorder %v12, 24
  %vm23 = vmand %vm21, %vm22
  %v24 = vsel %vm23, 1.0, 0.0
  %vm25 = vcmp.ge.s32.totalorder %v12, 24
  %vm26 = vcmp.lt.s32.totalorder %v12, 32
  %vm27 = vmand %vm25, %vm26
  %v28 = vsel %vm27, 1.0, 0.0
  %v29 = vlaneseq
  %v30 = vshrl.u32 %v29, 7
  %v31 = vadd.s32 %v30, 8
  %vm32 = vcmp.lt.s32.totalorder %v30, 0
  %vm33 = vcmp.lt.s32.totalorder %v31, 0
  %vm34 = vcmp.ge.s32.totalorder %v30, 0
  %vm35 = vcmp.ge.s32.totalorder %v31, 0
  %vm36 = vcmp.lt.s32.totalorder %v30, 8
  %vm37 = vcmp.lt.s32.totalorder %v31, 8
  %vm38 = vmand %vm34, %vm36
  %vm39 = vmand %vm35, %vm37
  %vm40 = vmand %vm38, %vm13
  %vm41 = vmand %vm39, %vm13
  %vm42 = vmand %vm40, %vm14
  %vm43 = vmand %vm41, %vm14
  %vm44 = vmor %vm32, %vm42
  %vm45 = vmor %vm33, %vm43
  %vm46 = vcmp.ge.s32.totalorder %v30, 8
  %vm47 = vcmp.ge.s32.totalorder %v31, 8
  %vm48 = vcmp.lt.s32.totalorder %v30, 16
  %vm49 = vcmp.lt.s32.totalorder %v31, 16
  %vm50 = vmand %vm46, %vm48
  %vm51 = vmand %vm47, %vm49
  %vm52 = vmand %vm50, %vm17
  %vm53 = vmand %vm51, %vm17
  %vm54 = vmand %vm52, %vm18
  %vm55 = vmand %vm53, %vm18
  %vm56 = vmor %vm44, %vm54
  %vm57 = vmor %vm45, %vm55
  %v58 = vsel %vm56, 0.0, -1e+30
  %v59 = vsel %vm57, 0.0, -1e+30
  %v60 = vld [vmem:[%s0] sm:$0xff]
  %v61 = vld [vmem:[%s0 + $0x8] sm:$0xff]
  %v62 = vld [vmem:[%s1] sm:$0xff]
  %v63 = vld [vmem:[%s1 + $0x8] sm:$0xff]
  %v64 = vld [vmem:[%s1 + $0x10] sm:$0xff]
  %vm65 = vcmask 64512
  %v67 = vsel %vm65, %v60, 0
  %v70 = vsel %vm65, %v61, 0
  %72 = vmatprep.subr.mxu0 0.0
  %73 = vmatpush1.msra.mxu0 %v62
  %74 = vmatprep.subr.mxu0 0.0
  %75 = vmatpush1.msra.mxu0 0.0
  %76 = vmatprep.subr.mxu0 0.0
  %77 = vmatpush1.msra.mxu0 0.0
  %78 = vmatprep.subr.mxu0 0.0
  %79 = vmatpush1.msra.mxu0 0.0
  %80 = vmatprep.subr.mxu0 0.0
  %81 = vmatpush1.msra.mxu0 0.0
  %82 = vmatprep.subr.mxu0 0.0
  %83 = vmatpush1.msra.mxu0 0.0
  %84 = vmatprep.subr.mxu0 0.0
  %85 = vmatpush1.msra.mxu0 0.0
  %86 = vmatprep.subr.mxu0 0.0
  %87 = vmatpush1.msra.mxu0 0.0
  %88 = vmatprep.subr.mxu0 0.0
  %89 = vmatpush1.msra.mxu0 0.0
  %90 = vmatprep.subr.mxu0 0.0
  %91 = vmatpush1.msra.mxu0 0.0
  %92 = vmatprep.subr.mxu0 0.0
  %93 = vmatpush1.msra.mxu0 0.0
  %94 = vmatprep.subr.mxu0 0.0
  %95 = vmatpush1.msra.mxu0 0.0
  %96 = vmatprep.subr.mxu0 0.0
  %97 = vmatpush1.msra.mxu0 0.0
  %98 = vmatprep.subr.mxu0 0.0
  %99 = vmatpush1.msra.mxu0 0.0
  %100 = vmatprep.subr.mxu0 0.0
  %101 = vmatpush1.msra.mxu0 0.0
  %102 = vmatprep.subr.mxu0 0.0
  %103 = vmatpush1.msra.mxu0 0.0
  %104 = vmatprep.subr.mxu0 0.0
  %105 = vmatpush1.msra.mxu0 0.0
  %106 = vmatprep.subr.mxu0 0.0
  %107 = vmatpush1.msra.mxu0 0.0
  %108 = vmatprep.subr.mxu0 0.0
  %109 = vmatpush1.msra.mxu0 0.0
  %110 = vmatprep.subr.mxu0 0.0
  %111 = vmatpush1.msra.mxu0 0.0
  %112 = vmatprep.subr.mxu0 0.0
  %113 = vmatpush1.msra.mxu0 0.0
  %114 = vmatprep.subr.mxu0 0.0
  %115 = vmatpush1.msra.mxu0 0.0
  %116 = vmatprep.subr.mxu0 0.0
  %117 = vmatpush1.msra.mxu0 0.0
  %118 = vmatprep.subr.mxu0 0.0
  %119 = vmatpush1.msra.mxu0 0.0
  %120 = vmatprep.subr.mxu0 0.0
  %121 = vmatpush1.msra.mxu0 0.0
  %122 = vmatprep.subr.mxu0 0.0
  %123 = vmatpush1.msra.mxu0 0.0
  %124 = vmatprep.subr.mxu0 0.0
  %125 = vmatpush1.msra.mxu0 0.0
  %126 = vmatprep.subr.mxu0 0.0
  %127 = vmatpush1.msra.mxu0 0.0
  %128 = vmatprep.subr.mxu0 0.0
  %129 = vmatpush1.msra.mxu0 0.0
  %130 = vmatprep.subr.mxu0 0.0
  %131 = vmatpush1.msra.mxu0 0.0
  %132 = vmatprep.subr.mxu0 0.0
  %133 = vmatpush1.msra.mxu0 0.0
  %134 = vmatprep.subr.mxu0 0.0
  %135 = vmatpush1.msra.mxu0 0.0
  %136 = vmatprep.mubr.f32.mxu0 0.0
  %137 = vmatmul.mubr.f32.gmra.mrb[0].mxu0 %v67
  %v138 = vpop.f32.mrb[0].mxu0
  %v139 = vadd.f32 %v63, %v138
  %v140 = vpop.f32.mrb[0].mxu0
  %141 = vmatprep.mubr.f32.mxu0 0.0
  %142 = vmatmul.mubr.f32.gmra.mrb[0].mxu0 %v70
  %v143 = vpop.f32.mrb[0].mxu0
  %v144 = vadd.f32 %v64, %v143
  %v145 = vpop.f32.mrb[0].mxu0
  %146 = vdwg.mxu0
  %v147 = vld [vmem:[%s1 + $0x18] sm:$0xff]
  %v148 = vld [vmem:[%s1 + $0x20] sm:$0xff]
  %v149 = vld [vmem:[%s1 + $0x28] sm:$0xff]
  %v150 = vld [vmem:[%s1 + $0x30] sm:$0xff]
  %v151 = vld [vmem:[%s1 + $0xf8] sm:$0x1]
  %v152 = vlaneseq
  %v153 = vshrl.u32 %v152, 7
  %v154 = vsub.s32 0, %v153
  %v155 = vrot.slane %v151, %v154
  %vm156 = vcmask 261120
  %v158 = vsel %vm156, %v139, 0
  %v161 = vsel %vm156, %v144, 0
  %163 = vmatprep.subr.mxu0 0.0
  %164 = vmatpush1.msra.mxu0 %v147
  %165 = vmatprep.subr.mxu0 0.0
  %166 = vmatpush1.msra.mxu0 %v148
  %167 = vmatprep.subr.mxu0 0.0
  %168 = vmatpush1.msra.mxu0 %v149
  %169 = vmatprep.subr.mxu0 0.0
  %170 = vmatpush1.msra.mxu0 %v150
  %171 = vmatprep.subr.mxu0 0.0
  %172 = vmatpush1.msra.mxu0 0.0
  %173 = vmatprep.subr.mxu0 0.0
  %174 = vmatpush1.msra.mxu0 0.0
  %175 = vmatprep.subr.mxu0 0.0
  %176 = vmatpush1.msra.mxu0 0.0
  %177 = vmatprep.subr.mxu0 0.0
  %178 = vmatpush1.msra.mxu0 0.0
  %179 = vmatprep.subr.mxu0 0.0
  %180 = vmatpush1.msra.mxu0 0.0
  %181 = vmatprep.subr.mxu0 0.0
  %182 = vmatpush1.msra.mxu0 0.0
  %183 = vmatprep.subr.mxu0 0.0
  %184 = vmatpush1.msra.mxu0 0.0
  %185 = vmatprep.subr.mxu0 0.0
  %186 = vmatpush1.msra.mxu0 0.0
  %187 = vmatprep.subr.mxu0 0.0
  %188 = vmatpush1.msra.mxu0 0.0
  %189 = vmatprep.subr.mxu0 0.0
  %190 = vmatpush1.msra.mxu0 0.0
  %191 = vmatprep.subr.mxu0 0.0
  %192 = vmatpush1.msra.mxu0 0.0
  %193 = vmatprep.subr.mxu0 0.0
  %194 = vmatpush1.msra.mxu0 0.0
  %195 = vmatprep.subr.mxu0 0.0
  %196 = vmatpush1.msra.mxu0 0.0
  %197 = vmatprep.subr.mxu0 0.0
  %198 = vmatpush1.msra.mxu0 0.0
  %199 = vmatprep.subr.mxu0 0.0
  %200 = vmatpush1.msra.mxu0 0.0
  %201 = vmatprep.subr.mxu0 0.0
  %202 = vmatpush1.msra.mxu0 0.0
  %203 = vmatprep.subr.mxu0 0.0
  %204 = vmatpush1.msra.mxu0 0.0
  %205 = vmatprep.subr.mxu0 0.0
  %206 = vmatpush1.msra.mxu0 0.0
  %207 = vmatprep.subr.mxu0 0.0
  %208 = vmatpush1.msra.mxu0 0.0
  %209 = vmatprep.subr.mxu0 0.0
  %210 = vmatpush1.msra.mxu0 0.0
  %211 = vmatprep.subr.mxu0 0.0
  %212 = vmatpush1.msra.mxu0 0.0
  %213 = vmatprep.subr.mxu0 0.0
  %214 = vmatpush1.msra.mxu0 0.0
  %215 = vmatprep.subr.mxu0 0.0
  %216 = vmatpush1.msra.mxu0 0.0
  %217 = vmatprep.subr.mxu0 0.0
  %218 = vmatpush1.msra.mxu0 0.0
  %219 = vmatprep.subr.mxu0 0.0
  %220 = vmatpush1.msra.mxu0 0.0
  %221 = vmatprep.subr.mxu0 0.0
  %222 = vmatpush1.msra.mxu0 0.0
  %223 = vmatprep.subr.mxu0 0.0
  %224 = vmatpush1.msra.mxu0 0.0
  %225 = vmatprep.subr.mxu0 0.0
  %226 = vmatpush1.msra.mxu0 0.0
  %227 = vmatprep.mubr.f32.mxu0 0.0
  %228 = vmatmul.mubr.f32.gmra.mrb[0].mxu0 %v158
  %v229 = vpop.f32.mrb[0].mxu0
  %v230 = vadd.f32 %v155, %v229
  %v231 = vpop.f32.mrb[0].mxu0
  %232 = vmatprep.mubr.f32.mxu0 0.0
  %233 = vmatmul.mubr.f32.gmra.mrb[0].mxu0 %v161
  %v234 = vpop.f32.mrb[0].mxu0
  %v235 = vadd.f32 %v155, %v234
  %v236 = vpop.f32.mrb[0].mxu0
  %237 = vdwg.mxu0
  %v238 = vld [vmem:[%s1 + $0x38] sm:$0xff]
  %v239 = vld [vmem:[%s1 + $0x40] sm:$0xff]
  %v240 = vld [vmem:[%s1 + $0x48] sm:$0xff]
  %v241 = vld [vmem:[%s1 + $0x50] sm:$0xff]
  %v242 = vld [vmem:[%s1 + $0xf9] sm:$0x1]
  %v243 = vlaneseq
  %v244 = vshrl.u32 %v243, 7
  %v245 = vsub.s32 0, %v244
  %v246 = vrot.slane %v242, %v245
  %247 = vmatprep.subr.mxu0 0.0
  %248 = vmatpush1.msra.mxu0 %v238
  %249 = vmatprep.subr.mxu0 0.0
  %250 = vmatpush1.msra.mxu0 %v239
  %251 = vmatprep.subr.mxu0 0.0
  %252 = vmatpush1.msra.mxu0 %v240
  %253 = vmatprep.subr.mxu0 0.0
  %254 = vmatpush1.msra.mxu0 %v241
  %255 = vmatprep.subr.mxu0 0.0
  %256 = vmatpush1.msra.mxu0 0.0
  %257 = vmatprep.subr.mxu0 0.0
  %258 = vmatpush1.msra.mxu0 0.0
  %259 = vmatprep.subr.mxu0 0.0
  %260 = vmatpush1.msra.mxu0 0.0
  %261 = vmatprep.subr.mxu0 0.0
  %262 = vmatpush1.msra.mxu0 0.0
  %263 = vmatprep.subr.mxu0 0.0
  %264 = vmatpush1.msra.mxu0 0.0
  %265 = vmatprep.subr.mxu0 0.0
  %266 = vmatpush1.msra.mxu0 0.0
  %267 = vmatprep.subr.mxu0 0.0
  %268 = vmatpush1.msra.mxu0 0.0
  %269 = vmatprep.subr.mxu0 0.0
  %270 = vmatpush1.msra.mxu0 0.0
  %271 = vmatprep.subr.mxu0 0.0
  %272 = vmatpush1.msra.mxu0 0.0
  %273 = vmatprep.subr.mxu0 0.0
  %274 = vmatpush1.msra.mxu0 0.0
  %275 = vmatprep.subr.mxu0 0.0
  %276 = vmatpush1.msra.mxu0 0.0
  %277 = vmatprep.subr.mxu0 0.0
  %278 = vmatpush1.msra.mxu0 0.0
  %279 = vmatprep.subr.mxu0 0.0
  %280 = vmatpush1.msra.mxu0 0.0
  %281 = vmatprep.subr.mxu0 0.0
  %282 = vmatpush1.msra.mxu0 0.0
  %283 = vmatprep.subr.mxu0 0.0
  %284 = vmatpush1.msra.mxu0 0.0
  %285 = vmatprep.subr.mxu0 0.0
  %286 = vmatpush1.msra.mxu0 0.0
  %287 = vmatprep.subr.mxu0 0.0
  %288 = vmatpush1.msra.mxu0 0.0
  %289 = vmatprep.subr.mxu0 0.0
  %290 = vmatpush1.msra.mxu0 0.0
  %291 = vmatprep.subr.mxu0 0.0
  %292 = vmatpush1.msra.mxu0 0.0
  %293 = vmatprep.subr.mxu0 0.0
  %294 = vmatpush1.msra.mxu0 0.0
  %295 = vmatprep.subr.mxu0 0.0
  %296 = vmatpush1.msra.mxu0 0.0
  %297 = vmatprep.subr.mxu0 0.0
  %298 = vmatpush1.msra.mxu0 0.0
  %299 = vmatprep.subr.mxu0 0.0
  %300 = vmatpush1.msra.mxu0 0.0
  %301 = vmatprep.subr.mxu0 0.0
  %302 = vmatpush1.msra.mxu0 0.0
  %303 = vmatprep.subr.mxu0 0.0
  %304 = vmatpush1.msra.mxu0 0.0
  %305 = vmatprep.subr.mxu0 0.0
  %306 = vmatpush1.msra.mxu0 0.0
  %307 = vmatprep.subr.mxu0 0.0
  %308 = vmatpush1.msra.mxu0 0.0
  %309 = vmatprep.subr.mxu0 0.0
  %310 = vmatpush1.msra.mxu0 0.0
  %311 = vmatprep.mubr.f32.mxu0 0.0
  %312 = vmatmul.mubr.f32.gmra.mrb[0].mxu0 %v158
  %v313 = vpop.f32.mrb[0].mxu0
  %v314 = vadd.f32 %v246, %v313
  %v315 = vpop.f32.mrb[0].mxu0
  %316 = vmatprep.mubr.f32.mxu0 0.0
  %317 = vmatmul.mubr.f32.gmra.mrb[0].mxu0 %v161
  %v318 = vpop.f32.mrb[0].mxu0
  %v319 = vadd.f32 %v246, %v318
  %v320 = vpop.f32.mrb[0].mxu0
  %321 = vdwg.mxu0
  %v322 = vld [vmem:[%s1 + $0x58] sm:$0xff]
  %v323 = vld [vmem:[%s1 + $0x60] sm:$0xff]
  %v324 = vld [vmem:[%s1 + $0x68] sm:$0xff]
  %v325 = vld [vmem:[%s1 + $0x70] sm:$0xff]
  %v326 = vld [vmem:[%s1 + $0xfa] sm:$0x1]
  %v327 = vlaneseq
  %v328 = vshrl.u32 %v327, 7
  %v329 = vsub.s32 0, %v328
  %v330 = vrot.slane %v326, %v329
  %331 = vmatprep.subr.mxu0 0.0
  %332 = vmatpush1.msra.mxu0 %v322
  %333 = vmatprep.subr.mxu0 0.0
  %334 = vmatpush1.msra.mxu0 %v323
  %335 = vmatprep.subr.mxu0 0.0
  %336 = vmatpush1.msra.mxu0 %v324
  %337 = vmatprep.subr.mxu0 0.0
  %338 = vmatpush1.msra.mxu0 %v325
  %339 = vmatprep.subr.mxu0 0.0
  %340 = vmatpush1.msra.mxu0 0.0
  %341 = vmatprep.subr.mxu0 0.0
  %342 = vmatpush1.msra.mxu0 0.0
  %343 = vmatprep.subr.mxu0 0.0
  %344 = vmatpush1.msra.mxu0 0.0
  %345 = vmatprep.subr.mxu0 0.0
  %346 = vmatpush1.msra.mxu0 0.0
  %347 = vmatprep.subr.mxu0 0.0
  %348 = vmatpush1.msra.mxu0 0.0
  %349 = vmatprep.subr.mxu0 0.0
  %350 = vmatpush1.msra.mxu0 0.0
  %351 = vmatprep.subr.mxu0 0.0
  %352 = vmatpush1.msra.mxu0 0.0
  %353 = vmatprep.subr.mxu0 0.0
  %354 = vmatpush1.msra.mxu0 0.0
  %355 = vmatprep.subr.mxu0 0.0
  %356 = vmatpush1.msra.mxu0 0.0
  %357 = vmatprep.subr.mxu0 0.0
  %358 = vmatpush1.msra.mxu0 0.0
  %359 = vmatprep.subr.mxu0 0.0
  %360 = vmatpush1.msra.mxu0 0.0
  %361 = vmatprep.subr.mxu0 0.0
  %362 = vmatpush1.msra.mxu0 0.0
  %363 = vmatprep.subr.mxu0 0.0
  %364 = vmatpush1.msra.mxu0 0.0
  %365 = vmatprep.subr.mxu0 0.0
  %366 = vmatpush1.msra.mxu0 0.0
  %367 = vmatprep.subr.mxu0 0.0
  %368 = vmatpush1.msra.mxu0 0.0
  %369 = vmatprep.subr.mxu0 0.0
  %370 = vmatpush1.msra.mxu0 0.0
  %371 = vmatprep.subr.mxu0 0.0
  %372 = vmatpush1.msra.mxu0 0.0
  %373 = vmatprep.subr.mxu0 0.0
  %374 = vmatpush1.msra.mxu0 0.0
  %375 = vmatprep.subr.mxu0 0.0
  %376 = vmatpush1.msra.mxu0 0.0
  %377 = vmatprep.subr.mxu0 0.0
  %378 = vmatpush1.msra.mxu0 0.0
  %379 = vmatprep.subr.mxu0 0.0
  %380 = vmatpush1.msra.mxu0 0.0
  %381 = vmatprep.subr.mxu0 0.0
  %382 = vmatpush1.msra.mxu0 0.0
  %383 = vmatprep.subr.mxu0 0.0
  %384 = vmatpush1.msra.mxu0 0.0
  %385 = vmatprep.subr.mxu0 0.0
  %386 = vmatpush1.msra.mxu0 0.0
  %387 = vmatprep.subr.mxu0 0.0
  %388 = vmatpush1.msra.mxu0 0.0
  %389 = vmatprep.subr.mxu0 0.0
  %390 = vmatpush1.msra.mxu0 0.0
  %391 = vmatprep.subr.mxu0 0.0
  %392 = vmatpush1.msra.mxu0 0.0
  %393 = vmatprep.subr.mxu0 0.0
  %394 = vmatpush1.msra.mxu0 0.0
  %395 = vmatprep.mubr.f32.mxu0 0.0
  %396 = vmatmul.mubr.f32.gmra.mrb[0].mxu0 %v158
  %v397 = vpop.f32.mrb[0].mxu0
  %v398 = vadd.f32 %v330, %v397
  %v399 = vpop.f32.mrb[0].mxu0
  %400 = vmatprep.mubr.f32.mxu0 0.0
  %401 = vmatmul.mubr.f32.gmra.mrb[0].mxu0 %v161
  %v402 = vpop.f32.mrb[0].mxu0
  %v403 = vadd.f32 %v330, %v402
  %v404 = vpop.f32.mrb[0].mxu0
  %405 = vdwg.mxu0
  %v406 = vmul.f32 %v230, %v16
  %v407 = vmul.f32 %v235, %v16
  %v409 = vsel %vm156, %v406, 0
  %v412 = vsel %vm156, %v407, 0
  %v415 = vsel %vm156, %v314, 0
  %v418 = vsel %vm156, %v319, 0
  %420 = vmatprep.subr.mxu0 0.0
  %421 = vmatpush1.xpose.msra.mxu0 %v415
  %422 = vmatprep.subr.mxu0 0.0
  %423 = vmatpush1.xpose.msra.mxu0 %v418
  %424 = vmatprep.subr.mxu0 0.0
  %425 = vmatpush1.xpose.msra.mxu0 0.0
  %426 = vmatprep.subr.mxu0 0.0
  %427 = vmatpush1.xpose.msra.mxu0 0.0
  %428 = vmatprep.subr.mxu0 0.0
  %429 = vmatpush1.xpose.msra.mxu0 0.0
  %430 = vmatprep.subr.mxu0 0.0
  %431 = vmatpush1.xpose.msra.mxu0 0.0
  %432 = vmatprep.subr.mxu0 0.0
  %433 = vmatpush1.xpose.msra.mxu0 0.0
  %434 = vmatprep.subr.mxu0 0.0
  %435 = vmatpush1.xpose.msra.mxu0 0.0
  %436 = vmatprep.subr.mxu0 0.0
  %437 = vmatpush1.xpose.msra.mxu0 0.0
  %438 = vmatprep.subr.mxu0 0.0
  %439 = vmatpush1.xpose.msra.mxu0 0.0
  %440 = vmatprep.subr.mxu0 0.0
  %441 = vmatpush1.xpose.msra.mxu0 0.0
  %442 = vmatprep.subr.mxu0 0.0
  %443 = vmatpush1.xpose.msra.mxu0 0.0
  %444 = vmatprep.subr.mxu0 0.0
  %445 = vmatpush1.xpose.msra.mxu0 0.0
  %446 = vmatprep.subr.mxu0 0.0
  %447 = vmatpush1.xpose.msra.mxu0 0.0
  %448 = vmatprep.subr.mxu0 0.0
  %449 = vmatpush1.xpose.msra.mxu0 0.0
  %450 = vmatprep.subr.mxu0 0.0
  %451 = vmatpush1.xpose.msra.mxu0 0.0
  %452 = vmatprep.subr.mxu0 0.0
  %453 = vmatpush1.xpose.msra.mxu0 0.0
  %454 = vmatprep.subr.mxu0 0.0
  %455 = vmatpush1.xpose.msra.mxu0 0.0
  %456 = vmatprep.subr.mxu0 0.0
  %457 = vmatpush1.xpose.msra.mxu0 0.0
  %458 = vmatprep.subr.mxu0 0.0
  %459 = vmatpush1.xpose.msra.mxu0 0.0
  %460 = vmatprep.subr.mxu0 0.0
  %461 = vmatpush1.xpose.msra.mxu0 0.0
  %462 = vmatprep.subr.mxu0 0.0
  %463 = vmatpush1.xpose.msra.mxu0 0.0
  %464 = vmatprep.subr.mxu0 0.0
  %465 = vmatpush1.xpose.msra.mxu0 0.0
  %466 = vmatprep.subr.mxu0 0.0
  %467 = vmatpush1.xpose.msra.mxu0 0.0
  %468 = vmatprep.subr.mxu0 0.0
  %469 = vmatpush1.xpose.msra.mxu0 0.0
  %470 = vmatprep.subr.mxu0 0.0
  %471 = vmatpush1.xpose.msra.mxu0 0.0
  %472 = vmatprep.subr.mxu0 0.0
  %473 = vmatpush1.xpose.msra.mxu0 0.0
  %474 = vmatprep.subr.mxu0 0.0
  %475 = vmatpush1.xpose.msra.mxu0 0.0
  %476 = vmatprep.subr.mxu0 0.0
  %477 = vmatpush1.xpose.msra.mxu0 0.0
  %478 = vmatprep.subr.mxu0 0.0
  %479 = vmatpush1.xpose.msra.mxu0 0.0
  %480 = vmatprep.subr.mxu0 0.0
  %481 = vmatpush1.xpose.msra.mxu0 0.0
  %482 = vmatprep.subr.mxu0 0.0
  %483 = vmatpush1.xpose.msra.mxu0 0.0
  %484 = vmatprep.mubr.f32.mxu0 0.0
  %485 = vmatmul.mubr.f32.gmra.mrb[0].mxu0 %v409
  %v486 = vpop.f32.mrb[0].mxu0
  %v487 = vadd.f32 %v58, %v486
  %v488 = vpop.f32.mrb[0].mxu0
  %489 = vmatprep.mubr.f32.mxu0 0.0
  %490 = vmatmul.mubr.f32.gmra.mrb[0].mxu0 %v412
  %v491 = vpop.f32.mrb[0].mxu0
  %v492 = vadd.f32 %v59, %v491
  %v493 = vpop.f32.mrb[0].mxu0
  %494 = vdwg.mxu0
  %vm495 = vcmask 130048
  %v496 = vsel %vm495, %v487, -inf
  %497 = vmax.xlane.f32.xlu0 %v496
  %v498 = vpop.xlane.xlu0 %497
  %v499 = vsel %vm495, %v492, -inf
  %500 = vmax.xlane.f32.xlu0 %v499
  %v501 = vpop.xlane.xlu0 %500
  %v502 = vsub.f32 %v487, %v498
  %v503 = vsub.f32 %v492, %v501
  %v504 = vmul.f32 %v502, 1.442695
  %v505 = vpow.pop %v504
  %v506 = vmul.f32 %v503, 1.442695
  %v507 = vpow.pop %v506
  %v508 = vsel %vm495, %v505, 0.0
  %509 = vadd.xlane.f32.xlu0 %v508
  %v510 = vpop.xlane.xlu0 %509
  %v511 = vsel %vm495, %v507, 0.0
  %512 = vadd.xlane.f32.xlu0 %v511
  %v513 = vpop.xlane.xlu0 %512
  %v514 = vrcp.pop %v510
  %v515 = vmul.f32 %v505, %v514
  %v516 = vrcp.pop %v513
  %v517 = vmul.f32 %v507, %v516
  %v518 = vmul.f32 %v398, %v16
  %v519 = vmul.f32 %v403, %v16
  %v520 = vmul.f32 %v230, %v20
  %v521 = vmul.f32 %v235, %v20
  %v523 = vsel %vm156, %v520, 0
  %v526 = vsel %vm156, %v521, 0
  %528 = vmatprep.subr.mxu0 0.0
  %529 = vmatpush1.xpose.msra.mxu0 %v415
  %530 = vmatprep.subr.mxu0 0.0
  %531 = vmatpush1.xpose.msra.mxu0 %v418
  %532 = vmatprep.subr.mxu0 0.0
  %533 = vmatpush1.xpose.msra.mxu0 0.0
  %534 = vmatprep.subr.mxu0 0.0
  %535 = vmatpush1.xpose.msra.mxu0 0.0
  %536 = vmatprep.subr.mxu0 0.0
  %537 = vmatpush1.xpose.msra.mxu0 0.0
  %538 = vmatprep.subr.mxu0 0.0
  %539 = vmatpush1.xpose.msra.mxu0 0.0
  %540 = vmatprep.subr.mxu0 0.0
  %541 = vmatpush1.xpose.msra.mxu0 0.0
  %542 = vmatprep.subr.mxu0 0.0
  %543 = vmatpush1.xpose.msra.mxu0 0.0
  %544 = vmatprep.subr.mxu0 0.0
  %545 = vmatpush1.xpose.msra.mxu0 0.0
  %546 = vmatprep.subr.mxu0 0.0
  %547 = vmatpush1.xpose.msra.mxu0 0.0
  %548 = vmatprep.subr.mxu0 0.0
  %549 = vmatpush1.xpose.msra.mxu0 0.0
  %550 = vmatprep.subr.mxu0 0.0
  %551 = vmatpush1.xpose.msra.mxu0 0.0
  %552 = vmatprep.subr.mxu0 0.0
  %553 = vmatpush1.xpose.msra.mxu0 0.0
  %554 = vmatprep.subr.mxu0 0.0
  %555 = vmatpush1.xpose.msra.mxu0 0.0
  %556 = vmatprep.subr.mxu0 0.0
  %557 = vmatpush1.xpose.msra.mxu0 0.0
  %558 = vmatprep.subr.mxu0 0.0
  %559 = vmatpush1.xpose.msra.mxu0 0.0
  %560 = vmatprep.subr.mxu0 0.0
  %561 = vmatpush1.xpose.msra.mxu0 0.0
  %562 = vmatprep.subr.mxu0 0.0
  %563 = vmatpush1.xpose.msra.mxu0 0.0
  %564 = vmatprep.subr.mxu0 0.0
  %565 = vmatpush1.xpose.msra.mxu0 0.0
  %566 = vmatprep.subr.mxu0 0.0
  %567 = vmatpush1.xpose.msra.mxu0 0.0
  %568 = vmatprep.subr.mxu0 0.0
  %569 = vmatpush1.xpose.msra.mxu0 0.0
  %570 = vmatprep.subr.mxu0 0.0
  %571 = vmatpush1.xpose.msra.mxu0 0.0
  %572 = vmatprep.subr.mxu0 0.0
  %573 = vmatpush1.xpose.msra.mxu0 0.0
  %574 = vmatprep.subr.mxu0 0.0
  %575 = vmatpush1.xpose.msra.mxu0 0.0
  %576 = vmatprep.subr.mxu0 0.0
  %577 = vmatpush1.xpose.msra.mxu0 0.0
  %578 = vmatprep.subr.mxu0 0.0
  %579 = vmatpush1.xpose.msra.mxu0 0.0
  %580 = vmatprep.subr.mxu0 0.0
  %581 = vmatpush1.xpose.msra.mxu0 0.0
  %582 = vmatprep.subr.mxu0 0.0
  %583 = vmatpush1.xpose.msra.mxu0 0.0
  %584 = vmatprep.subr.mxu0 0.0
  %585 = vmatpush1.xpose.msra.mxu0 0.0
  %586 = vmatprep.subr.mxu0 0.0
  %587 = vmatpush1.xpose.msra.mxu0 0.0
  %588 = vmatprep.subr.mxu0 0.0
  %589 = vmatpush1.xpose.msra.mxu0 0.0
  %590 = vmatprep.subr.mxu0 0.0
  %591 = vmatpush1.xpose.msra.mxu0 0.0
  %592 = vmatprep.mubr.f32.mxu0 0.0
  %593 = vmatmul.mubr.f32.gmra.mrb[0].mxu0 %v523
  %v594 = vpop.f32.mrb[0].mxu0
  %v595 = vadd.f32 %v58, %v594
  %v596 = vpop.f32.mrb[0].mxu0
  %597 = vmatprep.mubr.f32.mxu0 0.0
  %598 = vmatmul.mubr.f32.gmra.mrb[0].mxu0 %v526
  %v599 = vpop.f32.mrb[0].mxu0
  %v600 = vadd.f32 %v59, %v599
  %v601 = vpop.f32.mrb[0].mxu0
  %602 = vdwg.mxu0
  %v603 = vsel %vm495, %v595, -inf
  %604 = vmax.xlane.f32.xlu0 %v603
  %v605 = vpop.xlane.xlu0 %604
  %v606 = vsel %vm495, %v600, -inf
  %607 = vmax.xlane.f32.xlu0 %v606
  %v608 = vpop.xlane.xlu0 %607
  %v609 = vsub.f32 %v595, %v605
  %v610 = vsub.f32 %v600, %v608
  %v611 = vmul.f32 %v609, 1.442695
  %v612 = vpow.pop %v611
  %v613 = vmul.f32 %v610, 1.442695
  %v614 = vpow.pop %v613
  %v615 = vsel %vm495, %v612, 0.0
  %616 = vadd.xlane.f32.xlu0 %v615
  %v617 = vpop.xlane.xlu0 %616
  %v618 = vsel %vm495, %v614, 0.0
  %619 = vadd.xlane.f32.xlu0 %v618
  %v620 = vpop.xlane.xlu0 %619
  %v621 = vrcp.pop %v617
  %v622 = vmul.f32 %v612, %v621
  %v623 = vrcp.pop %v620
  %v624 = vmul.f32 %v614, %v623
  %v625 = vmul.f32 %v398, %v20
  %v626 = vmul.f32 %v403, %v20
  %v628 = vsel %vm495, %v622, 0
  %v631 = vsel %vm495, %v624, 0
  %633 = vmatprep.subr.mxu0 0.0
  %634 = vmatpush1.msra.mxu0 %v625
  %635 = vmatprep.subr.mxu0 0.0
  %636 = vmatpush1.msra.mxu0 %v626
  %637 = vmatprep.subr.mxu0 0.0
  %638 = vmatpush1.msra.mxu0 0.0
  %639 = vmatprep.subr.mxu0 0.0
  %640 = vmatpush1.msra.mxu0 0.0
  %641 = vmatprep.subr.mxu0 0.0
  %642 = vmatpush1.msra.mxu0 0.0
  %643 = vmatprep.subr.mxu0 0.0
  %644 = vmatpush1.msra.mxu0 0.0
  %645 = vmatprep.subr.mxu0 0.0
  %646 = vmatpush1.msra.mxu0 0.0
  %647 = vmatprep.subr.mxu0 0.0
  %648 = vmatpush1.msra.mxu0 0.0
  %649 = vmatprep.subr.mxu0 0.0
  %650 = vmatpush1.msra.mxu0 0.0
  %651 = vmatprep.subr.mxu0 0.0
  %652 = vmatpush1.msra.mxu0 0.0
  %653 = vmatprep.subr.mxu0 0.0
  %654 = vmatpush1.msra.mxu0 0.0
  %655 = vmatprep.subr.mxu0 0.0
  %656 = vmatpush1.msra.mxu0 0.0
  %657 = vmatprep.subr.mxu0 0.0
  %658 = vmatpush1.msra.mxu0 0.0
  %659 = vmatprep.subr.mxu0 0.0
  %660 = vmatpush1.msra.mxu0 0.0
  %661 = vmatprep.subr.mxu0 0.0
  %662 = vmatpush1.msra.mxu0 0.0
  %663 = vmatprep.subr.mxu0 0.0
  %664 = vmatpush1.msra.mxu0 0.0
  %665 = vmatprep.subr.mxu0 0.0
  %666 = vmatpush1.msra.mxu0 0.0
  %667 = vmatprep.subr.mxu0 0.0
  %668 = vmatpush1.msra.mxu0 0.0
  %669 = vmatprep.subr.mxu0 0.0
  %670 = vmatpush1.msra.mxu0 0.0
  %671 = vmatprep.subr.mxu0 0.0
  %672 = vmatpush1.msra.mxu0 0.0
  %673 = vmatprep.subr.mxu0 0.0
  %674 = vmatpush1.msra.mxu0 0.0
  %675 = vmatprep.subr.mxu0 0.0
  %676 = vmatpush1.msra.mxu0 0.0
  %677 = vmatprep.subr.mxu0 0.0
  %678 = vmatpush1.msra.mxu0 0.0
  %679 = vmatprep.subr.mxu0 0.0
  %680 = vmatpush1.msra.mxu0 0.0
  %681 = vmatprep.subr.mxu0 0.0
  %682 = vmatpush1.msra.mxu0 0.0
  %683 = vmatprep.subr.mxu0 0.0
  %684 = vmatpush1.msra.mxu0 0.0
  %685 = vmatprep.subr.mxu0 0.0
  %686 = vmatpush1.msra.mxu0 0.0
  %687 = vmatprep.subr.mxu0 0.0
  %688 = vmatpush1.msra.mxu0 0.0
  %689 = vmatprep.subr.mxu0 0.0
  %690 = vmatpush1.msra.mxu0 0.0
  %691 = vmatprep.subr.mxu0 0.0
  %692 = vmatpush1.msra.mxu0 0.0
  %693 = vmatprep.subr.mxu0 0.0
  %694 = vmatpush1.msra.mxu0 0.0
  %695 = vmatprep.subr.mxu0 0.0
  %696 = vmatpush1.msra.mxu0 0.0
  %697 = vmatprep.mubr.f32.mxu0 0.0
  %698 = vmatmul.mubr.f32.gmra.mrb[0].mxu0 %v628
  %v699 = vpop.f32.mrb[0].mxu0
  %v700 = vadd.f32 0.0, %v699
  %v701 = vpop.f32.mrb[0].mxu0
  %702 = vmatprep.mubr.f32.mxu0 0.0
  %703 = vmatmul.mubr.f32.gmra.mrb[0].mxu0 %v631
  %v704 = vpop.f32.mrb[0].mxu0
  %v705 = vadd.f32 0.0, %v704
  %v706 = vpop.f32.mrb[0].mxu0
  %707 = vdwg.mxu0
  %v709 = vsel %vm495, %v515, 0
  %v712 = vsel %vm495, %v517, 0
  %714 = vmatprep.subr.mxu0 0.0
  %715 = vmatpush1.msra.mxu0 %v518
  %716 = vmatprep.subr.mxu0 0.0
  %717 = vmatpush1.msra.mxu0 %v519
  %718 = vmatprep.subr.mxu0 0.0
  %719 = vmatpush1.msra.mxu0 0.0
  %720 = vmatprep.subr.mxu0 0.0
  %721 = vmatpush1.msra.mxu0 0.0
  %722 = vmatprep.subr.mxu0 0.0
  %723 = vmatpush1.msra.mxu0 0.0
  %724 = vmatprep.subr.mxu0 0.0
  %725 = vmatpush1.msra.mxu0 0.0
  %726 = vmatprep.subr.mxu0 0.0
  %727 = vmatpush1.msra.mxu0 0.0
  %728 = vmatprep.subr.mxu0 0.0
  %729 = vmatpush1.msra.mxu0 0.0
  %730 = vmatprep.subr.mxu0 0.0
  %731 = vmatpush1.msra.mxu0 0.0
  %732 = vmatprep.subr.mxu0 0.0
  %733 = vmatpush1.msra.mxu0 0.0
  %734 = vmatprep.subr.mxu0 0.0
  %735 = vmatpush1.msra.mxu0 0.0
  %736 = vmatprep.subr.mxu0 0.0
  %737 = vmatpush1.msra.mxu0 0.0
  %738 = vmatprep.subr.mxu0 0.0
  %739 = vmatpush1.msra.mxu0 0.0
  %740 = vmatprep.subr.mxu0 0.0
  %741 = vmatpush1.msra.mxu0 0.0
  %742 = vmatprep.subr.mxu0 0.0
  %743 = vmatpush1.msra.mxu0 0.0
  %744 = vmatprep.subr.mxu0 0.0
  %745 = vmatpush1.msra.mxu0 0.0
  %746 = vmatprep.subr.mxu0 0.0
  %747 = vmatpush1.msra.mxu0 0.0
  %748 = vmatprep.subr.mxu0 0.0
  %749 = vmatpush1.msra.mxu0 0.0
  %750 = vmatprep.subr.mxu0 0.0
  %751 = vmatpush1.msra.mxu0 0.0
  %752 = vmatprep.subr.mxu0 0.0
  %753 = vmatpush1.msra.mxu0 0.0
  %754 = vmatprep.subr.mxu0 0.0
  %755 = vmatpush1.msra.mxu0 0.0
  %756 = vmatprep.subr.mxu0 0.0
  %757 = vmatpush1.msra.mxu0 0.0
  %758 = vmatprep.subr.mxu0 0.0
  %759 = vmatpush1.msra.mxu0 0.0
  %760 = vmatprep.subr.mxu0 0.0
  %761 = vmatpush1.msra.mxu0 0.0
  %762 = vmatprep.subr.mxu0 0.0
  %763 = vmatpush1.msra.mxu0 0.0
  %764 = vmatprep.subr.mxu0 0.0
  %765 = vmatpush1.msra.mxu0 0.0
  %766 = vmatprep.subr.mxu0 0.0
  %767 = vmatpush1.msra.mxu0 0.0
  %768 = vmatprep.subr.mxu0 0.0
  %769 = vmatpush1.msra.mxu0 0.0
  %770 = vmatprep.subr.mxu0 0.0
  %771 = vmatpush1.msra.mxu0 0.0
  %772 = vmatprep.subr.mxu0 0.0
  %773 = vmatpush1.msra.mxu0 0.0
  %774 = vmatprep.subr.mxu0 0.0
  %775 = vmatpush1.msra.mxu0 0.0
  %776 = vmatprep.subr.mxu0 0.0
  %777 = vmatpush1.msra.mxu0 0.0
  %778 = vmatprep.mubr.f32.mxu0 0.0
  %779 = vmatmul.mubr.f32.gmra.mrb[0].mxu0 %v709
  %v780 = vpop.f32.mrb[0].mxu0
  %v781 = vadd.f32 %v700, %v780
  %v782 = vpop.f32.mrb[0].mxu0
  %783 = vmatprep.mubr.f32.mxu0 0.0
  %784 = vmatmul.mubr.f32.gmra.mrb[0].mxu0 %v712
  %v785 = vpop.f32.mrb[0].mxu0
  %v786 = vadd.f32 %v705, %v785
  %v787 = vpop.f32.mrb[0].mxu0
  %788 = vdwg.mxu0
  %v789 = vmul.f32 %v230, %v24
  %v790 = vmul.f32 %v235, %v24
  %v792 = vsel %vm156, %v789, 0
  %v795 = vsel %vm156, %v790, 0
  %797 = vmatprep.subr.mxu0 0.0
  %798 = vmatpush1.xpose.msra.mxu0 %v415
  %799 = vmatprep.subr.mxu0 0.0
  %800 = vmatpush1.xpose.msra.mxu0 %v418
  %801 = vmatprep.subr.mxu0 0.0
  %802 = vmatpush1.xpose.msra.mxu0 0.0
  %803 = vmatprep.subr.mxu0 0.0
  %804 = vmatpush1.xpose.msra.mxu0 0.0
  %805 = vmatprep.subr.mxu0 0.0
  %806 = vmatpush1.xpose.msra.mxu0 0.0
  %807 = vmatprep.subr.mxu0 0.0
  %808 = vmatpush1.xpose.msra.mxu0 0.0
  %809 = vmatprep.subr.mxu0 0.0
  %810 = vmatpush1.xpose.msra.mxu0 0.0
  %811 = vmatprep.subr.mxu0 0.0
  %812 = vmatpush1.xpose.msra.mxu0 0.0
  %813 = vmatprep.subr.mxu0 0.0
  %814 = vmatpush1.xpose.msra.mxu0 0.0
  %815 = vmatprep.subr.mxu0 0.0
  %816 = vmatpush1.xpose.msra.mxu0 0.0
  %817 = vmatprep.subr.mxu0 0.0
  %818 = vmatpush1.xpose.msra.mxu0 0.0
  %819 = vmatprep.subr.mxu0 0.0
  %820 = vmatpush1.xpose.msra.mxu0 0.0
  %821 = vmatprep.subr.mxu0 0.0
  %822 = vmatpush1.xpose.msra.mxu0 0.0
  %823 = vmatprep.subr.mxu0 0.0
  %824 = vmatpush1.xpose.msra.mxu0 0.0
  %825 = vmatprep.subr.mxu0 0.0
  %826 = vmatpush1.xpose.msra.mxu0 0.0
  %827 = vmatprep.subr.mxu0 0.0
  %828 = vmatpush1.xpose.msra.mxu0 0.0
  %829 = vmatprep.subr.mxu0 0.0
  %830 = vmatpush1.xpose.msra.mxu0 0.0
  %831 = vmatprep.subr.mxu0 0.0
  %832 = vmatpush1.xpose.msra.mxu0 0.0
  %833 = vmatprep.subr.mxu0 0.0
  %834 = vmatpush1.xpose.msra.mxu0 0.0
  %835 = vmatprep.subr.mxu0 0.0
  %836 = vmatpush1.xpose.msra.mxu0 0.0
  %837 = vmatprep.subr.mxu0 0.0
  %838 = vmatpush1.xpose.msra.mxu0 0.0
  %839 = vmatprep.subr.mxu0 0.0
  %840 = vmatpush1.xpose.msra.mxu0 0.0
  %841 = vmatprep.subr.mxu0 0.0
  %842 = vmatpush1.xpose.msra.mxu0 0.0
  %843 = vmatprep.subr.mxu0 0.0
  %844 = vmatpush1.xpose.msra.mxu0 0.0
  %845 = vmatprep.subr.mxu0 0.0
  %846 = vmatpush1.xpose.msra.mxu0 0.0
  %847 = vmatprep.subr.mxu0 0.0
  %848 = vmatpush1.xpose.msra.mxu0 0.0
  %849 = vmatprep.subr.mxu0 0.0
  %850 = vmatpush1.xpose.msra.mxu0 0.0
  %851 = vmatprep.subr.mxu0 0.0
  %852 = vmatpush1.xpose.msra.mxu0 0.0
  %853 = vmatprep.subr.mxu0 0.0
  %854 = vmatpush1.xpose.msra.mxu0 0.0
  %855 = vmatprep.subr.mxu0 0.0
  %856 = vmatpush1.xpose.msra.mxu0 0.0
  %857 = vmatprep.subr.mxu0 0.0
  %858 = vmatpush1.xpose.msra.mxu0 0.0
  %859 = vmatprep.subr.mxu0 0.0
  %860 = vmatpush1.xpose.msra.mxu0 0.0
  %861 = vmatprep.mubr.f32.mxu0 0.0
  %862 = vmatmul.mubr.f32.gmra.mrb[0].mxu0 %v792
  %v863 = vpop.f32.mrb[0].mxu0
  %v864 = vadd.f32 %v58, %v863
  %v865 = vpop.f32.mrb[0].mxu0
  %866 = vmatprep.mubr.f32.mxu0 0.0
  %867 = vmatmul.mubr.f32.gmra.mrb[0].mxu0 %v795
  %v868 = vpop.f32.mrb[0].mxu0
  %v869 = vadd.f32 %v59, %v868
  %v870 = vpop.f32.mrb[0].mxu0
  %871 = vdwg.mxu0
  %v872 = vsel %vm495, %v864, -inf
  %873 = vmax.xlane.f32.xlu0 %v872
  %v874 = vpop.xlane.xlu0 %873
  %v875 = vsel %vm495, %v869, -inf
  %876 = vmax.xlane.f32.xlu0 %v875
  %v877 = vpop.xlane.xlu0 %876
  %v878 = vsub.f32 %v864, %v874
  %v879 = vsub.f32 %v869, %v877
  %v880 = vmul.f32 %v878, 1.442695
  %v881 = vpow.pop %v880
  %v882 = vmul.f32 %v879, 1.442695
  %v883 = vpow.pop %v882
  %v884 = vsel %vm495, %v881, 0.0
  %885 = vadd.xlane.f32.xlu0 %v884
  %v886 = vpop.xlane.xlu0 %885
  %v887 = vsel %vm495, %v883, 0.0
  %888 = vadd.xlane.f32.xlu0 %v887
  %v889 = vpop.xlane.xlu0 %888
  %v890 = vrcp.pop %v886
  %v891 = vmul.f32 %v881, %v890
  %v892 = vrcp.pop %v889
  %v893 = vmul.f32 %v883, %v892
  %v894 = vmul.f32 %v398, %v24
  %v895 = vmul.f32 %v403, %v24
  %v897 = vsel %vm495, %v891, 0
  %v900 = vsel %vm495, %v893, 0
  %902 = vmatprep.subr.mxu0 0.0
  %903 = vmatpush1.msra.mxu0 %v894
  %904 = vmatprep.subr.mxu0 0.0
  %905 = vmatpush1.msra.mxu0 %v895
  %906 = vmatprep.subr.mxu0 0.0
  %907 = vmatpush1.msra.mxu0 0.0
  %908 = vmatprep.subr.mxu0 0.0
  %909 = vmatpush1.msra.mxu0 0.0
  %910 = vmatprep.subr.mxu0 0.0
  %911 = vmatpush1.msra.mxu0 0.0
  %912 = vmatprep.subr.mxu0 0.0
  %913 = vmatpush1.msra.mxu0 0.0
  %914 = vmatprep.subr.mxu0 0.0
  %915 = vmatpush1.msra.mxu0 0.0
  %916 = vmatprep.subr.mxu0 0.0
  %917 = vmatpush1.msra.mxu0 0.0
  %918 = vmatprep.subr.mxu0 0.0
  %919 = vmatpush1.msra.mxu0 0.0
  %920 = vmatprep.subr.mxu0 0.0
  %921 = vmatpush1.msra.mxu0 0.0
  %922 = vmatprep.subr.mxu0 0.0
  %923 = vmatpush1.msra.mxu0 0.0
  %924 = vmatprep.subr.mxu0 0.0
  %925 = vmatpush1.msra.mxu0 0.0
  %926 = vmatprep.subr.mxu0 0.0
  %927 = vmatpush1.msra.mxu0 0.0
  %928 = vmatprep.subr.mxu0 0.0
  %929 = vmatpush1.msra.mxu0 0.0
  %930 = vmatprep.subr.mxu0 0.0
  %931 = vmatpush1.msra.mxu0 0.0
  %932 = vmatprep.subr.mxu0 0.0
  %933 = vmatpush1.msra.mxu0 0.0
  %934 = vmatprep.subr.mxu0 0.0
  %935 = vmatpush1.msra.mxu0 0.0
  %936 = vmatprep.subr.mxu0 0.0
  %937 = vmatpush1.msra.mxu0 0.0
  %938 = vmatprep.subr.mxu0 0.0
  %939 = vmatpush1.msra.mxu0 0.0
  %940 = vmatprep.subr.mxu0 0.0
  %941 = vmatpush1.msra.mxu0 0.0
  %942 = vmatprep.subr.mxu0 0.0
  %943 = vmatpush1.msra.mxu0 0.0
  %944 = vmatprep.subr.mxu0 0.0
  %945 = vmatpush1.msra.mxu0 0.0
  %946 = vmatprep.subr.mxu0 0.0
  %947 = vmatpush1.msra.mxu0 0.0
  %948 = vmatprep.subr.mxu0 0.0
  %949 = vmatpush1.msra.mxu0 0.0
  %950 = vmatprep.subr.mxu0 0.0
  %951 = vmatpush1.msra.mxu0 0.0
  %952 = vmatprep.subr.mxu0 0.0
  %953 = vmatpush1.msra.mxu0 0.0
  %954 = vmatprep.subr.mxu0 0.0
  %955 = vmatpush1.msra.mxu0 0.0
  %956 = vmatprep.subr.mxu0 0.0
  %957 = vmatpush1.msra.mxu0 0.0
  %958 = vmatprep.subr.mxu0 0.0
  %959 = vmatpush1.msra.mxu0 0.0
  %960 = vmatprep.subr.mxu0 0.0
  %961 = vmatpush1.msra.mxu0 0.0
  %962 = vmatprep.subr.mxu0 0.0
  %963 = vmatpush1.msra.mxu0 0.0
  %964 = vmatprep.subr.mxu0 0.0
  %965 = vmatpush1.msra.mxu0 0.0
  %966 = vmatprep.mubr.f32.mxu0 0.0
  %967 = vmatmul.mubr.f32.gmra.mrb[0].mxu0 %v897
  %v968 = vpop.f32.mrb[0].mxu0
  %v969 = vadd.f32 0.0, %v968
  %v970 = vpop.f32.mrb[0].mxu0
  %971 = vmatprep.mubr.f32.mxu0 0.0
  %972 = vmatmul.mubr.f32.gmra.mrb[0].mxu0 %v900
  %v973 = vpop.f32.mrb[0].mxu0
  %v974 = vadd.f32 0.0, %v973
  %v975 = vpop.f32.mrb[0].mxu0
  %976 = vdwg.mxu0
  %v977 = vadd.f32 %v781, %v969
  %v978 = vadd.f32 %v786, %v974
  %v979 = vmul.f32 %v230, %v28
  %v980 = vmul.f32 %v235, %v28
  %v982 = vsel %vm156, %v979, 0
  %v985 = vsel %vm156, %v980, 0
  %987 = vmatprep.subr.mxu0 0.0
  %988 = vmatpush1.xpose.msra.mxu0 %v415
  %989 = vmatprep.subr.mxu0 0.0
  %990 = vmatpush1.xpose.msra.mxu0 %v418
  %991 = vmatprep.subr.mxu0 0.0
  %992 = vmatpush1.xpose.msra.mxu0 0.0
  %993 = vmatprep.subr.mxu0 0.0
  %994 = vmatpush1.xpose.msra.mxu0 0.0
  %995 = vmatprep.subr.mxu0 0.0
  %996 = vmatpush1.xpose.msra.mxu0 0.0
  %997 = vmatprep.subr.mxu0 0.0
  %998 = vmatpush1.xpose.msra.mxu0 0.0
  %999 = vmatprep.subr.mxu0 0.0
  %1000 = vmatpush1.xpose.msra.mxu0 0.0
  %1001 = vmatprep.subr.mxu0 0.0
  %1002 = vmatpush1.xpose.msra.mxu0 0.0
  %1003 = vmatprep.subr.mxu0 0.0
  %1004 = vmatpush1.xpose.msra.mxu0 0.0
  %1005 = vmatprep.subr.mxu0 0.0
  %1006 = vmatpush1.xpose.msra.mxu0 0.0
  %1007 = vmatprep.subr.mxu0 0.0
  %1008 = vmatpush1.xpose.msra.mxu0 0.0
  %1009 = vmatprep.subr.mxu0 0.0
  %1010 = vmatpush1.xpose.msra.mxu0 0.0
  %1011 = vmatprep.subr.mxu0 0.0
  %1012 = vmatpush1.xpose.msra.mxu0 0.0
  %1013 = vmatprep.subr.mxu0 0.0
  %1014 = vmatpush1.xpose.msra.mxu0 0.0
  %1015 = vmatprep.subr.mxu0 0.0
  %1016 = vmatpush1.xpose.msra.mxu0 0.0
  %1017 = vmatprep.subr.mxu0 0.0
  %1018 = vmatpush1.xpose.msra.mxu0 0.0
  %1019 = vmatprep.subr.mxu0 0.0
  %1020 = vmatpush1.xpose.msra.mxu0 0.0
  %1021 = vmatprep.subr.mxu0 0.0
  %1022 = vmatpush1.xpose.msra.mxu0 0.0
  %1023 = vmatprep.subr.mxu0 0.0
  %1024 = vmatpush1.xpose.msra.mxu0 0.0
  %1025 = vmatprep.subr.mxu0 0.0
  %1026 = vmatpush1.xpose.msra.mxu0 0.0
  %1027 = vmatprep.subr.mxu0 0.0
  %1028 = vmatpush1.xpose.msra.mxu0 0.0
  %1029 = vmatprep.subr.mxu0 0.0
  %1030 = vmatpush1.xpose.msra.mxu0 0.0
  %1031 = vmatprep.subr.mxu0 0.0
  %1032 = vmatpush1.xpose.msra.mxu0 0.0
  %1033 = vmatprep.subr.mxu0 0.0
  %1034 = vmatpush1.xpose.msra.mxu0 0.0
  %1035 = vmatprep.subr.mxu0 0.0
  %1036 = vmatpush1.xpose.msra.mxu0 0.0
  %1037 = vmatprep.subr.mxu0 0.0
  %1038 = vmatpush1.xpose.msra.mxu0 0.0
  %1039 = vmatprep.subr.mxu0 0.0
  %1040 = vmatpush1.xpose.msra.mxu0 0.0
  %1041 = vmatprep.subr.mxu0 0.0
  %1042 = vmatpush1.xpose.msra.mxu0 0.0
  %1043 = vmatprep.subr.mxu0 0.0
  %1044 = vmatpush1.xpose.msra.mxu0 0.0
  %1045 = vmatprep.subr.mxu0 0.0
  %1046 = vmatpush1.xpose.msra.mxu0 0.0
  %1047 = vmatprep.subr.mxu0 0.0
  %1048 = vmatpush1.xpose.msra.mxu0 0.0
  %1049 = vmatprep.subr.mxu0 0.0
  %1050 = vmatpush1.xpose.msra.mxu0 0.0
  %1051 = vmatprep.mubr.f32.mxu0 0.0
  %1052 = vmatmul.mubr.f32.gmra.mrb[0].mxu0 %v982
  %v1053 = vpop.f32.mrb[0].mxu0
  %v1054 = vadd.f32 %v58, %v1053
  %v1055 = vpop.f32.mrb[0].mxu0
  %1056 = vmatprep.mubr.f32.mxu0 0.0
  %1057 = vmatmul.mubr.f32.gmra.mrb[0].mxu0 %v985
  %v1058 = vpop.f32.mrb[0].mxu0
  %v1059 = vadd.f32 %v59, %v1058
  %v1060 = vpop.f32.mrb[0].mxu0
  %1061 = vdwg.mxu0
  %v1062 = vsel %vm495, %v1054, -inf
  %1063 = vmax.xlane.f32.xlu0 %v1062
  %v1064 = vpop.xlane.xlu0 %1063
  %v1065 = vsel %vm495, %v1059, -inf
  %1066 = vmax.xlane.f32.xlu0 %v1065
  %v1067 = vpop.xlane.xlu0 %1066
  %v1068 = vsub.f32 %v1054, %v1064
  %v1069 = vsub.f32 %v1059, %v1067
  %v1070 = vmul.f32 %v1068, 1.442695
  %v1071 = vpow.pop %v1070
  %v1072 = vmul.f32 %v1069, 1.442695
  %v1073 = vpow.pop %v1072
  %v1074 = vsel %vm495, %v1071, 0.0
  %1075 = vadd.xlane.f32.xlu0 %v1074
  %v1076 = vpop.xlane.xlu0 %1075
  %v1077 = vsel %vm495, %v1073, 0.0
  %1078 = vadd.xlane.f32.xlu0 %v1077
  %v1079 = vpop.xlane.xlu0 %1078
  %v1080 = vrcp.pop %v1076
  %v1081 = vmul.f32 %v1071, %v1080
  %v1082 = vrcp.pop %v1079
  %v1083 = vmul.f32 %v1073, %v1082
  %v1084 = vmul.f32 %v398, %v28
  %v1085 = vmul.f32 %v403, %v28
  %v1087 = vsel %vm495, %v1081, 0
  %v1090 = vsel %vm495, %v1083, 0
  %1092 = vmatprep.subr.mxu0 0.0
  %1093 = vmatpush1.msra.mxu0 %v1084
  %1094 = vmatprep.subr.mxu0 0.0
  %1095 = vmatpush1.msra.mxu0 %v1085
  %1096 = vmatprep.subr.mxu0 0.0
  %1097 = vmatpush1.msra.mxu0 0.0
  %1098 = vmatprep.subr.mxu0 0.0
  %1099 = vmatpush1.msra.mxu0 0.0
  %1100 = vmatprep.subr.mxu0 0.0
  %1101 = vmatpush1.msra.mxu0 0.0
  %1102 = vmatprep.subr.mxu0 0.0
  %1103 = vmatpush1.msra.mxu0 0.0
  %1104 = vmatprep.subr.mxu0 0.0
  %1105 = vmatpush1.msra.mxu0 0.0
  %1106 = vmatprep.subr.mxu0 0.0
  %1107 = vmatpush1.msra.mxu0 0.0
  %1108 = vmatprep.subr.mxu0 0.0
  %1109 = vmatpush1.msra.mxu0 0.0
  %1110 = vmatprep.subr.mxu0 0.0
  %1111 = vmatpush1.msra.mxu0 0.0
  %1112 = vmatprep.subr.mxu0 0.0
  %1113 = vmatpush1.msra.mxu0 0.0
  %1114 = vmatprep.subr.mxu0 0.0
  %1115 = vmatpush1.msra.mxu0 0.0
  %1116 = vmatprep.subr.mxu0 0.0
  %1117 = vmatpush1.msra.mxu0 0.0
  %1118 = vmatprep.subr.mxu0 0.0
  %1119 = vmatpush1.msra.mxu0 0.0
  %1120 = vmatprep.subr.mxu0 0.0
  %1121 = vmatpush1.msra.mxu0 0.0
  %1122 = vmatprep.subr.mxu0 0.0
  %1123 = vmatpush1.msra.mxu0 0.0
  %1124 = vmatprep.subr.mxu0 0.0
  %1125 = vmatpush1.msra.mxu0 0.0
  %1126 = vmatprep.subr.mxu0 0.0
  %1127 = vmatpush1.msra.mxu0 0.0
  %1128 = vmatprep.subr.mxu0 0.0
  %1129 = vmatpush1.msra.mxu0 0.0
  %1130 = vmatprep.subr.mxu0 0.0
  %1131 = vmatpush1.msra.mxu0 0.0
  %1132 = vmatprep.subr.mxu0 0.0
  %1133 = vmatpush1.msra.mxu0 0.0
  %1134 = vmatprep.subr.mxu0 0.0
  %1135 = vmatpush1.msra.mxu0 0.0
  %1136 = vmatprep.subr.mxu0 0.0
  %1137 = vmatpush1.msra.mxu0 0.0
  %1138 = vmatprep.subr.mxu0 0.0
  %1139 = vmatpush1.msra.mxu0 0.0
  %1140 = vmatprep.subr.mxu0 0.0
  %1141 = vmatpush1.msra.mxu0 0.0
  %1142 = vmatprep.subr.mxu0 0.0
  %1143 = vmatpush1.msra.mxu0 0.0
  %1144 = vmatprep.subr.mxu0 0.0
  %1145 = vmatpush1.msra.mxu0 0.0
  %1146 = vmatprep.subr.mxu0 0.0
  %1147 = vmatpush1.msra.mxu0 0.0
  %1148 = vmatprep.subr.mxu0 0.0
  %1149 = vmatpush1.msra.mxu0 0.0
  %1150 = vmatprep.subr.mxu0 0.0
  %1151 = vmatpush1.msra.mxu0 0.0
  %1152 = vmatprep.subr.mxu0 0.0
  %1153 = vmatpush1.msra.mxu0 0.0
  %1154 = vmatprep.subr.mxu0 0.0
  %1155 = vmatpush1.msra.mxu0 0.0
  %1156 = vmatprep.mubr.f32.mxu0 0.0
  %1157 = vmatmul.mubr.f32.gmra.mrb[0].mxu0 %v1087
  %v1158 = vpop.f32.mrb[0].mxu0
  %v1159 = vadd.f32 0.0, %v1158
  %v1160 = vpop.f32.mrb[0].mxu0
  %1161 = vmatprep.mubr.f32.mxu0 0.0
  %1162 = vmatmul.mubr.f32.gmra.mrb[0].mxu0 %v1090
  %v1163 = vpop.f32.mrb[0].mxu0
  %v1164 = vadd.f32 0.0, %v1163
  %v1165 = vpop.f32.mrb[0].mxu0
  %1166 = vdwg.mxu0
  %v1167 = vadd.f32 %v977, %v1159
  %v1168 = vadd.f32 %v978, %v1164
  %v1169 = vld [vmem:[%s1 + $0x78] sm:$0xff]
  %v1170 = vld [vmem:[%s1 + $0x80] sm:$0xff]
  %v1171 = vld [vmem:[%s1 + $0x88] sm:$0xff]
  %v1172 = vld [vmem:[%s1 + $0x90] sm:$0xff]
  %v1173 = vld [vmem:[%s1 + $0xfb] sm:$0x1]
  %v1174 = vlaneseq
  %v1175 = vshrl.u32 %v1174, 7
  %v1176 = vsub.s32 0, %v1175
  %v1177 = vrot.slane %v1173, %v1176
  %v1179 = vsel %vm156, %v1167, 0
  %v1182 = vsel %vm156, %v1168, 0
  %1184 = vmatprep.subr.mxu0 0.0
  %1185 = vmatpush1.msra.mxu0 %v1169
  %1186 = vmatprep.subr.mxu0 0.0
  %1187 = vmatpush1.msra.mxu0 %v1170
  %1188 = vmatprep.subr.mxu0 0.0
  %1189 = vmatpush1.msra.mxu0 %v1171
  %1190 = vmatprep.subr.mxu0 0.0
  %1191 = vmatpush1.msra.mxu0 %v1172
  %1192 = vmatprep.subr.mxu0 0.0
  %1193 = vmatpush1.msra.mxu0 0.0
  %1194 = vmatprep.subr.mxu0 0.0
  %1195 = vmatpush1.msra.mxu0 0.0
  %1196 = vmatprep.subr.mxu0 0.0
  %1197 = vmatpush1.msra.mxu0 0.0
  %1198 = vmatprep.subr.mxu0 0.0
  %1199 = vmatpush1.msra.mxu0 0.0
  %1200 = vmatprep.subr.mxu0 0.0
  %1201 = vmatpush1.msra.mxu0 0.0
  %1202 = vmatprep.subr.mxu0 0.0
  %1203 = vmatpush1.msra.mxu0 0.0
  %1204 = vmatprep.subr.mxu0 0.0
  %1205 = vmatpush1.msra.mxu0 0.0
  %1206 = vmatprep.subr.mxu0 0.0
  %1207 = vmatpush1.msra.mxu0 0.0
  %1208 = vmatprep.subr.mxu0 0.0
  %1209 = vmatpush1.msra.mxu0 0.0
  %1210 = vmatprep.subr.mxu0 0.0
  %1211 = vmatpush1.msra.mxu0 0.0
  %1212 = vmatprep.subr.mxu0 0.0
  %1213 = vmatpush1.msra.mxu0 0.0
  %1214 = vmatprep.subr.mxu0 0.0
  %1215 = vmatpush1.msra.mxu0 0.0
  %1216 = vmatprep.subr.mxu0 0.0
  %1217 = vmatpush1.msra.mxu0 0.0
  %1218 = vmatprep.subr.mxu0 0.0
  %1219 = vmatpush1.msra.mxu0 0.0
  %1220 = vmatprep.subr.mxu0 0.0
  %1221 = vmatpush1.msra.mxu0 0.0
  %1222 = vmatprep.subr.mxu0 0.0
  %1223 = vmatpush1.msra.mxu0 0.0
  %1224 = vmatprep.subr.mxu0 0.0
  %1225 = vmatpush1.msra.mxu0 0.0
  %1226 = vmatprep.subr.mxu0 0.0
  %1227 = vmatpush1.msra.mxu0 0.0
  %1228 = vmatprep.subr.mxu0 0.0
  %1229 = vmatpush1.msra.mxu0 0.0
  %1230 = vmatprep.subr.mxu0 0.0
  %1231 = vmatpush1.msra.mxu0 0.0
  %1232 = vmatprep.subr.mxu0 0.0
  %1233 = vmatpush1.msra.mxu0 0.0
  %1234 = vmatprep.subr.mxu0 0.0
  %1235 = vmatpush1.msra.mxu0 0.0
  %1236 = vmatprep.subr.mxu0 0.0
  %1237 = vmatpush1.msra.mxu0 0.0
  %1238 = vmatprep.subr.mxu0 0.0
  %1239 = vmatpush1.msra.mxu0 0.0
  %1240 = vmatprep.subr.mxu0 0.0
  %1241 = vmatpush1.msra.mxu0 0.0
  %1242 = vmatprep.subr.mxu0 0.0
  %1243 = vmatpush1.msra.mxu0 0.0
  %1244 = vmatprep.subr.mxu0 0.0
  %1245 = vmatpush1.msra.mxu0 0.0
  %1246 = vmatprep.subr.mxu0 0.0
  %1247 = vmatpush1.msra.mxu0 0.0
  %1248 = vmatprep.mubr.f32.mxu0 0.0
  %1249 = vmatmul.mubr.f32.gmra.mrb[0].mxu0 %v1179
  %v1250 = vpop.f32.mrb[0].mxu0
  %v1251 = vadd.f32 %v1177, %v1250
  %v1252 = vpop.f32.mrb[0].mxu0
  %1253 = vmatprep.mubr.f32.mxu0 0.0
  %1254 = vmatmul.mubr.f32.gmra.mrb[0].mxu0 %v1182
  %v1255 = vpop.f32.mrb[0].mxu0
  %v1256 = vadd.f32 %v1177, %v1255
  %v1257 = vpop.f32.mrb[0].mxu0
  %1258 = vdwg.mxu0
  %v1259 = vadd.f32 %v139, %v1251
  %v1260 = vadd.f32 %v144, %v1256
  %v1261 = vld [vmem:[%s1 + $0xfe] sm:$0x1]
  %v1262 = vld [vmem:[%s1 + $0xff] sm:$0x1]
  %v1263 = vsel %vm156, %v1259, 0.0
  %1264 = vadd.xlane.f32.xlu0 %v1263
  %v1265 = vpop.xlane.xlu0 %1264
  %v1266 = vsel %vm156, %v1260, 0.0
  %1267 = vadd.xlane.f32.xlu0 %v1266
  %v1268 = vpop.xlane.xlu0 %1267
  %v1269 = vrcp.pop 32.0
  %v1270 = vmul.f32 %v1265, %v1269
  %v1271 = vmul.f32 %v1268, %v1269
  %v1272 = vsub.f32 %v1259, %v1270
  %v1273 = vsub.f32 %v1260, %v1271
  %v1274 = vmul.f32 %v1272, %v1272
  %v1275 = vmul.f32 %v1273, %v1273
  %v1276 = vsel %vm156, %v1274, 0.0
  %1277 = vadd.xlane.f32.xlu0 %v1276
  %v1278 = vpop.xlane.xlu0 %1277
  %v1279 = vsel %vm156, %v1275, 0.0
  %1280 = vadd.xlane.f32.xlu0 %v1279
  %v1281 = vpop.xlane.xlu0 %1280
  %v1282 = vmul.f32 %v1278, %v1269
  %v1283 = vmul.f32 %v1281, %v1269
  %v1284 = vadd.f32 %v1282, 1e-05
  %v1285 = vadd.f32 %v1283, 1e-05
  %v1286 = vrsqrt.pop %v1284
  %v1287 = vrsqrt.pop %v1285
  %v1288 = vmul.f32 %v1272, %v1286
  %v1289 = vmul.f32 %v1273, %v1287
  %v1290 = vlaneseq
  %v1291 = vshrl.u32 %v1290, 7
  %v1292 = vsub.s32 0, %v1291
  %v1293 = vrot.slane %v1261, %v1292
  %v1294 = vmul.f32 %v1288, %v1293
  %v1295 = vmul.f32 %v1289, %v1293
  %v1296 = vlaneseq
  %v1297 = vshrl.u32 %v1296, 7
  %v1298 = vsub.s32 0, %v1297
  %v1299 = vrot.slane %v1262, %v1298
  %v1300 = vadd.f32 %v1294, %v1299
  %v1301 = vadd.f32 %v1295, %v1299
  %v1302 = vld [vmem:[%s1 + $0x98] sm:$0xff]
  %v1303 = vld [vmem:[%s1 + $0xa0] sm:$0xff]
  %v1304 = vld [vmem:[%s1 + $0xa8] sm:$0xff]
  %v1305 = vld [vmem:[%s1 + $0xb0] sm:$0xff]
  %v1306 = vld [vmem:[%s1 + $0xfc] sm:$0x1]
  %v1307 = vlaneseq
  %v1308 = vshrl.u32 %v1307, 7
  %v1309 = vsub.s32 0, %v1308
  %v1310 = vrot.slane %v1306, %v1309
  %v1312 = vsel %vm156, %v1300, 0
  %v1315 = vsel %vm156, %v1301, 0
  %1317 = vmatprep.subr.mxu0 0.0
  %1318 = vmatpush1.msra.mxu0 %v1302
  %1319 = vmatprep.subr.mxu0 0.0
  %1320 = vmatpush1.msra.mxu0 %v1303
  %1321 = vmatprep.subr.mxu0 0.0
  %1322 = vmatpush1.msra.mxu0 %v1304
  %1323 = vmatprep.subr.mxu0 0.0
  %1324 = vmatpush1.msra.mxu0 %v1305
  %1325 = vmatprep.subr.mxu0 0.0
  %1326 = vmatpush1.msra.mxu0 0.0
  %1327 = vmatprep.subr.mxu0 0.0
  %1328 = vmatpush1.msra.mxu0 0.0
  %1329 = vmatprep.subr.mxu0 0.0
  %1330 = vmatpush1.msra.mxu0 0.0
  %1331 = vmatprep.subr.mxu0 0.0
  %1332 = vmatpush1.msra.mxu0 0.0
  %1333 = vmatprep.subr.mxu0 0.0
  %1334 = vmatpush1.msra.mxu0 0.0
  %1335 = vmatprep.subr.mxu0 0.0
  %1336 = vmatpush1.msra.mxu0 0.0
  %1337 = vmatprep.subr.mxu0 0.0
  %1338 = vmatpush1.msra.mxu0 0.0
  %1339 = vmatprep.subr.mxu0 0.0
  %1340 = vmatpush1.msra.mxu0 0.0
  %1341 = vmatprep.subr.mxu0 0.0
  %1342 = vmatpush1.msra.mxu0 0.0
  %1343 = vmatprep.subr.mxu0 0.0
  %1344 = vmatpush1.msra.mxu0 0.0
  %1345 = vmatprep.subr.mxu0 0.0
  %1346 = vmatpush1.msra.mxu0 0.0
  %1347 = vmatprep.subr.mxu0 0.0
  %1348 = vmatpush1.msra.mxu0 0.0
  %1349 = vmatprep.subr.mxu0 0.0
  %1350 = vmatpush1.msra.mxu0 0.0
  %1351 = vmatprep.subr.mxu0 0.0
  %1352 = vmatpush1.msra.mxu0 0.0
  %1353 = vmatprep.subr.mxu0 0.0
  %1354 = vmatpush1.msra.mxu0 0.0
  %1355 = vmatprep.subr.mxu0 0.0
  %1356 = vmatpush1.msra.mxu0 0.0
  %1357 = vmatprep.subr.mxu0 0.0
  %1358 = vmatpush1.msra.mxu0 0.0
  %1359 = vmatprep.subr.mxu0 0.0
  %1360 = vmatpush1.msra.mxu0 0.0
  %1361 = vmatprep.subr.mxu0 0.0
  %1362 = vmatpush1.msra.mxu0 0.0
  %1363 = vmatprep.subr.mxu0 0.0
  %1364 = vmatpush1.msra.mxu0 0.0
  %1365 = vmatprep.subr.mxu0 0.0
  %1366 = vmatpush1.msra.mxu0 0.0
  %1367 = vmatprep.subr.mxu0 0.0
  %1368 = vmatpush1.msra.mxu0 0.0
  %1369 = vmatprep.subr.mxu0 0.0
  %1370 = vmatpush1.msra.mxu0 0.0
  %1371 = vmatprep.subr.mxu0 0.0
  %1372 = vmatpush1.msra.mxu0 0.0
  %1373 = vmatprep.subr.mxu0 0.0
  %1374 = vmatpush1.msra.mxu0 0.0
  %1375 = vmatprep.subr.mxu0 0.0
  %1376 = vmatpush1.msra.mxu0 0.0
  %1377 = vmatprep.subr.mxu0 0.0
  %1378 = vmatpush1.msra.mxu0 0.0
  %1379 = vmatprep.subr.mxu0 0.0
  %1380 = vmatpush1.msra.mxu0 0.0
  %1381 = vmatprep.mubr.f32.mxu0 0.0
  %1382 = vmatmul.mubr.f32.gmra.mrb[0].mxu0 %v1312
  %v1383 = vpop.f32.mrb[0].mxu0
  %v1384 = vadd.f32 %v1310, %v1383
  %v1385 = vpop.f32.mrb[0].mxu0
  %1386 = vmatprep.mubr.f32.mxu0 0.0
  %1387 = vmatmul.mubr.f32.gmra.mrb[0].mxu0 %v1315
  %v1388 = vpop.f32.mrb[0].mxu0
  %v1389 = vadd.f32 %v1310, %v1388
  %v1390 = vpop.f32.mrb[0].mxu0
  %1391 = vdwg.mxu0
  %v1392 = vmax.f32 %v1384, 0.0
  %v1393 = vmax.f32 %v1389, 0.0
  %v1394 = vld [vmem:[%s1 + $0xb8] sm:$0xff]
  %v1395 = vld [vmem:[%s1 + $0xc0] sm:$0xff]
  %v1396 = vld [vmem:[%s1 + $0xc8] sm:$0xff]
  %v1397 = vld [vmem:[%s1 + $0xd0] sm:$0xff]
  %v1398 = vld [vmem:[%s1 + $0xd8] sm:$0xff]
  %v1399 = vld [vmem:[%s1 + $0xe0] sm:$0xff]
  %v1400 = vld [vmem:[%s1 + $0xe8] sm:$0xff]
  %v1401 = vld [vmem:[%s1 + $0xf0] sm:$0xff]
  %v1402 = vld [vmem:[%s1 + $0xfd] sm:$0x1]
  %v1403 = vlaneseq
  %v1404 = vshrl.u32 %v1403, 7
  %v1405 = vsub.s32 0, %v1404
  %v1406 = vrot.slane %v1402, %v1405
  %vm1407 = vcmask 523264
  %v1409 = vsel %vm1407, %v1392, 0
  %v1412 = vsel %vm1407, %v1393, 0
  %1414 = vmatprep.subr.mxu0 0.0
  %1415 = vmatpush1.msra.mxu0 %v1394
  %1416 = vmatprep.subr.mxu0 0.0
  %1417 = vmatpush1.msra.mxu0 %v1395
  %1418 = vmatprep.subr.mxu0 0.0
  %1419 = vmatpush1.msra.mxu0 %v1396
  %1420 = vmatprep.subr.mxu0 0.0
  %1421 = vmatpush1.msra.mxu0 %v1397
  %1422 = vmatprep.subr.mxu0 0.0
  %1423 = vmatpush1.msra.mxu0 %v1398
  %1424 = vmatprep.subr.mxu0 0.0
  %1425 = vmatpush1.msra.mxu0 %v1399
  %1426 = vmatprep.subr.mxu0 0.0
  %1427 = vmatpush1.msra.mxu0 %v1400
  %1428 = vmatprep.subr.mxu0 0.0
  %1429 = vmatpush1.msra.mxu0 %v1401
  %1430 = vmatprep.subr.mxu0 0.0
  %1431 = vmatpush1.msra.mxu0 0.0
  %1432 = vmatprep.subr.mxu0 0.0
  %1433 = vmatpush1.msra.mxu0 0.0
  %1434 = vmatprep.subr.mxu0 0.0
  %1435 = vmatpush1.msra.mxu0 0.0
  %1436 = vmatprep.subr.mxu0 0.0
  %1437 = vmatpush1.msra.mxu0 0.0
  %1438 = vmatprep.subr.mxu0 0.0
  %1439 = vmatpush1.msra.mxu0 0.0
  %1440 = vmatprep.subr.mxu0 0.0
  %1441 = vmatpush1.msra.mxu0 0.0
  %1442 = vmatprep.subr.mxu0 0.0
  %1443 = vmatpush1.msra.mxu0 0.0
  %1444 = vmatprep.subr.mxu0 0.0
  %1445 = vmatpush1.msra.mxu0 0.0
  %1446 = vmatprep.subr.mxu0 0.0
  %1447 = vmatpush1.msra.mxu0 0.0
  %1448 = vmatprep.subr.mxu0 0.0
  %1449 = vmatpush1.msra.mxu0 0.0
  %1450 = vmatprep.subr.mxu0 0.0
  %1451 = vmatpush1.msra.mxu0 0.0
  %1452 = vmatprep.subr.mxu0 0.0
  %1453 = vmatpush1.msra.mxu0 0.0
  %1454 = vmatprep.subr.mxu0 0.0
  %1455 = vmatpush1.msra.mxu0 0.0
  %1456 = vmatprep.subr.mxu0 0.0
  %1457 = vmatpush1.msra.mxu0 0.0
  %1458 = vmatprep.subr.mxu0 0.0
  %1459 = vmatpush1.msra.mxu0 0.0
  %1460 = vmatprep.subr.mxu0 0.0
  %1461 = vmatpush1.msra.mxu0 0.0
  %1462 = vmatprep.subr.mxu0 0.0
  %1463 = vmatpush1.msra.mxu0 0.0
  %1464 = vmatprep.subr.mxu0 0.0
  %1465 = vmatpush1.msra.mxu0 0.0
  %1466 = vmatprep.subr.mxu0 0.0
  %1467 = vmatpush1.msra.mxu0 0.0
  %1468 = vmatprep.subr.mxu0 0.0
  %1469 = vmatpush1.msra.mxu0 0.0
  %1470 = vmatprep.subr.mxu0 0.0
  %1471 = vmatpush1.msra.mxu0 0.0
  %1472 = vmatprep.subr.mxu0 0.0
  %1473 = vmatpush1.msra.mxu0 0.0
  %1474 = vmatprep.subr.mxu0 0.0
  %1475 = vmatpush1.msra.mxu0 0.0
  %1476 = vmatprep.subr.mxu0 0.0
  %1477 = vmatpush1.msra.mxu0 0.0
  %1478 = vmatprep.mubr.f32.mxu0 0.0
  %1479 = vmatmul.mubr.f32.gmra.mrb[0].mxu0 %v1409
  %v1480 = vpop.f32.mrb[0].mxu0
  %v1481 = vadd.f32 %v1406, %v1480
  %v1482 = vpop.f32.mrb[0].mxu0
  %1483 = vmatprep.mubr.f32.mxu0 0.0
  %1484 = vmatmul.mubr.f32.gmra.mrb[0].mxu0 %v1412
  %v1485 = vpop.f32.mrb[0].mxu0
  %v1486 = vadd.f32 %v1406, %v1485
  %v1487 = vpop.f32.mrb[0].mxu0
  %1488 = vdwg.mxu0
  %v1489 = vadd.f32 %v1300, %v1481
  %v1490 = vadd.f32 %v1301, %v1486
  %v1491 = vld [vmem:[%s1 + $0x100] sm:$0x1]
  %v1492 = vld [vmem:[%s1 + $0x101] sm:$0x1]
  %v1493 = vsel %vm156, %v1489, 0.0
  %1494 = vadd.xlane.f32.xlu0 %v1493
  %v1495 = vpop.xlane.xlu0 %1494
  %v1496 = vsel %vm156, %v1490, 0.0
  %1497 = vadd.xlane.f32.xlu0 %v1496
  %v1498 = vpop.xlane.xlu0 %1497
  %v1499 = vmul.f32 %v1495, %v1269
  %v1500 = vmul.f32 %v1498, %v1269
  %v1501 = vsub.f32 %v1489, %v1499
  %v1502 = vsub.f32 %v1490, %v1500
  %v1503 = vmul.f32 %v1501, %v1501
  %v1504 = vmul.f32 %v1502, %v1502
  %v1505 = vsel %vm156, %v1503, 0.0
  %1506 = vadd.xlane.f32.xlu0 %v1505
  %v1507 = vpop.xlane.xlu0 %1506
  %v1508 = vsel %vm156, %v1504, 0.0
  %1509 = vadd.xlane.f32.xlu0 %v1508
  %v1510 = vpop.xlane.xlu0 %1509
  %v1511 = vmul.f32 %v1507, %v1269
  %v1512 = vmul.f32 %v1510, %v1269
  %v1513 = vadd.f32 %v1511, 1e-05
  %v1514 = vadd.f32 %v1512, 1e-05
  %v1515 = vrsqrt.pop %v1513
  %v1516 = vrsqrt.pop %v1514
  %v1517 = vmul.f32 %v1501, %v1515
  %v1518 = vmul.f32 %v1502, %v1516
  %v1519 = vlaneseq
  %v1520 = vshrl.u32 %v1519, 7
  %v1521 = vsub.s32 0, %v1520
  %v1522 = vrot.slane %v1491, %v1521
  %v1523 = vmul.f32 %v1517, %v1522
  %v1524 = vmul.f32 %v1518, %v1522
  %v1525 = vlaneseq
  %v1526 = vshrl.u32 %v1525, 7
  %v1527 = vsub.s32 0, %v1526
  %v1528 = vrot.slane %v1492, %v1527
  %v1529 = vadd.f32 %v1523, %v1528
  %v1530 = vadd.f32 %v1524, %v1528
  %v1531 = vld [vmem:[%s1 + $0x108] sm:$0xff]
  %v1532 = vld [vmem:[%s1 + $0x110] sm:$0xff]
  %v1533 = vld [vmem:[%s1 + $0x118] sm:$0xff]
  %v1534 = vld [vmem:[%s1 + $0x120] sm:$0xff]
  %v1535 = vld [vmem:[%s1 + $0x1e8] sm:$0x1]
  %v1536 = vlaneseq
  %v1537 = vshrl.u32 %v1536, 7
  %v1538 = vsub.s32 0, %v1537
  %v1539 = vrot.slane %v1535, %v1538
  %v1541 = vsel %vm156, %v1529, 0
  %v1544 = vsel %vm156, %v1530, 0
  %1546 = vmatprep.subr.mxu0 0.0
  %1547 = vmatpush1.msra.mxu0 %v1531
  %1548 = vmatprep.subr.mxu0 0.0
  %1549 = vmatpush1.msra.mxu0 %v1532
  %1550 = vmatprep.subr.mxu0 0.0
  %1551 = vmatpush1.msra.mxu0 %v1533
  %1552 = vmatprep.subr.mxu0 0.0
  %1553 = vmatpush1.msra.mxu0 %v1534
  %1554 = vmatprep.subr.mxu0 0.0
  %1555 = vmatpush1.msra.mxu0 0.0
  %1556 = vmatprep.subr.mxu0 0.0
  %1557 = vmatpush1.msra.mxu0 0.0
  %1558 = vmatprep.subr.mxu0 0.0
  %1559 = vmatpush1.msra.mxu0 0.0
  %1560 = vmatprep.subr.mxu0 0.0
  %1561 = vmatpush1.msra.mxu0 0.0
  %1562 = vmatprep.subr.mxu0 0.0
  %1563 = vmatpush1.msra.mxu0 0.0
  %1564 = vmatprep.subr.mxu0 0.0
  %1565 = vmatpush1.msra.mxu0 0.0
  %1566 = vmatprep.subr.mxu0 0.0
  %1567 = vmatpush1.msra.mxu0 0.0
  %1568 = vmatprep.subr.mxu0 0.0
  %1569 = vmatpush1.msra.mxu0 0.0
  %1570 = vmatprep.subr.mxu0 0.0
  %1571 = vmatpush1.msra.mxu0 0.0
  %1572 = vmatprep.subr.mxu0 0.0
  %1573 = vmatpush1.msra.mxu0 0.0
  %1574 = vmatprep.subr.mxu0 0.0
  %1575 = vmatpush1.msra.mxu0 0.0
  %1576 = vmatprep.subr.mxu0 0.0
  %1577 = vmatpush1.msra.mxu0 0.0
  %1578 = vmatprep.subr.mxu0 0.0
  %1579 = vmatpush1.msra.mxu0 0.0
  %1580 = vmatprep.subr.mxu0 0.0
  %1581 = vmatpush1.msra.mxu0 0.0
  %1582 = vmatprep.subr.mxu0 0.0
  %1583 = vmatpush1.msra.mxu0 0.0
  %1584 = vmatprep.subr.mxu0 0.0
  %1585 = vmatpush1.msra.mxu0 0.0
  %1586 = vmatprep.subr.mxu0 0.0
  %1587 = vmatpush1.msra.mxu0 0.0
  %1588 = vmatprep.subr.mxu0 0.0
  %1589 = vmatpush1.msra.mxu0 0.0
  %1590 = vmatprep.subr.mxu0 0.0
  %1591 = vmatpush1.msra.mxu0 0.0
  %1592 = vmatprep.subr.mxu0 0.0
  %1593 = vmatpush1.msra.mxu0 0.0
  %1594 = vmatprep.subr.mxu0 0.0
  %1595 = vmatpush1.msra.mxu0 0.0
  %1596 = vmatprep.subr.mxu0 0.0
  %1597 = vmatpush1.msra.mxu0 0.0
  %1598 = vmatprep.subr.mxu0 0.0
  %1599 = vmatpush1.msra.mxu0 0.0
  %1600 = vmatprep.subr.mxu0 0.0
  %1601 = vmatpush1.msra.mxu0 0.0
  %1602 = vmatprep.subr.mxu0 0.0
  %1603 = vmatpush1.msra.mxu0 0.0
  %1604 = vmatprep.subr.mxu0 0.0
  %1605 = vmatpush1.msra.mxu0 0.0
  %1606 = vmatprep.subr.mxu0 0.0
  %1607 = vmatpush1.msra.mxu0 0.0
  %1608 = vmatprep.subr.mxu0 0.0
  %1609 = vmatpush1.msra.mxu0 0.0
  %1610 = vmatprep.mubr.f32.mxu0 0.0
  %1611 = vmatmul.mubr.f32.gmra.mrb[0].mxu0 %v1541
  %v1612 = vpop.f32.mrb[0].mxu0
  %v1613 = vadd.f32 %v1539, %v1612
  %v1614 = vpop.f32.mrb[0].mxu0
  %1615 = vmatprep.mubr.f32.mxu0 0.0
  %1616 = vmatmul.mubr.f32.gmra.mrb[0].mxu0 %v1544
  %v1617 = vpop.f32.mrb[0].mxu0
  %v1618 = vadd.f32 %v1539, %v1617
  %v1619 = vpop.f32.mrb[0].mxu0
  %1620 = vdwg.mxu0
  %v1621 = vld [vmem:[%s1 + $0x128] sm:$0xff]
  %v1622 = vld [vmem:[%s1 + $0x130] sm:$0xff]
  %v1623 = vld [vmem:[%s1 + $0x138] sm:$0xff]
  %v1624 = vld [vmem:[%s1 + $0x140] sm:$0xff]
  %v1625 = vld [vmem:[%s1 + $0x1e9] sm:$0x1]
  %v1626 = vlaneseq
  %v1627 = vshrl.u32 %v1626, 7
  %v1628 = vsub.s32 0, %v1627
  %v1629 = vrot.slane %v1625, %v1628
  %1630 = vmatprep.subr.mxu0 0.0
  %1631 = vmatpush1.msra.mxu0 %v1621
  %1632 = vmatprep.subr.mxu0 0.0
  %1633 = vmatpush1.msra.mxu0 %v1622
  %1634 = vmatprep.subr.mxu0 0.0
  %1635 = vmatpush1.msra.mxu0 %v1623
  %1636 = vmatprep.subr.mxu0 0.0
  %1637 = vmatpush1.msra.mxu0 %v1624
  %1638 = vmatprep.subr.mxu0 0.0
  %1639 = vmatpush1.msra.mxu0 0.0
  %1640 = vmatprep.subr.mxu0 0.0
  %1641 = vmatpush1.msra.mxu0 0.0
  %1642 = vmatprep.subr.mxu0 0.0
  %1643 = vmatpush1.msra.mxu0 0.0
  %1644 = vmatprep.subr.mxu0 0.0
  %1645 = vmatpush1.msra.mxu0 0.0
  %1646 = vmatprep.subr.mxu0 0.0
  %1647 = vmatpush1.msra.mxu0 0.0
  %1648 = vmatprep.subr.mxu0 0.0
  %1649 = vmatpush1.msra.mxu0 0.0
  %1650 = vmatprep.subr.mxu0 0.0
  %1651 = vmatpush1.msra.mxu0 0.0
  %1652 = vmatprep.subr.mxu0 0.0
  %1653 = vmatpush1.msra.mxu0 0.0
  %1654 = vmatprep.subr.mxu0 0.0
  %1655 = vmatpush1.msra.mxu0 0.0
  %1656 = vmatprep.subr.mxu0 0.0
  %1657 = vmatpush1.msra.mxu0 0.0
  %1658 = vmatprep.subr.mxu0 0.0
  %1659 = vmatpush1.msra.mxu0 0.0
  %1660 = vmatprep.subr.mxu0 0.0
  %1661 = vmatpush1.msra.mxu0 0.0
  %1662 = vmatprep.subr.mxu0 0.0
  %1663 = vmatpush1.msra.mxu0 0.0
  %1664 = vmatprep.subr.mxu0 0.0
  %1665 = vmatpush1.msra.mxu0 0.0
  %1666 = vmatprep.subr.mxu0 0.0
  %1667 = vmatpush1.msra.mxu0 0.0
  %1668 = vmatprep.subr.mxu0 0.0
  %1669 = vmatpush1.msra.mxu0 0.0
  %1670 = vmatprep.subr.mxu0 0.0
  %1671 = vmatpush1.msra.mxu0 0.0
  %1672 = vmatprep.subr.mxu0 0.0
  %1673 = vmatpush1.msra.mxu0 0.0
  %1674 = vmatprep.subr.mxu0 0.0
  %1675 = vmatpush1.msra.mxu0 0.0
  %1676 = vmatprep.subr.mxu0 0.0
  %1677 = vmatpush1.msra.mxu0 0.0
  %1678 = vmatprep.subr.mxu0 0.0
  %1679 = vmatpush1.msra.mxu0 0.0
  %1680 = vmatprep.subr.mxu0 0.0
  %1681 = vmatpush1.msra.mxu0 0.0
  %1682 = vmatprep.subr.mxu0 0.0
  %1683 = vmatpush1.msra.mxu0 0.0
  %1684 = vmatprep.subr.mxu0 0.0
  %1685 = vmatpush1.msra.mxu0 0.0
  %1686 = vmatprep.subr.mxu0 0.0
  %1687 = vmatpush1.msra.mxu0 0.0
  %1688 = vmatprep.subr.mxu0 0.0
  %1689 = vmatpush1.msra.mxu0 0.0
  %1690 = vmatprep.subr.mxu0 0.0
  %1691 = vmatpush1.msra.mxu0 0.0
  %1692 = vmatprep.subr.mxu0 0.0
  %1693 = vmatpush1.msra.mxu0 0.0
  %1694 = vmatprep.mubr.f32.mxu0 0.0
  %1695 = vmatmul.mubr.f32.gmra.mrb[0].mxu0 %v1541
  %v1696 = vpop.f32.mrb[0].mxu0
  %v1697 = vadd.f32 %v1629, %v1696
  %v1698 = vpop.f32.mrb[0].mxu0
  %1699 = vmatprep.mubr.f32.mxu0 0.0
  %1700 = vmatmul.mubr.f32.gmra.mrb[0].mxu0 %v1544
  %v1701 = vpop.f32.mrb[0].mxu0
  %v1702 = vadd.f32 %v1629, %v1701
  %v1703 = vpop.f32.mrb[0].mxu0
  %1704 = vdwg.mxu0
  %v1705 = vld [vmem:[%s1 + $0x148] sm:$0xff]
  %v1706 = vld [vmem:[%s1 + $0x150] sm:$0xff]
  %v1707 = vld [vmem:[%s1 + $0x158] sm:$0xff]
  %v1708 = vld [vmem:[%s1 + $0x160] sm:$0xff]
  %v1709 = vld [vmem:[%s1 + $0x1ea] sm:$0x1]
  %v1710 = vlaneseq
  %v1711 = vshrl.u32 %v1710, 7
  %v1712 = vsub.s32 0, %v1711
  %v1713 = vrot.slane %v1709, %v1712
  %1714 = vmatprep.subr.mxu0 0.0
  %1715 = vmatpush1.msra.mxu0 %v1705
  %1716 = vmatprep.subr.mxu0 0.0
  %1717 = vmatpush1.msra.mxu0 %v1706
  %1718 = vmatprep.subr.mxu0 0.0
  %1719 = vmatpush1.msra.mxu0 %v1707
  %1720 = vmatprep.subr.mxu0 0.0
  %1721 = vmatpush1.msra.mxu0 %v1708
  %1722 = vmatprep.subr.mxu0 0.0
  %1723 = vmatpush1.msra.mxu0 0.0
  %1724 = vmatprep.subr.mxu0 0.0
  %1725 = vmatpush1.msra.mxu0 0.0
  %1726 = vmatprep.subr.mxu0 0.0
  %1727 = vmatpush1.msra.mxu0 0.0
  %1728 = vmatprep.subr.mxu0 0.0
  %1729 = vmatpush1.msra.mxu0 0.0
  %1730 = vmatprep.subr.mxu0 0.0
  %1731 = vmatpush1.msra.mxu0 0.0
  %1732 = vmatprep.subr.mxu0 0.0
  %1733 = vmatpush1.msra.mxu0 0.0
  %1734 = vmatprep.subr.mxu0 0.0
  %1735 = vmatpush1.msra.mxu0 0.0
  %1736 = vmatprep.subr.mxu0 0.0
  %1737 = vmatpush1.msra.mxu0 0.0
  %1738 = vmatprep.subr.mxu0 0.0
  %1739 = vmatpush1.msra.mxu0 0.0
  %1740 = vmatprep.subr.mxu0 0.0
  %1741 = vmatpush1.msra.mxu0 0.0
  %1742 = vmatprep.subr.mxu0 0.0
  %1743 = vmatpush1.msra.mxu0 0.0
  %1744 = vmatprep.subr.mxu0 0.0
  %1745 = vmatpush1.msra.mxu0 0.0
  %1746 = vmatprep.subr.mxu0 0.0
  %1747 = vmatpush1.msra.mxu0 0.0
  %1748 = vmatprep.subr.mxu0 0.0
  %1749 = vmatpush1.msra.mxu0 0.0
  %1750 = vmatprep.subr.mxu0 0.0
  %1751 = vmatpush1.msra.mxu0 0.0
  %1752 = vmatprep.subr.mxu0 0.0
  %1753 = vmatpush1.msra.mxu0 0.0
  %1754 = vmatprep.subr.mxu0 0.0
  %1755 = vmatpush1.msra.mxu0 0.0
  %1756 = vmatprep.subr.mxu0 0.0
  %1757 = vmatpush1.msra.mxu0 0.0
  %1758 = vmatprep.subr.mxu0 0.0
  %1759 = vmatpush1.msra.mxu0 0.0
  %1760 = vmatprep.subr.mxu0 0.0
  %1761 = vmatpush1.msra.mxu0 0.0
  %1762 = vmatprep.subr.mxu0 0.0
  %1763 = vmatpush1.msra.mxu0 0.0
  %1764 = vmatprep.subr.mxu0 0.0
  %1765 = vmatpush1.msra.mxu0 0.0
  %1766 = vmatprep.subr.mxu0 0.0
  %1767 = vmatpush1.msra.mxu0 0.0
  %1768 = vmatprep.subr.mxu0 0.0
  %1769 = vmatpush1.msra.mxu0 0.0
  %1770 = vmatprep.subr.mxu0 0.0
  %1771 = vmatpush1.msra.mxu0 0.0
  %1772 = vmatprep.subr.mxu0 0.0
  %1773 = vmatpush1.msra.mxu0 0.0
  %1774 = vmatprep.subr.mxu0 0.0
  %1775 = vmatpush1.msra.mxu0 0.0
  %1776 = vmatprep.subr.mxu0 0.0
  %1777 = vmatpush1.msra.mxu0 0.0
  %1778 = vmatprep.mubr.f32.mxu0 0.0
  %1779 = vmatmul.mubr.f32.gmra.mrb[0].mxu0 %v1541
  %v1780 = vpop.f32.mrb[0].mxu0
  %v1781 = vadd.f32 %v1713, %v1780
  %v1782 = vpop.f32.mrb[0].mxu0
  %1783 = vmatprep.mubr.f32.mxu0 0.0
  %1784 = vmatmul.mubr.f32.gmra.mrb[0].mxu0 %v1544
  %v1785 = vpop.f32.mrb[0].mxu0
  %v1786 = vadd.f32 %v1713, %v1785
  %v1787 = vpop.f32.mrb[0].mxu0
  %1788 = vdwg.mxu0
  %v1789 = vmul.f32 %v1613, %v16
  %v1790 = vmul.f32 %v1618, %v16
  %v1792 = vsel %vm156, %v1789, 0
  %v1795 = vsel %vm156, %v1790, 0
  %v1798 = vsel %vm156, %v1697, 0
  %v1801 = vsel %vm156, %v1702, 0
  %1803 = vmatprep.subr.mxu0 0.0
  %1804 = vmatpush1.xpose.msra.mxu0 %v1798
  %1805 = vmatprep.subr.mxu0 0.0
  %1806 = vmatpush1.xpose.msra.mxu0 %v1801
  %1807 = vmatprep.subr.mxu0 0.0
  %1808 = vmatpush1.xpose.msra.mxu0 0.0
  %1809 = vmatprep.subr.mxu0 0.0
  %1810 = vmatpush1.xpose.msra.mxu0 0.0
  %1811 = vmatprep.subr.mxu0 0.0
  %1812 = vmatpush1.xpose.msra.mxu0 0.0
  %1813 = vmatprep.subr.mxu0 0.0
  %1814 = vmatpush1.xpose.msra.mxu0 0.0
  %1815 = vmatprep.subr.mxu0 0.0
  %1816 = vmatpush1.xpose.msra.mxu0 0.0
  %1817 = vmatprep.subr.mxu0 0.0
  %1818 = vmatpush1.xpose.msra.mxu0 0.0
  %1819 = vmatprep.subr.mxu0 0.0
  %1820 = vmatpush1.xpose.msra.mxu0 0.0
  %1821 = vmatprep.subr.mxu0 0.0
  %1822 = vmatpush1.xpose.msra.mxu0 0.0
  %1823 = vmatprep.subr.mxu0 0.0
  %1824 = vmatpush1.xpose.msra.mxu0 0.0
  %1825 = vmatprep.subr.mxu0 0.0
  %1826 = vmatpush1.xpose.msra.mxu0 0.0
  %1827 = vmatprep.subr.mxu0 0.0
  %1828 = vmatpush1.xpose.msra.mxu0 0.0
  %1829 = vmatprep.subr.mxu0 0.0
  %1830 = vmatpush1.xpose.msra.mxu0 0.0
  %1831 = vmatprep.subr.mxu0 0.0
  %1832 = vmatpush1.xpose.msra.mxu0 0.0
  %1833 = vmatprep.subr.mxu0 0.0
  %1834 = vmatpush1.xpose.msra.mxu0 0.0
  %1835 = vmatprep.subr.mxu0 0.0
  %1836 = vmatpush1.xpose.msra.mxu0 0.0
  %1837 = vmatprep.subr.mxu0 0.0
  %1838 = vmatpush1.xpose.msra.mxu0 0.0
  %1839 = vmatprep.subr.mxu0 0.0
  %1840 = vmatpush1.xpose.msra.mxu0 0.0
  %1841 = vmatprep.subr.mxu0 0.0
  %1842 = vmatpush1.xpose.msra.mxu0 0.0
  %1843 = vmatprep.subr.mxu0 0.0
  %1844 = vmatpush1.xpose.msra.mxu0 0.0
  %1845 = vmatprep.subr.mxu0 0.0
  %1846 = vmatpush1.xpose.msra.mxu0 0.0
  %1847 = vmatprep.subr.mxu0 0.0
  %1848 = vmatpush1.xpose.msra.mxu0 0.0
  %1849 = vmatprep.subr.mxu0 0.0
  %1850 = vmatpush1.xpose.msra.mxu0 0.0
  %1851 = vmatprep.subr.mxu0 0.0
  %1852 = vmatpush1.xpose.msra.mxu0 0.0
  %1853 = vmatprep.subr.mxu0 0.0
  %1854 = vmatpush1.xpose.msra.mxu0 0.0
  %1855 = vmatprep.subr.mxu0 0.0
  %1856 = vmatpush1.xpose.msra.mxu0 0.0
  %1857 = vmatprep.subr.mxu0 0.0
  %1858 = vmatpush1.xpose.msra.mxu0 0.0
  %1859 = vmatprep.subr.mxu0 0.0
  %1860 = vmatpush1.xpose.msra.mxu0 0.0
  %1861 = vmatprep.subr.mxu0 0.0
  %1862 = vmatpush1.xpose.msra.mxu0 0.0
  %1863 = vmatprep.subr.mxu0 0.0
  %1864 = vmatpush1.xpose.msra.mxu0 0.0
  %1865 = vmatprep.subr.mxu0 0.0
  %1866 = vmatpush1.xpose.msra.mxu0 0.0
  %1867 = vmatprep.mubr.f32.mxu0 0.0
  %1868 = vmatmul.mubr.f32.gmra.mrb[0].mxu0 %v1792
  %v1869 = vpop.f32.mrb[0].mxu0
  %v1870 = vadd.f32 %v58, %v1869
  %v1871 = vpop.f32.mrb[0].mxu0
  %1872 = vmatprep.mubr.f32.mxu0 0.0
  %1873 = vmatmul.mubr.f32.gmra.mrb[0].mxu0 %v1795
  %v1874 = vpop.f32.mrb[0].mxu0
  %v1875 = vadd.f32 %v59, %v1874
  %v1876 = vpop.f32.mrb[0].mxu0
  %1877 = vdwg.mxu0
  %v1878 = vsel %vm495, %v1870, -inf
  %1879 = vmax.xlane.f32.xlu0 %v1878
  %v1880 = vpop.xlane.xlu0 %1879
  %v1881 = vsel %vm495, %v1875, -inf
  %1882 = vmax.xlane.f32.xlu0 %v1881
  %v1883 = vpop.xlane.xlu0 %1882
  %v1884 = vsub.f32 %v1870, %v1880
  %v1885 = vsub.f32 %v1875, %v1883
  %v1886 = vmul.f32 %v1884, 1.442695
  %v1887 = vpow.pop %v1886
  %v1888 = vmul.f32 %v1885, 1.442695
  %v1889 = vpow.pop %v1888
  %v1890 = vsel %vm495, %v1887, 0.0
  %1891 = vadd.xlane.f32.xlu0 %v1890
  %v1892 = vpop.xlane.xlu0 %1891
  %v1893 = vsel %vm495, %v1889, 0.0
  %1894 = vadd.xlane.f32.xlu0 %v1893
  %v1895 = vpop.xlane.xlu0 %1894
  %v1896 = vrcp.pop %v1892
  %v1897 = vmul.f32 %v1887, %v1896
  %v1898 = vrcp.pop %v1895
  %v1899 = vmul.f32 %v1889, %v1898
  %v1900 = vmul.f32 %v1781, %v16
  %v1901 = vmul.f32 %v1786, %v16
  %v1902 = vmul.f32 %v1613, %v20
  %v1903 = vmul.f32 %v1618, %v20
  %v1905 = vsel %vm156, %v1902, 0
  %v1908 = vsel %vm156, %v1903, 0
  %1910 = vmatprep.subr.mxu0 0.0
  %1911 = vmatpush1.xpose.msra.mxu0 %v1798
  %1912 = vmatprep.subr.mxu0 0.0
  %1913 = vmatpush1.xpose.msra.mxu0 %v1801
  %1914 = vmatprep.subr.mxu0 0.0
  %1915 = vmatpush1.xpose.msra.mxu0 0.0
  %1916 = vmatprep.subr.mxu0 0.0
  %1917 = vmatpush1.xpose.msra.mxu0 0.0
  %1918 = vmatprep.subr.mxu0 0.0
  %1919 = vmatpush1.xpose.msra.mxu0 0.0
  %1920 = vmatprep.subr.mxu0 0.0
  %1921 = vmatpush1.xpose.msra.mxu0 0.0
  %1922 = vmatprep.subr.mxu0 0.0
  %1923 = vmatpush1.xpose.msra.mxu0 0.0
  %1924 = vmatprep.subr.mxu0 0.0
  %1925 = vmatpush1.xpose.msra.mxu0 0.0
  %1926 = vmatprep.subr.mxu0 0.0
  %1927 = vmatpush1.xpose.msra.mxu0 0.0
  %1928 = vmatprep.subr.mxu0 0.0
  %1929 = vmatpush1.xpose.msra.mxu0 0.0
  %1930 = vmatprep.subr.mxu0 0.0
  %1931 = vmatpush1.xpose.msra.mxu0 0.0
  %1932 = vmatprep.subr.mxu0 0.0
  %1933 = vmatpush1.xpose.msra.mxu0 0.0
  %1934 = vmatprep.subr.mxu0 0.0
  %1935 = vmatpush1.xpose.msra.mxu0 0.0
  %1936 = vmatprep.subr.mxu0 0.0
  %1937 = vmatpush1.xpose.msra.mxu0 0.0
  %1938 = vmatprep.subr.mxu0 0.0
  %1939 = vmatpush1.xpose.msra.mxu0 0.0
  %1940 = vmatprep.subr.mxu0 0.0
  %1941 = vmatpush1.xpose.msra.mxu0 0.0
  %1942 = vmatprep.subr.mxu0 0.0
  %1943 = vmatpush1.xpose.msra.mxu0 0.0
  %1944 = vmatprep.subr.mxu0 0.0
  %1945 = vmatpush1.xpose.msra.mxu0 0.0
  %1946 = vmatprep.subr.mxu0 0.0
  %1947 = vmatpush1.xpose.msra.mxu0 0.0
  %1948 = vmatprep.subr.mxu0 0.0
  %1949 = vmatpush1.xpose.msra.mxu0 0.0
  %1950 = vmatprep.subr.mxu0 0.0
  %1951 = vmatpush1.xpose.msra.mxu0 0.0
  %1952 = vmatprep.subr.mxu0 0.0
  %1953 = vmatpush1.xpose.msra.mxu0 0.0
  %1954 = vmatprep.subr.mxu0 0.0
  %1955 = vmatpush1.xpose.msra.mxu0 0.0
  %1956 = vmatprep.subr.mxu0 0.0
  %1957 = vmatpush1.xpose.msra.mxu0 0.0
  %1958 = vmatprep.subr.mxu0 0.0
  %1959 = vmatpush1.xpose.msra.mxu0 0.0
  %1960 = vmatprep.subr.mxu0 0.0
  %1961 = vmatpush1.xpose.msra.mxu0 0.0
  %1962 = vmatprep.subr.mxu0 0.0
  %1963 = vmatpush1.xpose.msra.mxu0 0.0
  %1964 = vmatprep.subr.mxu0 0.0
  %1965 = vmatpush1.xpose.msra.mxu0 0.0
  %1966 = vmatprep.subr.mxu0 0.0
  %1967 = vmatpush1.xpose.msra.mxu0 0.0
  %1968 = vmatprep.subr.mxu0 0.0
  %1969 = vmatpush1.xpose.msra.mxu0 0.0
  %1970 = vmatprep.subr.mxu0 0.0
  %1971 = vmatpush1.xpose.msra.mxu0 0.0
  %1972 = vmatprep.subr.mxu0 0.0
  %1973 = vmatpush1.xpose.msra.mxu0 0.0
  %1974 = vmatprep.mubr.f32.mxu0 0.0
  %1975 = vmatmul.mubr.f32.gmra.mrb[0].mxu0 %v1905
  %v1976 = vpop.f32.mrb[0].mxu0
  %v1977 = vadd.f32 %v58, %v1976
  %v1978 = vpop.f32.mrb[0].mxu0
  %1979 = vmatprep.mubr.f32.mxu0 0.0
  %1980 = vmatmul.mubr.f32.gmra.mrb[0].mxu0 %v1908
  %v1981 = vpop.f32.mrb[0].mxu0
  %v1982 = vadd.f32 %v59, %v1981
  %v1983 = vpop.f32.mrb[0].mxu0
  %1984 = vdwg.mxu0
  %v1985 = vsel %vm495, %v1977, -inf
  %1986 = vmax.xlane.f32.xlu0 %v1985
  %v1987 = vpop.xlane.xlu0 %1986
  %v1988 = vsel %vm495, %v1982, -inf
  %1989 = vmax.xlane.f32.xlu0 %v1988
  %v1990 = vpop.xlane.xlu0 %1989
  %v1991 = vsub.f32 %v1977, %v1987
  %v1992 = vsub.f32 %v1982, %v1990
  %v1993 = vmul.f32 %v1991, 1.442695
  %v1994 = vpow.pop %v1993
  %v1995 = vmul.f32 %v1992, 1.442695
  %v1996 = vpow.pop %v1995
  %v1997 = vsel %vm495, %v1994, 0.0
  %1998 = vadd.xlane.f32.xlu0 %v1997
  %v1999 = vpop.xlane.xlu0 %1998
  %v2000 = vsel %vm495, %v1996, 0.0
  %2001 = vadd.xlane.f32.xlu0 %v2000
  %v2002 = vpop.xlane.xlu0 %2001
  %v2003 = vrcp.pop %v1999
  %v2004 = vmul.f32 %v1994, %v2003
  %v2005 = vrcp.pop %v2002
  %v2006 = vmul.f32 %v1996, %v2005
  %v2007 = vmul.f32 %v1781, %v20
  %v2008 = vmul.f32 %v1786, %v20
  %v2010 = vsel %vm495, %v2004, 0
  %v2013 = vsel %vm495, %v2006, 0
  %2015 = vmatprep.subr.mxu0 0.0
  %2016 = vmatpush1.msra.mxu0 %v2007
  %2017 = vmatprep.subr.mxu0 0.0
  %2018 = vmatpush1.msra.mxu0 %v2008
  %2019 = vmatprep.subr.mxu0 0.0
  %2020 = vmatpush1.msra.mxu0 0.0
  %2021 = vmatprep.subr.mxu0 0.0
  %2022 = vmatpush1.msra.mxu0 0.0
  %2023 = vmatprep.subr.mxu0 0.0
  %2024 = vmatpush1.msra.mxu0 0.0
  %2025 = vmatprep.subr.mxu0 0.0
  %2026 = vmatpush1.msra.mxu0 0.0
  %2027 = vmatprep.subr.mxu0 0.0
  %2028 = vmatpush1.msra.mxu0 0.0
  %2029 = vmatprep.subr.mxu0 0.0
  %2030 = vmatpush1.msra.mxu0 0.0
  %2031 = vmatprep.subr.mxu0 0.0
  %2032 = vmatpush1.msra.mxu0 0.0
  %2033 = vmatprep.subr.mxu0 0.0
  %2034 = vmatpush1.msra.mxu0 0.0
  %2035 = vmatprep.subr.mxu0 0.0
  %2036 = vmatpush1.msra.mxu0 0.0
  %2037 = vmatprep.subr.mxu0 0.0
  %2038 = vmatpush1.msra.mxu0 0.0
  %2039 = vmatprep.subr.mxu0 0.0
  %2040 = vmatpush1.msra.mxu0 0.0
  %2041 = vmatprep.subr.mxu0 0.0
  %2042 = vmatpush1.msra.mxu0 0.0
  %2043 = vmatprep.subr.mxu0 0.0
  %2044 = vmatpush1.msra.mxu0 0.0
  %2045 = vmatprep.subr.mxu0 0.0
  %2046 = vmatpush1.msra.mxu0 0.0
  %2047 = vmatprep.subr.mxu0 0.0
  %2048 = vmatpush1.msra.mxu0 0.0
  %2049 = vmatprep.subr.mxu0 0.0
  %2050 = vmatpush1.msra.mxu0 0.0
  %2051 = vmatprep.subr.mxu0 0.0
  %2052 = vmatpush1.msra.mxu0 0.0
  %2053 = vmatprep.subr.mxu0 0.0
  %2054 = vmatpush1.msra.mxu0 0.0
  %2055 = vmatprep.subr.mxu0 0.0
  %2056 = vmatpush1.msra.mxu0 0.0
  %2057 = vmatprep.subr.mxu0 0.0
  %2058 = vmatpush1.msra.mxu0 0.0
  %2059 = vmatprep.subr.mxu0 0.0
  %2060 = vmatpush1.msra.mxu0 0.0
  %2061 = vmatprep.subr.mxu0 0.0
  %2062 = vmatpush1.msra.mxu0 0.0
  %2063 = vmatprep.subr.mxu0 0.0
  %2064 = vmatpush1.msra.mxu0 0.0
  %2065 = vmatprep.subr.mxu0 0.0
  %2066 = vmatpush1.msra.mxu0 0.0
  %2067 = vmatprep.subr.mxu0 0.0
  %2068 = vmatpush1.msra.mxu0 0.0
  %2069 = vmatprep.subr.mxu0 0.0
  %2070 = vmatpush1.msra.mxu0 0.0
  %2071 = vmatprep.subr.mxu0 0.0
  %2072 = vmatpush1.msra.mxu0 0.0
  %2073 = vmatprep.subr.mxu0 0.0
  %2074 = vmatpush1.msra.mxu0 0.0
  %2075 = vmatprep.subr.mxu0 0.0
  %2076 = vmatpush1.msra.mxu0 0.0
  %2077 = vmatprep.subr.mxu0 0.0
  %2078 = vmatpush1.msra.mxu0 0.0
  %2079 = vmatprep.mubr.f32.mxu0 0.0
  %2080 = vmatmul.mubr.f32.gmra.mrb[0].mxu0 %v2010
  %v2081 = vpop.f32.mrb[0].mxu0
  %v2082 = vadd.f32 0.0, %v2081
  %v2083 = vpop.f32.mrb[0].mxu0
  %2084 = vmatprep.mubr.f32.mxu0 0.0
  %2085 = vmatmul.mubr.f32.gmra.mrb[0].mxu0 %v2013
  %v2086 = vpop.f32.mrb[0].mxu0
  %v2087 = vadd.f32 0.0, %v2086
  %v2088 = vpop.f32.mrb[0].mxu0
  %2089 = vdwg.mxu0
  %v2091 = vsel %vm495, %v1897, 0
  %v2094 = vsel %vm495, %v1899, 0
  %2096 = vmatprep.subr.mxu0 0.0
  %2097 = vmatpush1.msra.mxu0 %v1900
  %2098 = vmatprep.subr.mxu0 0.0
  %2099 = vmatpush1.msra.mxu0 %v1901
  %2100 = vmatprep.subr.mxu0 0.0
  %2101 = vmatpush1.msra.mxu0 0.0
  %2102 = vmatprep.subr.mxu0 0.0
  %2103 = vmatpush1.msra.mxu0 0.0
  %2104 = vmatprep.subr.mxu0 0.0
  %2105 = vmatpush1.msra.mxu0 0.0
  %2106 = vmatprep.subr.mxu0 0.0
  %2107 = vmatpush1.msra.mxu0 0.0
  %2108 = vmatprep.subr.mxu0 0.0
  %2109 = vmatpush1.msra.mxu0 0.0
  %2110 = vmatprep.subr.mxu0 0.0
  %2111 = vmatpush1.msra.mxu0 0.0
  %2112 = vmatprep.subr.mxu0 0.0
  %2113 = vmatpush1.msra.mxu0 0.0
  %2114 = vmatprep.subr.mxu0 0.0
  %2115 = vmatpush1.msra.mxu0 0.0
  %2116 = vmatprep.subr.mxu0 0.0
  %2117 = vmatpush1.msra.mxu0 0.0
  %2118 = vmatprep.subr.mxu0 0.0
  %2119 = vmatpush1.msra.mxu0 0.0
  %2120 = vmatprep.subr.mxu0 0.0
  %2121 = vmatpush1.msra.mxu0 0.0
  %2122 = vmatprep.subr.mxu0 0.0
  %2123 = vmatpush1.msra.mxu0 0.0
  %2124 = vmatprep.subr.mxu0 0.0
  %2125 = vmatpush1.msra.mxu0 0.0
  %2126 = vmatprep.subr.mxu0 0.0
  %2127 = vmatpush1.msra.mxu0 0.0
  %2128 = vmatprep.subr.mxu0 0.0
  %2129 = vmatpush1.msra.mxu0 0.0
  %2130 = vmatprep.subr.mxu0 0.0
  %2131 = vmatpush1.msra.mxu0 0.0
  %2132 = vmatprep.subr.mxu0 0.0
  %2133 = vmatpush1.msra.mxu0 0.0
  %2134 = vmatprep.subr.mxu0 0.0
  %2135 = vmatpush1.msra.mxu0 0.0
  %2136 = vmatprep.subr.mxu0 0.0
  %2137 = vmatpush1.msra.mxu0 0.0
  %2138 = vmatprep.subr.mxu0 0.0
  %2139 = vmatpush1.msra.mxu0 0.0
  %2140 = vmatprep.subr.mxu0 0.0
  %2141 = vmatpush1.msra.mxu0 0.0
  %2142 = vmatprep.subr.mxu0 0.0
  %2143 = vmatpush1.msra.mxu0 0.0
  %2144 = vmatprep.subr.mxu0 0.0
  %2145 = vmatpush1.msra.mxu0 0.0
  %2146 = vmatprep.subr.mxu0 0.0
  %2147 = vmatpush1.msra.mxu0 0.0
  %2148 = vmatprep.subr.mxu0 0.0
  %2149 = vmatpush1.msra.mxu0 0.0
  %2150 = vmatprep.subr.mxu0 0.0
  %2151 = vmatpush1.msra.mxu0 0.0
  %2152 = vmatprep.subr.mxu0 0.0
  %2153 = vmatpush1.msra.mxu0 0.0
  %2154 = vmatprep.subr.mxu0 0.0
  %2155 = vmatpush1.msra.mxu0 0.0
  %2156 = vmatprep.subr.mxu0 0.0
  %2157 = vmatpush1.msra.mxu0 0.0
  %2158 = vmatprep.subr.mxu0 0.0
  %2159 = vmatpush1.msra.mxu0 0.0
  %2160 = vmatprep.mubr.f32.mxu0 0.0
  %2161 = vmatmul.mubr.f32.gmra.mrb[0].mxu0 %v2091
  %v2162 = vpop.f32.mrb[0].mxu0
  %v2163 = vadd.f32 %v2082, %v2162
  %v2164 = vpop.f32.mrb[0].mxu0
  %2165 = vmatprep.mubr.f32.mxu0 0.0
  %2166 = vmatmul.mubr.f32.gmra.mrb[0].mxu0 %v2094
  %v2167 = vpop.f32.mrb[0].mxu0
  %v2168 = vadd.f32 %v2087, %v2167
  %v2169 = vpop.f32.mrb[0].mxu0
  %2170 = vdwg.mxu0
  %v2171 = vmul.f32 %v1613, %v24
  %v2172 = vmul.f32 %v1618, %v24
  %v2174 = vsel %vm156, %v2171, 0
  %v2177 = vsel %vm156, %v2172, 0
  %2179 = vmatprep.subr.mxu0 0.0
  %2180 = vmatpush1.xpose.msra.mxu0 %v1798
  %2181 = vmatprep.subr.mxu0 0.0
  %2182 = vmatpush1.xpose.msra.mxu0 %v1801
  %2183 = vmatprep.subr.mxu0 0.0
  %2184 = vmatpush1.xpose.msra.mxu0 0.0
  %2185 = vmatprep.subr.mxu0 0.0
  %2186 = vmatpush1.xpose.msra.mxu0 0.0
  %2187 = vmatprep.subr.mxu0 0.0
  %2188 = vmatpush1.xpose.msra.mxu0 0.0
  %2189 = vmatprep.subr.mxu0 0.0
  %2190 = vmatpush1.xpose.msra.mxu0 0.0
  %2191 = vmatprep.subr.mxu0 0.0
  %2192 = vmatpush1.xpose.msra.mxu0 0.0
  %2193 = vmatprep.subr.mxu0 0.0
  %2194 = vmatpush1.xpose.msra.mxu0 0.0
  %2195 = vmatprep.subr.mxu0 0.0
  %2196 = vmatpush1.xpose.msra.mxu0 0.0
  %2197 = vmatprep.subr.mxu0 0.0
  %2198 = vmatpush1.xpose.msra.mxu0 0.0
  %2199 = vmatprep.subr.mxu0 0.0
  %2200 = vmatpush1.xpose.msra.mxu0 0.0
  %2201 = vmatprep.subr.mxu0 0.0
  %2202 = vmatpush1.xpose.msra.mxu0 0.0
  %2203 = vmatprep.subr.mxu0 0.0
  %2204 = vmatpush1.xpose.msra.mxu0 0.0
  %2205 = vmatprep.subr.mxu0 0.0
  %2206 = vmatpush1.xpose.msra.mxu0 0.0
  %2207 = vmatprep.subr.mxu0 0.0
  %2208 = vmatpush1.xpose.msra.mxu0 0.0
  %2209 = vmatprep.subr.mxu0 0.0
  %2210 = vmatpush1.xpose.msra.mxu0 0.0
  %2211 = vmatprep.subr.mxu0 0.0
  %2212 = vmatpush1.xpose.msra.mxu0 0.0
  %2213 = vmatprep.subr.mxu0 0.0
  %2214 = vmatpush1.xpose.msra.mxu0 0.0
  %2215 = vmatprep.subr.mxu0 0.0
  %2216 = vmatpush1.xpose.msra.mxu0 0.0
  %2217 = vmatprep.subr.mxu0 0.0
  %2218 = vmatpush1.xpose.msra.mxu0 0.0
  %2219 = vmatprep.subr.mxu0 0.0
  %2220 = vmatpush1.xpose.msra.mxu0 0.0
  %2221 = vmatprep.subr.mxu0 0.0
  %2222 = vmatpush1.xpose.msra.mxu0 0.0
  %2223 = vmatprep.subr.mxu0 0.0
  %2224 = vmatpush1.xpose.msra.mxu0 0.0
  %2225 = vmatprep.subr.mxu0 0.0
  %2226 = vmatpush1.xpose.msra.mxu0 0.0
  %2227 = vmatprep.subr.mxu0 0.0
  %2228 = vmatpush1.xpose.msra.mxu0 0.0
  %2229 = vmatprep.subr.mxu0 0.0
  %2230 = vmatpush1.xpose.msra.mxu0 0.0
  %2231 = vmatprep.subr.mxu0 0.0
  %2232 = vmatpush1.xpose.msra.mxu0 0.0
  %2233 = vmatprep.subr.mxu0 0.0
  %2234 = vmatpush1.xpose.msra.mxu0 0.0
  %2235 = vmatprep.subr.mxu0 0.0
  %2236 = vmatpush1.xpose.msra.mxu0 0.0
  %2237 = vmatprep.subr.mxu0 0.0
  %2238 = vmatpush1.xpose.msra.mxu0 0.0
  %2239 = vmatprep.subr.mxu0 0.0
  %2240 = vmatpush1.xpose.msra.mxu0 0.0
  %2241 = vmatprep.subr.mxu0 0.0
  %2242 = vmatpush1.xpose.msra.mxu0 0.0
  %2243 = vmatprep.mubr.f32.mxu0 0.0
  %2244 = vmatmul.mubr.f32.gmra.mrb[0].mxu0 %v2174
  %v2245 = vpop.f32.mrb[0].mxu0
  %v2246 = vadd.f32 %v58, %v2245
  %v2247 = vpop.f32.mrb[0].mxu0
  %2248 = vmatprep.mubr.f32.mxu0 0.0
  %2249 = vmatmul.mubr.f32.gmra.mrb[0].mxu0 %v2177
  %v2250 = vpop.f32.mrb[0].mxu0
  %v2251 = vadd.f32 %v59, %v2250
  %v2252 = vpop.f32.mrb[0].mxu0
  %2253 = vdwg.mxu0
  %v2254 = vsel %vm495, %v2246, -inf
  %2255 = vmax.xlane.f32.xlu0 %v2254
  %v2256 = vpop.xlane.xlu0 %2255
  %v2257 = vsel %vm495, %v2251, -inf
  %2258 = vmax.xlane.f32.xlu0 %v2257
  %v2259 = vpop.xlane.xlu0 %2258
  %v2260 = vsub.f32 %v2246, %v2256
  %v2261 = vsub.f32 %v2251, %v2259
  %v2262 = vmul.f32 %v2260, 1.442695
  %v2263 = vpow.pop %v2262
  %v2264 = vmul.f32 %v2261, 1.442695
  %v2265 = vpow.pop %v2264
  %v2266 = vsel %vm495, %v2263, 0.0
  %2267 = vadd.xlane.f32.xlu0 %v2266
  %v2268 = vpop.xlane.xlu0 %2267
  %v2269 = vsel %vm495, %v2265, 0.0
  %2270 = vadd.xlane.f32.xlu0 %v2269
  %v2271 = vpop.xlane.xlu0 %2270
  %v2272 = vrcp.pop %v2268
  %v2273 = vmul.f32 %v2263, %v2272
  %v2274 = vrcp.pop %v2271
  %v2275 = vmul.f32 %v2265, %v2274
  %v2276 = vmul.f32 %v1781, %v24
  %v2277 = vmul.f32 %v1786, %v24
  %v2279 = vsel %vm495, %v2273, 0
  %v2282 = vsel %vm495, %v2275, 0
  %2284 = vmatprep.subr.mxu0 0.0
  %2285 = vmatpush1.msra.mxu0 %v2276
  %2286 = vmatprep.subr.mxu0 0.0
  %2287 = vmatpush1.msra.mxu0 %v2277
  %2288 = vmatprep.subr.mxu0 0.0
  %2289 = vmatpush1.msra.mxu0 0.0
  %2290 = vmatprep.subr.mxu0 0.0
  %2291 = vmatpush1.msra.mxu0 0.0
  %2292 = vmatprep.subr.mxu0 0.0
  %2293 = vmatpush1.msra.mxu0 0.0
  %2294 = vmatprep.subr.mxu0 0.0
  %2295 = vmatpush1.msra.mxu0 0.0
  %2296 = vmatprep.subr.mxu0 0.0
  %2297 = vmatpush1.msra.mxu0 0.0
  %2298 = vmatprep.subr.mxu0 0.0
  %2299 = vmatpush1.msra.mxu0 0.0
  %2300 = vmatprep.subr.mxu0 0.0
  %2301 = vmatpush1.msra.mxu0 0.0
  %2302 = vmatprep.subr.mxu0 0.0
  %2303 = vmatpush1.msra.mxu0 0.0
  %2304 = vmatprep.subr.mxu0 0.0
  %2305 = vmatpush1.msra.mxu0 0.0
  %2306 = vmatprep.subr.mxu0 0.0
  %2307 = vmatpush1.msra.mxu0 0.0
  %2308 = vmatprep.subr.mxu0 0.0
  %2309 = vmatpush1.msra.mxu0 0.0
  %2310 = vmatprep.subr.mxu0 0.0
  %2311 = vmatpush1.msra.mxu0 0.0
  %2312 = vmatprep.subr.mxu0 0.0
  %2313 = vmatpush1.msra.mxu0 0.0
  %2314 = vmatprep.subr.mxu0 0.0
  %2315 = vmatpush1.msra.mxu0 0.0
  %2316 = vmatprep.subr.mxu0 0.0
  %2317 = vmatpush1.msra.mxu0 0.0
  %2318 = vmatprep.subr.mxu0 0.0
  %2319 = vmatpush1.msra.mxu0 0.0
  %2320 = vmatprep.subr.mxu0 0.0
  %2321 = vmatpush1.msra.mxu0 0.0
  %2322 = vmatprep.subr.mxu0 0.0
  %2323 = vmatpush1.msra.mxu0 0.0
  %2324 = vmatprep.subr.mxu0 0.0
  %2325 = vmatpush1.msra.mxu0 0.0
  %2326 = vmatprep.subr.mxu0 0.0
  %2327 = vmatpush1.msra.mxu0 0.0
  %2328 = vmatprep.subr.mxu0 0.0
  %2329 = vmatpush1.msra.mxu0 0.0
  %2330 = vmatprep.subr.mxu0 0.0
  %2331 = vmatpush1.msra.mxu0 0.0
  %2332 = vmatprep.subr.mxu0 0.0
  %2333 = vmatpush1.msra.mxu0 0.0
  %2334 = vmatprep.subr.mxu0 0.0
  %2335 = vmatpush1.msra.mxu0 0.0
  %2336 = vmatprep.subr.mxu0 0.0
  %2337 = vmatpush1.msra.mxu0 0.0
  %2338 = vmatprep.subr.mxu0 0.0
  %2339 = vmatpush1.msra.mxu0 0.0
  %2340 = vmatprep.subr.mxu0 0.0
  %2341 = vmatpush1.msra.mxu0 0.0
  %2342 = vmatprep.subr.mxu0 0.0
  %2343 = vmatpush1.msra.mxu0 0.0
  %2344 = vmatprep.subr.mxu0 0.0
  %2345 = vmatpush1.msra.mxu0 0.0
  %2346 = vmatprep.subr.mxu0 0.0
  %2347 = vmatpush1.msra.mxu0 0.0
  %2348 = vmatprep.mubr.f32.mxu0 0.0
  %2349 = vmatmul.mubr.f32.gmra.mrb[0].mxu0 %v2279
  %v2350 = vpop.f32.mrb[0].mxu0
  %v2351 = vadd.f32 0.0, %v2350
  %v2352 = vpop.f32.mrb[0].mxu0
  %2353 = vmatprep.mubr.f32.mxu0 0.0
  %2354 = vmatmul.mubr.f32.gmra.mrb[0].mxu0 %v2282
  %v2355 = vpop.f32.mrb[0].mxu0
  %v2356 = vadd.f32 0.0, %v2355
  %v2357 = vpop.f32.mrb[0].mxu0
  %2358 = vdwg.mxu0
  %v2359 = vadd.f32 %v2163, %v2351
  %v2360 = vadd.f32 %v2168, %v2356
  %v2361 = vmul.f32 %v1613, %v28
  %v2362 = vmul.f32 %v1618, %v28
  %v2364 = vsel %vm156, %v2361, 0
  %v2367 = vsel %vm156, %v2362, 0
  %2369 = vmatprep.subr.mxu0 0.0
  %2370 = vmatpush1.xpose.msra.mxu0 %v1798
  %2371 = vmatprep.subr.mxu0 0.0
  %2372 = vmatpush1.xpose.msra.mxu0 %v1801
  %2373 = vmatprep.subr.mxu0 0.0
  %2374 = vmatpush1.xpose.msra.mxu0 0.0
  %2375 = vmatprep.subr.mxu0 0.0
  %2376 = vmatpush1.xpose.msra.mxu0 0.0
  %2377 = vmatprep.subr.mxu0 0.0
  %2378 = vmatpush1.xpose.msra.mxu0 0.0
  %2379 = vmatprep.subr.mxu0 0.0
  %2380 = vmatpush1.xpose.msra.mxu0 0.0
  %2381 = vmatprep.subr.mxu0 0.0
  %2382 = vmatpush1.xpose.msra.mxu0 0.0
  %2383 = vmatprep.subr.mxu0 0.0
  %2384 = vmatpush1.xpose.msra.mxu0 0.0
  %2385 = vmatprep.subr.mxu0 0.0
  %2386 = vmatpush1.xpose.msra.mxu0 0.0
  %2387 = vmatprep.subr.mxu0 0.0
  %2388 = vmatpush1.xpose.msra.mxu0 0.0
  %2389 = vmatprep.subr.mxu0 0.0
  %2390 = vmatpush1.xpose.msra.mxu0 0.0
  %2391 = vmatprep.subr.mxu0 0.0
  %2392 = vmatpush1.xpose.msra.mxu0 0.0
  %2393 = vmatprep.subr.mxu0 0.0
  %2394 = vmatpush1.xpose.msra.mxu0 0.0
  %2395 = vmatprep.subr.mxu0 0.0
  %2396 = vmatpush1.xpose.msra.mxu0 0.0
  %2397 = vmatprep.subr.mxu0 0.0
  %2398 = vmatpush1.xpose.msra.mxu0 0.0
  %2399 = vmatprep.subr.mxu0 0.0
  %2400 = vmatpush1.xpose.msra.mxu0 0.0
  %2401 = vmatprep.subr.mxu0 0.0
  %2402 = vmatpush1.xpose.msra.mxu0 0.0
  %2403 = vmatprep.subr.mxu0 0.0
  %2404 = vmatpush1.xpose.msra.mxu0 0.0
  %2405 = vmatprep.subr.mxu0 0.0
  %2406 = vmatpush1.xpose.msra.mxu0 0.0
  %2407 = vmatprep.subr.mxu0 0.0
  %2408 = vmatpush1.xpose.msra.mxu0 0.0
  %2409 = vmatprep.subr.mxu0 0.0
  %2410 = vmatpush1.xpose.msra.mxu0 0.0
  %2411 = vmatprep.subr.mxu0 0.0
  %2412 = vmatpush1.xpose.msra.mxu0 0.0
  %2413 = vmatprep.subr.mxu0 0.0
  %2414 = vmatpush1.xpose.msra.mxu0 0.0
  %2415 = vmatprep.subr.mxu0 0.0
  %2416 = vmatpush1.xpose.msra.mxu0 0.0
  %2417 = vmatprep.subr.mxu0 0.0
  %2418 = vmatpush1.xpose.msra.mxu0 0.0
  %2419 = vmatprep.subr.mxu0 0.0
  %2420 = vmatpush1.xpose.msra.mxu0 0.0
  %2421 = vmatprep.subr.mxu0 0.0
  %2422 = vmatpush1.xpose.msra.mxu0 0.0
  %2423 = vmatprep.subr.mxu0 0.0
  %2424 = vmatpush1.xpose.msra.mxu0 0.0
  %2425 = vmatprep.subr.mxu0 0.0
  %2426 = vmatpush1.xpose.msra.mxu0 0.0
  %2427 = vmatprep.subr.mxu0 0.0
  %2428 = vmatpush1.xpose.msra.mxu0 0.0
  %2429 = vmatprep.subr.mxu0 0.0
  %2430 = vmatpush1.xpose.msra.mxu0 0.0
  %2431 = vmatprep.subr.mxu0 0.0
  %2432 = vmatpush1.xpose.msra.mxu0 0.0
  %2433 = vmatprep.mubr.f32.mxu0 0.0
  %2434 = vmatmul.mubr.f32.gmra.mrb[0].mxu0 %v2364
  %v2435 = vpop.f32.mrb[0].mxu0
  %v2436 = vadd.f32 %v58, %v2435
  %v2437 = vpop.f32.mrb[0].mxu0
  %2438 = vmatprep.mubr.f32.mxu0 0.0
  %2439 = vmatmul.mubr.f32.gmra.mrb[0].mxu0 %v2367
  %v2440 = vpop.f32.mrb[0].mxu0
  %v2441 = vadd.f32 %v59, %v2440
  %v2442 = vpop.f32.mrb[0].mxu0
  %2443 = vdwg.mxu0
  %v2444 = vsel %vm495, %v2436, -inf
  %2445 = vmax.xlane.f32.xlu0 %v2444
  %v2446 = vpop.xlane.xlu0 %2445
  %v2447 = vsel %vm495, %v2441, -inf
  %2448 = vmax.xlane.f32.xlu0 %v2447
  %v2449 = vpop.xlane.xlu0 %2448
  %v2450 = vsub.f32 %v2436, %v2446
  %v2451 = vsub.f32 %v2441, %v2449
  %v2452 = vmul.f32 %v2450, 1.442695
  %v2453 = vpow.pop %v2452
  %v2454 = vmul.f32 %v2451, 1.442695
  %v2455 = vpow.pop %v2454
  %v2456 = vsel %vm495, %v2453, 0.0
  %2457 = vadd.xlane.f32.xlu0 %v2456
  %v2458 = vpop.xlane.xlu0 %2457
  %v2459 = vsel %vm495, %v2455, 0.0
  %2460 = vadd.xlane.f32.xlu0 %v2459
  %v2461 = vpop.xlane.xlu0 %2460
  %v2462 = vrcp.pop %v2458
  %v2463 = vmul.f32 %v2453, %v2462
  %v2464 = vrcp.pop %v2461
  %v2465 = vmul.f32 %v2455, %v2464
  %v2466 = vmul.f32 %v1781, %v28
  %v2467 = vmul.f32 %v1786, %v28
  %v2469 = vsel %vm495, %v2463, 0
  %v2472 = vsel %vm495, %v2465, 0
  %2474 = vmatprep.subr.mxu0 0.0
  %2475 = vmatpush1.msra.mxu0 %v2466
  %2476 = vmatprep.subr.mxu0 0.0
  %2477 = vmatpush1.msra.mxu0 %v2467
  %2478 = vmatprep.subr.mxu0 0.0
  %2479 = vmatpush1.msra.mxu0 0.0
  %2480 = vmatprep.subr.mxu0 0.0
  %2481 = vmatpush1.msra.mxu0 0.0
  %2482 = vmatprep.subr.mxu0 0.0
  %2483 = vmatpush1.msra.mxu0 0.0
  %2484 = vmatprep.subr.mxu0 0.0
  %2485 = vmatpush1.msra.mxu0 0.0
  %2486 = vmatprep.subr.mxu0 0.0
  %2487 = vmatpush1.msra.mxu0 0.0
  %2488 = vmatprep.subr.mxu0 0.0
  %2489 = vmatpush1.msra.mxu0 0.0
  %2490 = vmatprep.subr.mxu0 0.0
  %2491 = vmatpush1.msra.mxu0 0.0
  %2492 = vmatprep.subr.mxu0 0.0
  %2493 = vmatpush1.msra.mxu0 0.0
  %2494 = vmatprep.subr.mxu0 0.0
  %2495 = vmatpush1.msra.mxu0 0.0
  %2496 = vmatprep.subr.mxu0 0.0
  %2497 = vmatpush1.msra.mxu0 0.0
  %2498 = vmatprep.subr.mxu0 0.0
  %2499 = vmatpush1.msra.mxu0 0.0
  %2500 = vmatprep.subr.mxu0 0.0
  %2501 = vmatpush1.msra.mxu0 0.0
  %2502 = vmatprep.subr.mxu0 0.0
  %2503 = vmatpush1.msra.mxu0 0.0
  %2504 = vmatprep.subr.mxu0 0.0
  %2505 = vmatpush1.msra.mxu0 0.0
  %2506 = vmatprep.subr.mxu0 0.0
  %2507 = vmatpush1.msra.mxu0 0.0
  %2508 = vmatprep.subr.mxu0 0.0
  %2509 = vmatpush1.msra.mxu0 0.0
  %2510 = vmatprep.subr.mxu0 0.0
  %2511 = vmatpush1.msra.mxu0 0.0
  %2512 = vmatprep.subr.mxu0 0.0
  %2513 = vmatpush1.msra.mxu0 0.0
  %2514 = vmatprep.subr.mxu0 0.0
  %2515 = vmatpush1.msra.mxu0 0.0
  %2516 = vmatprep.subr.mxu0 0.0
  %2517 = vmatpush1.msra.mxu0 0.0
  %2518 = vmatprep.subr.mxu0 0.0
  %2519 = vmatpush1.msra.mxu0 0.0
  %2520 = vmatprep.subr.mxu0 0.0
  %2521 = vmatpush1.msra.mxu0 0.0
  %2522 = vmatprep.subr.mxu0 0.0
  %2523 = vmatpush1.msra.mxu0 0.0
  %2524 = vmatprep.subr.mxu0 0.0
  %2525 = vmatpush1.msra.mxu0 0.0
  %2526 = vmatprep.subr.mxu0 0.0
  %2527 = vmatpush1.msra.mxu0 0.0
  %2528 = vmatprep.subr.mxu0 0.0
  %2529 = vmatpush1.msra.mxu0 0.0
  %2530 = vmatprep.subr.mxu0 0.0
  %2531 = vmatpush1.msra.mxu0 0.0
  %2532 = vmatprep.subr.mxu0 0.0
  %2533 = vmatpush1.msra.mxu0 0.0
  %2534 = vmatprep.subr.mxu0 0.0
  %2535 = vmatpush1.msra.mxu0 0.0
  %2536 = vmatprep.subr.mxu0 0.0
  %2537 = vmatpush1.msra.mxu0 0.0
  %2538 = vmatprep.mubr.f32.mxu0 0.0
  %2539 = vmatmul.mubr.f32.gmra.mrb[0].mxu0 %v2469
  %v2540 = vpop.f32.mrb[0].mxu0
  %v2541 = vadd.f32 0.0, %v2540
  %v2542 = vpop.f32.mrb[0].mxu0
  %2543 = vmatprep.mubr.f32.mxu0 0.0
  %2544 = vmatmul.mubr.f32.gmra.mrb[0].mxu0 %v2472
  %v2545 = vpop.f32.mrb[0].mxu0
  %v2546 = vadd.f32 0.0, %v2545
  %v2547 = vpop.f32.mrb[0].mxu0
  %2548 = vdwg.mxu0
  %v2549 = vadd.f32 %v2359, %v2541
  %v2550 = vadd.f32 %v2360, %v2546
  %v2551 = vld [vmem:[%s1 + $0x168] sm:$0xff]
  %v2552 = vld [vmem:[%s1 + $0x170] sm:$0xff]
  %v2553 = vld [vmem:[%s1 + $0x178] sm:$0xff]
  %v2554 = vld [vmem:[%s1 + $0x180] sm:$0xff]
  %v2555 = vld [vmem:[%s1 + $0x1eb] sm:$0x1]
  %v2556 = vlaneseq
  %v2557 = vshrl.u32 %v2556, 7
  %v2558 = vsub.s32 0, %v2557
  %v2559 = vrot.slane %v2555, %v2558
  %v2561 = vsel %vm156, %v2549, 0
  %v2564 = vsel %vm156, %v2550, 0
  %2566 = vmatprep.subr.mxu0 0.0
  %2567 = vmatpush1.msra.mxu0 %v2551
  %2568 = vmatprep.subr.mxu0 0.0
  %2569 = vmatpush1.msra.mxu0 %v2552
  %2570 = vmatprep.subr.mxu0 0.0
  %2571 = vmatpush1.msra.mxu0 %v2553
  %2572 = vmatprep.subr.mxu0 0.0
  %2573 = vmatpush1.msra.mxu0 %v2554
  %2574 = vmatprep.subr.mxu0 0.0
  %2575 = vmatpush1.msra.mxu0 0.0
  %2576 = vmatprep.subr.mxu0 0.0
  %2577 = vmatpush1.msra.mxu0 0.0
  %2578 = vmatprep.subr.mxu0 0.0
  %2579 = vmatpush1.msra.mxu0 0.0
  %2580 = vmatprep.subr.mxu0 0.0
  %2581 = vmatpush1.msra.mxu0 0.0
  %2582 = vmatprep.subr.mxu0 0.0
  %2583 = vmatpush1.msra.mxu0 0.0
  %2584 = vmatprep.subr.mxu0 0.0
  %2585 = vmatpush1.msra.mxu0 0.0
  %2586 = vmatprep.subr.mxu0 0.0
  %2587 = vmatpush1.msra.mxu0 0.0
  %2588 = vmatprep.subr.mxu0 0.0
  %2589 = vmatpush1.msra.mxu0 0.0
  %2590 = vmatprep.subr.mxu0 0.0
  %2591 = vmatpush1.msra.mxu0 0.0
  %2592 = vmatprep.subr.mxu0 0.0
  %2593 = vmatpush1.msra.mxu0 0.0
  %2594 = vmatprep.subr.mxu0 0.0
  %2595 = vmatpush1.msra.mxu0 0.0
  %2596 = vmatprep.subr.mxu0 0.0
  %2597 = vmatpush1.msra.mxu0 0.0
  %2598 = vmatprep.subr.mxu0 0.0
  %2599 = vmatpush1.msra.mxu0 0.0
  %2600 = vmatprep.subr.mxu0 0.0
  %2601 = vmatpush1.msra.mxu0 0.0
  %2602 = vmatprep.subr.mxu0 0.0
  %2603 = vmatpush1.msra.mxu0 0.0
  %2604 = vmatprep.subr.mxu0 0.0
  %2605 = vmatpush1.msra.mxu0 0.0
  %2606 = vmatprep.subr.mxu0 0.0
  %2607 = vmatpush1.msra.mxu0 0.0
  %2608 = vmatprep.subr.mxu0 0.0
  %2609 = vmatpush1.msra.mxu0 0.0
  %2610 = vmatprep.subr.mxu0 0.0
  %2611 = vmatpush1.msra.mxu0 0.0
  %2612 = vmatprep.subr.mxu0 0.0
  %2613 = vmatpush1.msra.mxu0 0.0
  %2614 = vmatprep.subr.mxu0 0.0
  %2615 = vmatpush1.msra.mxu0 0.0
  %2616 = vmatprep.subr.mxu0 0.0
  %2617 = vmatpush1.msra.mxu0 0.0
  %2618 = vmatprep.subr.mxu0 0.0
  %2619 = vmatpush1.msra.mxu0 0.0
  %2620 = vmatprep.subr.mxu0 0.0
  %2621 = vmatpush1.msra.mxu0 0.0
  %2622 = vmatprep.subr.mxu0 0.0
  %2623 = vmatpush1.msra.mxu0 0.0
  %2624 = vmatprep.subr.mxu0 0.0
  %2625 = vmatpush1.msra.mxu0 0.0
  %2626 = vmatprep.subr.mxu0 0.0
  %2627 = vmatpush1.msra.mxu0 0.0
  %2628 = vmatprep.subr.mxu0 0.0
  %2629 = vmatpush1.msra.mxu0 0.0
  %2630 = vmatprep.mubr.f32.mxu0 0.0
  %2631 = vmatmul.mubr.f32.gmra.mrb[0].mxu0 %v2561
  %v2632 = vpop.f32.mrb[0].mxu0
  %v2633 = vadd.f32 %v2559, %v2632
  %v2634 = vpop.f32.mrb[0].mxu0
  %2635 = vmatprep.mubr.f32.mxu0 0.0
  %2636 = vmatmul.mubr.f32.gmra.mrb[0].mxu0 %v2564
  %v2637 = vpop.f32.mrb[0].mxu0
  %v2638 = vadd.f32 %v2559, %v2637
  %v2639 = vpop.f32.mrb[0].mxu0
  %2640 = vdwg.mxu0
  %v2641 = vadd.f32 %v1529, %v2633
  %v2642 = vadd.f32 %v1530, %v2638
  %v2643 = vld [vmem:[%s1 + $0x1ee] sm:$0x1]
  %v2644 = vld [vmem:[%s1 + $0x1ef] sm:$0x1]
  %v2645 = vsel %vm156, %v2641, 0.0
  %2646 = vadd.xlane.f32.xlu0 %v2645
  %v2647 = vpop.xlane.xlu0 %2646
  %v2648 = vsel %vm156, %v2642, 0.0
  %2649 = vadd.xlane.f32.xlu0 %v2648
  %v2650 = vpop.xlane.xlu0 %2649
  %v2651 = vmul.f32 %v2647, %v1269
  %v2652 = vmul.f32 %v2650, %v1269
  %v2653 = vsub.f32 %v2641, %v2651
  %v2654 = vsub.f32 %v2642, %v2652
  %v2655 = vmul.f32 %v2653, %v2653
  %v2656 = vmul.f32 %v2654, %v2654
  %v2657 = vsel %vm156, %v2655, 0.0
  %2658 = vadd.xlane.f32.xlu0 %v2657
  %v2659 = vpop.xlane.xlu0 %2658
  %v2660 = vsel %vm156, %v2656, 0.0
  %2661 = vadd.xlane.f32.xlu0 %v2660
  %v2662 = vpop.xlane.xlu0 %2661
  %v2663 = vmul.f32 %v2659, %v1269
  %v2664 = vmul.f32 %v2662, %v1269
  %v2665 = vadd.f32 %v2663, 1e-05
  %v2666 = vadd.f32 %v2664, 1e-05
  %v2667 = vrsqrt.pop %v2665
  %v2668 = vrsqrt.pop %v2666
  %v2669 = vmul.f32 %v2653, %v2667
  %v2670 = vmul.f32 %v2654, %v2668
  %v2671 = vlaneseq
  %v2672 = vshrl.u32 %v2671, 7
  %v2673 = vsub.s32 0, %v2672
  %v2674 = vrot.slane %v2643, %v2673
  %v2675 = vmul.f32 %v2669, %v2674
  %v2676 = vmul.f32 %v2670, %v2674
  %v2677 = vlaneseq
  %v2678 = vshrl.u32 %v2677, 7
  %v2679 = vsub.s32 0, %v2678
  %v2680 = vrot.slane %v2644, %v2679
  %v2681 = vadd.f32 %v2675, %v2680
  %v2682 = vadd.f32 %v2676, %v2680
  %v2683 = vld [vmem:[%s1 + $0x188] sm:$0xff]
  %v2684 = vld [vmem:[%s1 + $0x190] sm:$0xff]
  %v2685 = vld [vmem:[%s1 + $0x198] sm:$0xff]
  %v2686 = vld [vmem:[%s1 + $0x1a0] sm:$0xff]
  %v2687 = vld [vmem:[%s1 + $0x1ec] sm:$0x1]
  %v2688 = vlaneseq
  %v2689 = vshrl.u32 %v2688, 7
  %v2690 = vsub.s32 0, %v2689
  %v2691 = vrot.slane %v2687, %v2690
  %v2693 = vsel %vm156, %v2681, 0
  %v2696 = vsel %vm156, %v2682, 0
  %2698 = vmatprep.subr.mxu0 0.0
  %2699 = vmatpush1.msra.mxu0 %v2683
  %2700 = vmatprep.subr.mxu0 0.0
  %2701 = vmatpush1.msra.mxu0 %v2684
  %2702 = vmatprep.subr.mxu0 0.0
  %2703 = vmatpush1.msra.mxu0 %v2685
  %2704 = vmatprep.subr.mxu0 0.0
  %2705 = vmatpush1.msra.mxu0 %v2686
  %2706 = vmatprep.subr.mxu0 0.0
  %2707 = vmatpush1.msra.mxu0 0.0
  %2708 = vmatprep.subr.mxu0 0.0
  %2709 = vmatpush1.msra.mxu0 0.0
  %2710 = vmatprep.subr.mxu0 0.0
  %2711 = vmatpush1.msra.mxu0 0.0
  %2712 = vmatprep.subr.mxu0 0.0
  %2713 = vmatpush1.msra.mxu0 0.0
  %2714 = vmatprep.subr.mxu0 0.0
  %2715 = vmatpush1.msra.mxu0 0.0
  %2716 = vmatprep.subr.mxu0 0.0
  %2717 = vmatpush1.msra.mxu0 0.0
  %2718 = vmatprep.subr.mxu0 0.0
  %2719 = vmatpush1.msra.mxu0 0.0
  %2720 = vmatprep.subr.mxu0 0.0
  %2721 = vmatpush1.msra.mxu0 0.0
  %2722 = vmatprep.subr.mxu0 0.0
  %2723 = vmatpush1.msra.mxu0 0.0
  %2724 = vmatprep.subr.mxu0 0.0
  %2725 = vmatpush1.msra.mxu0 0.0
  %2726 = vmatprep.subr.mxu0 0.0
  %2727 = vmatpush1.msra.mxu0 0.0
  %2728 = vmatprep.subr.mxu0 0.0
  %2729 = vmatpush1.msra.mxu0 0.0
  %2730 = vmatprep.subr.mxu0 0.0
  %2731 = vmatpush1.msra.mxu0 0.0
  %2732 = vmatprep.subr.mxu0 0.0
  %2733 = vmatpush1.msra.mxu0 0.0
  %2734 = vmatprep.subr.mxu0 0.0
  %2735 = vmatpush1.msra.mxu0 0.0
  %2736 = vmatprep.subr.mxu0 0.0
  %2737 = vmatpush1.msra.mxu0 0.0
  %2738 = vmatprep.subr.mxu0 0.0
  %2739 = vmatpush1.msra.mxu0 0.0
  %2740 = vmatprep.subr.mxu0 0.0
  %2741 = vmatpush1.msra.mxu0 0.0
  %2742 = vmatprep.subr.mxu0 0.0
  %2743 = vmatpush1.msra.mxu0 0.0
  %2744 = vmatprep.subr.mxu0 0.0
  %2745 = vmatpush1.msra.mxu0 0.0
  %2746 = vmatprep.subr.mxu0 0.0
  %2747 = vmatpush1.msra.mxu0 0.0
  %2748 = vmatprep.subr.mxu0 0.0
  %2749 = vmatpush1.msra.mxu0 0.0
  %2750 = vmatprep.subr.mxu0 0.0
  %2751 = vmatpush1.msra.mxu0 0.0
  %2752 = vmatprep.subr.mxu0 0.0
  %2753 = vmatpush1.msra.mxu0 0.0
  %2754 = vmatprep.subr.mxu0 0.0
  %2755 = vmatpush1.msra.mxu0 0.0
  %2756 = vmatprep.subr.mxu0 0.0
  %2757 = vmatpush1.msra.mxu0 0.0
  %2758 = vmatprep.subr.mxu0 0.0
  %2759 = vmatpush1.msra.mxu0 0.0
  %2760 = vmatprep.subr.mxu0 0.0
  %2761 = vmatpush1.msra.mxu0 0.0
  %2762 = vmatprep.mubr.f32.mxu0 0.0
  %2763 = vmatmul.mubr.f32.gmra.mrb[0].mxu0 %v2693
  %v2764 = vpop.f32.mrb[0].mxu0
  %v2765 = vadd.f32 %v2691, %v2764
  %v2766 = vpop.f32.mrb[0].mxu0
  %2767 = vmatprep.mubr.f32.mxu0 0.0
  %2768 = vmatmul.mubr.f32.gmra.mrb[0].mxu0 %v2696
  %v2769 = vpop.f32.mrb[0].mxu0
  %v2770 = vadd.f32 %v2691, %v2769
  %v2771 = vpop.f32.mrb[0].mxu0
  %2772 = vdwg.mxu0
  %v2773 = vmax.f32 %v2765, 0.0
  %v2774 = vmax.f32 %v2770, 0.0
  %v2775 = vld [vmem:[%s1 + $0x1a8] sm:$0xff]
  %v2776 = vld [vmem:[%s1 + $0x1b0] sm:$0xff]
  %v2777 = vld [vmem:[%s1 + $0x1b8] sm:$0xff]
  %v2778 = vld [vmem:[%s1 + $0x1c0] sm:$0xff]
  %v2779 = vld [vmem:[%s1 + $0x1c8] sm:$0xff]
  %v2780 = vld [vmem:[%s1 + $0x1d0] sm:$0xff]
  %v2781 = vld [vmem:[%s1 + $0x1d8] sm:$0xff]
  %v2782 = vld [vmem:[%s1 + $0x1e0] sm:$0xff]
  %v2783 = vld [vmem:[%s1 + $0x1ed] sm:$0x1]
  %v2784 = vlaneseq
  %v2785 = vshrl.u32 %v2784, 7
  %v2786 = vsub.s32 0, %v2785
  %v2787 = vrot.slane %v2783, %v2786
  %v2789 = vsel %vm1407, %v2773, 0
  %v2792 = vsel %vm1407, %v2774, 0
  %2794 = vmatprep.subr.mxu0 0.0
  %2795 = vmatpush1.msra.mxu0 %v2775
  %2796 = vmatprep.subr.mxu0 0.0
  %2797 = vmatpush1.msra.mxu0 %v2776
  %2798 = vmatprep.subr.mxu0 0.0
  %2799 = vmatpush1.msra.mxu0 %v2777
  %2800 = vmatprep.subr.mxu0 0.0
  %2801 = vmatpush1.msra.mxu0 %v2778
  %2802 = vmatprep.subr.mxu0 0.0
  %2803 = vmatpush1.msra.mxu0 %v2779
  %2804 = vmatprep.subr.mxu0 0.0
  %2805 = vmatpush1.msra.mxu0 %v2780
  %2806 = vmatprep.subr.mxu0 0.0
  %2807 = vmatpush1.msra.mxu0 %v2781
  %2808 = vmatprep.subr.mxu0 0.0
  %2809 = vmatpush1.msra.mxu0 %v2782
  %2810 = vmatprep.subr.mxu0 0.0
  %2811 = vmatpush1.msra.mxu0 0.0
  %2812 = vmatprep.subr.mxu0 0.0
  %2813 = vmatpush1.msra.mxu0 0.0
  %2814 = vmatprep.subr.mxu0 0.0
  %2815 = vmatpush1.msra.mxu0 0.0
  %2816 = vmatprep.subr.mxu0 0.0
  %2817 = vmatpush1.msra.mxu0 0.0
  %2818 = vmatprep.subr.mxu0 0.0
  %2819 = vmatpush1.msra.mxu0 0.0
  %2820 = vmatprep.subr.mxu0 0.0
  %2821 = vmatpush1.msra.mxu0 0.0
  %2822 = vmatprep.subr.mxu0 0.0
  %2823 = vmatpush1.msra.mxu0 0.0
  %2824 = vmatprep.subr.mxu0 0.0
  %2825 = vmatpush1.msra.mxu0 0.0
  %2826 = vmatprep.subr.mxu0 0.0
  %2827 = vmatpush1.msra.mxu0 0.0
  %2828 = vmatprep.subr.mxu0 0.0
  %2829 = vmatpush1.msra.mxu0 0.0
  %2830 = vmatprep.subr.mxu0 0.0
  %2831 = vmatpush1.msra.mxu0 0.0
  %2832 = vmatprep.subr.mxu0 0.0
  %2833 = vmatpush1.msra.mxu0 0.0
  %2834 = vmatprep.subr.mxu0 0.0
  %2835 = vmatpush1.msra.mxu0 0.0
  %2836 = vmatprep.subr.mxu0 0.0
  %2837 = vmatpush1.msra.mxu0 0.0
  %2838 = vmatprep.subr.mxu0 0.0
  %2839 = vmatpush1.msra.mxu0 0.0
  %2840 = vmatprep.subr.mxu0 0.0
  %2841 = vmatpush1.msra.mxu0 0.0
  %2842 = vmatprep.subr.mxu0 0.0
  %2843 = vmatpush1.msra.mxu0 0.0
  %2844 = vmatprep.subr.mxu0 0.0
  %2845 = vmatpush1.msra.mxu0 0.0
  %2846 = vmatprep.subr.mxu0 0.0
  %2847 = vmatpush1.msra.mxu0 0.0
  %2848 = vmatprep.subr.mxu0 0.0
  %2849 = vmatpush1.msra.mxu0 0.0
  %2850 = vmatprep.subr.mxu0 0.0
  %2851 = vmatpush1.msra.mxu0 0.0
  %2852 = vmatprep.subr.mxu0 0.0
  %2853 = vmatpush1.msra.mxu0 0.0
  %2854 = vmatprep.subr.mxu0 0.0
  %2855 = vmatpush1.msra.mxu0 0.0
  %2856 = vmatprep.subr.mxu0 0.0
  %2857 = vmatpush1.msra.mxu0 0.0
  %2858 = vmatprep.mubr.f32.mxu0 0.0
  %2859 = vmatmul.mubr.f32.gmra.mrb[0].mxu0 %v2789
  %v2860 = vpop.f32.mrb[0].mxu0
  %v2861 = vadd.f32 %v2787, %v2860
  %v2862 = vpop.f32.mrb[0].mxu0
  %2863 = vmatprep.mubr.f32.mxu0 0.0
  %2864 = vmatmul.mubr.f32.gmra.mrb[0].mxu0 %v2792
  %v2865 = vpop.f32.mrb[0].mxu0
  %v2866 = vadd.f32 %v2787, %v2865
  %v2867 = vpop.f32.mrb[0].mxu0
  %2868 = vdwg.mxu0
  %v2869 = vadd.f32 %v2681, %v2861
  %v2870 = vadd.f32 %v2682, %v2866
  %v2871 = vld [vmem:[%s1 + $0x1f0] sm:$0x1]
  %v2872 = vld [vmem:[%s1 + $0x1f1] sm:$0x1]
  %v2873 = vsel %vm156, %v2869, 0.0
  %2874 = vadd.xlane.f32.xlu0 %v2873
  %v2875 = vpop.xlane.xlu0 %2874
  %v2876 = vsel %vm156, %v2870, 0.0
  %2877 = vadd.xlane.f32.xlu0 %v2876
  %v2878 = vpop.xlane.xlu0 %2877
  %v2879 = vmul.f32 %v2875, %v1269
  %v2880 = vmul.f32 %v2878, %v1269
  %v2881 = vsub.f32 %v2869, %v2879
  %v2882 = vsub.f32 %v2870, %v2880
  %v2883 = vmul.f32 %v2881, %v2881
  %v2884 = vmul.f32 %v2882, %v2882
  %v2885 = vsel %vm156, %v2883, 0.0
  %2886 = vadd.xlane.f32.xlu0 %v2885
  %v2887 = vpop.xlane.xlu0 %2886
  %v2888 = vsel %vm156, %v2884, 0.0
  %2889 = vadd.xlane.f32.xlu0 %v2888
  %v2890 = vpop.xlane.xlu0 %2889
  %v2891 = vmul.f32 %v2887, %v1269
  %v2892 = vmul.f32 %v2890, %v1269
  %v2893 = vadd.f32 %v2891, 1e-05
  %v2894 = vadd.f32 %v2892, 1e-05
  %v2895 = vrsqrt.pop %v2893
  %v2896 = vrsqrt.pop %v2894
  %v2897 = vmul.f32 %v2881, %v2895
  %v2898 = vmul.f32 %v2882, %v2896
  %v2899 = vlaneseq
  %v2900 = vshrl.u32 %v2899, 7
  %v2901 = vsub.s32 0, %v2900
  %v2902 = vrot.slane %v2871, %v2901
  %v2903 = vmul.f32 %v2897, %v2902
  %v2904 = vmul.f32 %v2898, %v2902
  %v2905 = vlaneseq
  %v2906 = vshrl.u32 %v2905, 7
  %v2907 = vsub.s32 0, %v2906
  %v2908 = vrot.slane %v2872, %v2907
  %v2909 = vadd.f32 %v2903, %v2908
  %v2910 = vadd.f32 %v2904, %v2908
  %v2911 = vmul.u32 %v30, 8
  %v2912 = vadd.s32 %v2911, 7
  %vm2913 = vcmp.eq.s32.totalorder %v12, %v2912
  %v2914 = vsel %vm2913, 1.0, 0.0
  %v2916 = vsel %vm495, %v2914, 0
  %2918 = vmatprep.subr.mxu0 0.0
  %2919 = vmatpush1.msra.mxu0 %v2909
  %2920 = vmatprep.subr.mxu0 0.0
  %2921 = vmatpush1.msra.mxu0 %v2910
  %2922 = vmatprep.subr.mxu0 0.0
  %2923 = vmatpush1.msra.mxu0 0.0
  %2924 = vmatprep.subr.mxu0 0.0
  %2925 = vmatpush1.msra.mxu0 0.0
  %2926 = vmatprep.subr.mxu0 0.0
  %2927 = vmatpush1.msra.mxu0 0.0
  %2928 = vmatprep.subr.mxu0 0.0
  %2929 = vmatpush1.msra.mxu0 0.0
  %2930 = vmatprep.subr.mxu0 0.0
  %2931 = vmatpush1.msra.mxu0 0.0
  %2932 = vmatprep.subr.mxu0 0.0
  %2933 = vmatpush1.msra.mxu0 0.0
  %2934 = vmatprep.subr.mxu0 0.0
  %2935 = vmatpush1.msra.mxu0 0.0
  %2936 = vmatprep.subr.mxu0 0.0
  %2937 = vmatpush1.msra.mxu0 0.0
  %2938 = vmatprep.subr.mxu0 0.0
  %2939 = vmatpush1.msra.mxu0 0.0
  %2940 = vmatprep.subr.mxu0 0.0
  %2941 = vmatpush1.msra.mxu0 0.0
  %2942 = vmatprep.subr.mxu0 0.0
  %2943 = vmatpush1.msra.mxu0 0.0
  %2944 = vmatprep.subr.mxu0 0.0
  %2945 = vmatpush1.msra.mxu0 0.0
  %2946 = vmatprep.subr.mxu0 0.0
  %2947 = vmatpush1.msra.mxu0 0.0
  %2948 = vmatprep.subr.mxu0 0.0
  %2949 = vmatpush1.msra.mxu0 0.0
  %2950 = vmatprep.subr.mxu0 0.0
  %2951 = vmatpush1.msra.mxu0 0.0
  %2952 = vmatprep.subr.mxu0 0.0
  %2953 = vmatpush1.msra.mxu0 0.0
  %2954 = vmatprep.subr.mxu0 0.0
  %2955 = vmatpush1.msra.mxu0 0.0
  %2956 = vmatprep.subr.mxu0 0.0
  %2957 = vmatpush1.msra.mxu0 0.0
  %2958 = vmatprep.subr.mxu0 0.0
  %2959 = vmatpush1.msra.mxu0 0.0
  %2960 = vmatprep.subr.mxu0 0.0
  %2961 = vmatpush1.msra.mxu0 0.0
  %2962 = vmatprep.subr.mxu0 0.0
  %2963 = vmatpush1.msra.mxu0 0.0
  %2964 = vmatprep.subr.mxu0 0.0
  %2965 = vmatpush1.msra.mxu0 0.0
  %2966 = vmatprep.subr.mxu0 0.0
  %2967 = vmatpush1.msra.mxu0 0.0
  %2968 = vmatprep.subr.mxu0 0.0
  %2969 = vmatpush1.msra.mxu0 0.0
  %2970 = vmatprep.subr.mxu0 0.0
  %2971 = vmatpush1.msra.mxu0 0.0
  %2972 = vmatprep.subr.mxu0 0.0
  %2973 = vmatpush1.msra.mxu0 0.0
  %2974 = vmatprep.subr.mxu0 0.0
  %2975 = vmatpush1.msra.mxu0 0.0
  %2976 = vmatprep.subr.mxu0 0.0
  %2977 = vmatpush1.msra.mxu0 0.0
  %2978 = vmatprep.subr.mxu0 0.0
  %2979 = vmatpush1.msra.mxu0 0.0
  %2980 = vmatprep.subr.mxu0 0.0
  %2981 = vmatpush1.msra.mxu0 0.0
  %2982 = vmatprep.mubr.f32.mxu0 0.0
  %2983 = vmatmul.mubr.f32.gmra.mrb[0].mxu0 %v2916
  %v2984 = vpop.f32.mrb[0].mxu0
  %v2985 = vadd.f32 0.0, %v2984
  %v2986 = vpop.f32.mrb[0].mxu0
  %2987 = vdwg.mxu0
  %v2988 = vld [vmem:[%s1 + $0x1f8] sm:$0xff]
  %v2989 = vld [vmem:[%s1 + $0x200] sm:$0xff]
  %v2990 = vld [vmem:[%s1 + $0x208] sm:$0xff]
  %v2991 = vld [vmem:[%s1 + $0x210] sm:$0xff]
  %v2992 = vld [vmem:[%s1 + $0x238] sm:$0x1]
  %v2993 = vlaneseq
  %v2994 = vshrl.u32 %v2993, 7
  %v2995 = vsub.s32 0, %v2994
  %v2996 = vrot.slane %v2992, %v2995
  %v2998 = vsel %vm156, %v2985, 0
  %3000 = vmatprep.subr.mxu0 0.0
  %3001 = vmatpush1.msra.mxu0 %v2988
  %3002 = vmatprep.subr.mxu0 0.0
  %3003 = vmatpush1.msra.mxu0 %v2989
  %3004 = vmatprep.subr.mxu0 0.0
  %3005 = vmatpush1.msra.mxu0 %v2990
  %3006 = vmatprep.subr.mxu0 0.0
  %3007 = vmatpush1.msra.mxu0 %v2991
  %3008 = vmatprep.subr.mxu0 0.0
  %3009 = vmatpush1.msra.mxu0 0.0
  %3010 = vmatprep.subr.mxu0 0.0
  %3011 = vmatpush1.msra.mxu0 0.0
  %3012 = vmatprep.subr.mxu0 0.0
  %3013 = vmatpush1.msra.mxu0 0.0
  %3014 = vmatprep.subr.mxu0 0.0
  %3015 = vmatpush1.msra.mxu0 0.0
  %3016 = vmatprep.subr.mxu0 0.0
  %3017 = vmatpush1.msra.mxu0 0.0
  %3018 = vmatprep.subr.mxu0 0.0
  %3019 = vmatpush1.msra.mxu0 0.0
  %3020 = vmatprep.subr.mxu0 0.0
  %3021 = vmatpush1.msra.mxu0 0.0
  %3022 = vmatprep.subr.mxu0 0.0
  %3023 = vmatpush1.msra.mxu0 0.0
  %3024 = vmatprep.subr.mxu0 0.0
  %3025 = vmatpush1.msra.mxu0 0.0
  %3026 = vmatprep.subr.mxu0 0.0
  %3027 = vmatpush1.msra.mxu0 0.0
  %3028 = vmatprep.subr.mxu0 0.0
  %3029 = vmatpush1.msra.mxu0 0.0
  %3030 = vmatprep.subr.mxu0 0.0
  %3031 = vmatpush1.msra.mxu0 0.0
  %3032 = vmatprep.subr.mxu0 0.0
  %3033 = vmatpush1.msra.mxu0 0.0
  %3034 = vmatprep.subr.mxu0 0.0
  %3035 = vmatpush1.msra.mxu0 0.0
  %3036 = vmatprep.subr.mxu0 0.0
  %3037 = vmatpush1.msra.mxu0 0.0
  %3038 = vmatprep.subr.mxu0 0.0
  %3039 = vmatpush1.msra.mxu0 0.0
  %3040 = vmatprep.subr.mxu0 0.0
  %3041 = vmatpush1.msra.mxu0 0.0
  %3042 = vmatprep.subr.mxu0 0.0
  %3043 = vmatpush1.msra.mxu0 0.0
  %3044 = vmatprep.subr.mxu0 0.0
  %3045 = vmatpush1.msra.mxu0 0.0
  %3046 = vmatprep.subr.mxu0 0.0
  %3047 = vmatpush1.msra.mxu0 0.0
  %3048 = vmatprep.subr.mxu0 0.0
  %3049 = vmatpush1.msra.mxu0 0.0
  %3050 = vmatprep.subr.mxu0 0.0
  %3051 = vmatpush1.msra.mxu0 0.0
  %3052 = vmatprep.subr.mxu0 0.0
  %3053 = vmatpush1.msra.mxu0 0.0
  %3054 = vmatprep.subr.mxu0 0.0
  %3055 = vmatpush1.msra.mxu0 0.0
  %3056 = vmatprep.subr.mxu0 0.0
  %3057 = vmatpush1.msra.mxu0 0.0
  %3058 = vmatprep.subr.mxu0 0.0
  %3059 = vmatpush1.msra.mxu0 0.0
  %3060 = vmatprep.subr.mxu0 0.0
  %3061 = vmatpush1.msra.mxu0 0.0
  %3062 = vmatprep.subr.mxu0 0.0
  %3063 = vmatpush1.msra.mxu0 0.0
  %3064 = vmatprep.mubr.f32.mxu0 0.0
  %3065 = vmatmul.mubr.f32.gmra.mrb[0].mxu0 %v2998
  %v3066 = vpop.f32.mrb[0].mxu0
  %v3067 = vadd.f32 %v2996, %v3066
  %v3068 = vpop.f32.mrb[0].mxu0
  %3069 = vdwg.mxu0
  %v3070 = vmin.f32 %v3067, 20.0
  %v3071 = vmul.f32 %v3070, 1.442695
  %v3072 = vpow.pop %v3071
  %v3073 = vadd.f32 %v3072, 1.0
  %vm3074 = vcmp.eq.f32.partialorder %v3073, 1.0
  %v3075 = vsub.f32 %v3073, 1.0
  %v3076 = vsel %vm3074, 1.0, %v3075
  %v3077 = vlog2.pop %v3073
  %v3078 = vmul.f32 %v3077, 0.6931472
  %v3079 = vrcp.pop %v3076
  %v3080 = vmul.f32 %v3072, %v3079
  %v3081 = vmul.f32 %v3078, %v3080
  %v3082 = vsel %vm3074, %v3072, %v3081
  %vm3083 = vcmp.gt.f32.partialorder %v3067, 20.0
  %v3084 = vsel %vm3083, %v3067, %v3082
  %v3085 = vld [vmem:[%s1 + $0x218] sm:$0xff]
  %v3086 = vld [vmem:[%s1 + $0x220] sm:$0xff]
  %v3087 = vld [vmem:[%s1 + $0x228] sm:$0xff]
  %v3088 = vld [vmem:[%s1 + $0x230] sm:$0xff]
  %v3089 = vld [vmem:[%s1 + $0x239] sm:$0x1]
  %v3090 = vlaneseq
  %v3091 = vshrl.u32 %v3090, 7
  %v3092 = vsub.s32 0, %v3091
  %v3093 = vrot.slane %v3089, %v3092
  %v3095 = vsel %vm156, %v3084, 0
  %3097 = vmatprep.subr.mxu0 0.0
  %3098 = vmatpush1.msra.mxu0 %v3085
  %3099 = vmatprep.subr.mxu0 0.0
  %3100 = vmatpush1.msra.mxu0 %v3086
  %3101 = vmatprep.subr.mxu0 0.0
  %3102 = vmatpush1.msra.mxu0 %v3087
  %3103 = vmatprep.subr.mxu0 0.0
  %3104 = vmatpush1.msra.mxu0 %v3088
  %3105 = vmatprep.subr.mxu0 0.0
  %3106 = vmatpush1.msra.mxu0 0.0
  %3107 = vmatprep.subr.mxu0 0.0
  %3108 = vmatpush1.msra.mxu0 0.0
  %3109 = vmatprep.subr.mxu0 0.0
  %3110 = vmatpush1.msra.mxu0 0.0
  %3111 = vmatprep.subr.mxu0 0.0
  %3112 = vmatpush1.msra.mxu0 0.0
  %3113 = vmatprep.subr.mxu0 0.0
  %3114 = vmatpush1.msra.mxu0 0.0
  %3115 = vmatprep.subr.mxu0 0.0
  %3116 = vmatpush1.msra.mxu0 0.0
  %3117 = vmatprep.subr.mxu0 0.0
  %3118 = vmatpush1.msra.mxu0 0.0
  %3119 = vmatprep.subr.mxu0 0.0
  %3120 = vmatpush1.msra.mxu0 0.0
  %3121 = vmatprep.subr.mxu0 0.0
  %3122 = vmatpush1.msra.mxu0 0.0
  %3123 = vmatprep.subr.mxu0 0.0
  %3124 = vmatpush1.msra.mxu0 0.0
  %3125 = vmatprep.subr.mxu0 0.0
  %3126 = vmatpush1.msra.mxu0 0.0
  %3127 = vmatprep.subr.mxu0 0.0
  %3128 = vmatpush1.msra.mxu0 0.0
  %3129 = vmatprep.subr.mxu0 0.0
  %3130 = vmatpush1.msra.mxu0 0.0
  %3131 = vmatprep.subr.mxu0 0.0
  %3132 = vmatpush1.msra.mxu0 0.0
  %3133 = vmatprep.subr.mxu0 0.0
  %3134 = vmatpush1.msra.mxu0 0.0
  %3135 = vmatprep.subr.mxu0 0.0
  %3136 = vmatpush1.msra.mxu0 0.0
  %3137 = vmatprep.subr.mxu0 0.0
  %3138 = vmatpush1.msra.mxu0 0.0
  %3139 = vmatprep.subr.mxu0 0.0
  %3140 = vmatpush1.msra.mxu0 0.0
  %3141 = vmatprep.subr.mxu0 0.0
  %3142 = vmatpush1.msra.mxu0 0.0
  %3143 = vmatprep.subr.mxu0 0.0
  %3144 = vmatpush1.msra.mxu0 0.0
  %3145 = vmatprep.subr.mxu0 0.0
  %3146 = vmatpush1.msra.mxu0 0.0
  %3147 = vmatprep.subr.mxu0 0.0
  %3148 = vmatpush1.msra.mxu0 0.0
  %3149 = vmatprep.subr.mxu0 0.0
  %3150 = vmatpush1.msra.mxu0 0.0
  %3151 = vmatprep.subr.mxu0 0.0
  %3152 = vmatpush1.msra.mxu0 0.0
  %3153 = vmatprep.subr.mxu0 0.0
  %3154 = vmatpush1.msra.mxu0 0.0
  %3155 = vmatprep.subr.mxu0 0.0
  %3156 = vmatpush1.msra.mxu0 0.0
  %3157 = vmatprep.subr.mxu0 0.0
  %3158 = vmatpush1.msra.mxu0 0.0
  %3159 = vmatprep.subr.mxu0 0.0
  %3160 = vmatpush1.msra.mxu0 0.0
  %3161 = vmatprep.mubr.f32.mxu0 0.0
  %3162 = vmatmul.mubr.f32.gmra.mrb[0].mxu0 %v3095
  %v3163 = vpop.f32.mrb[0].mxu0
  %v3164 = vadd.f32 %v3093, %v3163
  %v3165 = vpop.f32.mrb[0].mxu0
  %3166 = vdwg.mxu0
  %vm3167 = vcmask 1024
  %3168 = vst.msk [vmem:[%s2] sm:$0x3] %vm3167, %v3164
  // Predicated region
  $region10: #{lagrangian_transformer_forward.1} parent=0 // pred_check
    _
  $region11: #{lagrangian_transformer_forward.1} parent=0 // pred_check_branch
    %3170 = sbr.rel (0) target = $region13
  $region12: #{lagrangian_transformer_forward.1} parent=0 // pred_region
    _
  $region13: #{lagrangian_transformer_forward.1} parent=0 // pred_fallthru
    _
  // Predicated region
  $region14: #{lagrangian_transformer_forward.1} parent=0 // pred_check
    _
  $region15: #{lagrangian_transformer_forward.1} parent=0 // pred_check_branch
    %3172 = sbr.rel (0) target = $region17
  $region16: #{lagrangian_transformer_forward.1} parent=0 // pred_region
    _
  $region17: #{lagrangian_transformer_forward.1} parent=0 // pred_fallthru
    _

</llo_original>
